<compile_context>
chip_gen: v7x
topology: tpu7x:2x2x1
jax: 0.10.0
libtpu: 0.0.40
codegen_flags: <defaults>
</compile_context>

<pallas_src>
import jax
import jax.numpy as jnp
from jax.experimental import pallas as pl
from jax.experimental.pallas import tpu as pltpu


# -------------------------- constants ---------------------------------------

D_IN = 784
N_OUT = 10
N_OUT_PAD = 128          # lane-dense output block
NEG_BIG = -1e30          # bias for padded classes -> exp() underflows to 0

LAYER_DIMS = [(784, 256), (256, 256), (256, 256),
              (256, 128), (128, 128), (128, 10)]


def _choose_tb(batch):
    """Largest batch tile in {512, 256, 128} that still leaves >= 2 grid steps
    (so v7x's two TensorCores both get work on the 'parallel' axis)."""
    for tb in (512, 256):
        if batch >= 2 * tb:
            return tb
    return 128


# -------------------------- Pallas kernel -----------------------------------

def _net_kernel(x_ref,
                w1_ref, b1_ref,
                w2_ref, b2_ref,
                w3_ref, b3_ref,
                w4_ref, b4_ref,
                w5_ref, b5_ref,
                w6_ref, b6_ref,
                out_ref):
    def dense_relu(h_bf16, w_ref, b_ref):
        # bf16 operands on the MXU, f32 accumulation; elementwise stays f32.
        y = jnp.dot(h_bf16, w_ref[...], preferred_element_type=jnp.float32)
        y = y + b_ref[...]                          # (1, out) broadcasts
        return jnp.maximum(y, 0.0)

    h = dense_relu(x_ref[...], w1_ref, b1_ref)                  # x already bf16
    h = dense_relu(h.astype(jnp.bfloat16), w2_ref, b2_ref)      # (TB, 256)
    h = dense_relu(h.astype(jnp.bfloat16), w3_ref, b3_ref)      # (TB, 256)
    h = dense_relu(h.astype(jnp.bfloat16), w4_ref, b4_ref)      # (TB, 128)
    h = dense_relu(h.astype(jnp.bfloat16), w5_ref, b5_ref)      # (TB, 128)

    # TODO(synk): F.dropout(x, training=self.training) — eval-mode identity
    # (inference semantics); training-mode masking would need pltpu.prng_seed
    # + pltpu.stateful_bernoulli.

    logits = jnp.dot(h.astype(jnp.bfloat16), w6_ref[...],
                     preferred_element_type=jnp.float32)
    logits = logits + b6_ref[...]                   # (TB, 128); pad cols = -1e30

    # log_softmax over the (padded) class axis.  Padded columns carry a -1e30
    # bias, so exp(shifted) == 0 there and the denominator equals the
    # unpadded 10-class softmax exactly.
    m = jnp.max(logits, axis=-1, keepdims=True)
    shifted = logits - m
    lse = jnp.log(jnp.sum(jnp.exp(shifted), axis=-1, keepdims=True))
    out_ref[...] = (shifted - lse).astype(out_ref.dtype)        # bf16 store


# -------------------------- parameter prep ----------------------------------

def init_params(key):
    """f32 params mimicking nn.Linear default init; W stored as (in, out)."""
    params = []
    for (fan_in, fan_out) in LAYER_DIMS:
        key, kw, kb = jax.random.split(key, 3)
        bound = 1.0 / (fan_in ** 0.5)
        w = jax.random.uniform(kw, (fan_in, fan_out), jnp.float32,
                               minval=-bound, maxval=bound)
        b = jax.random.uniform(kb, (1, fan_out), jnp.float32,
                               minval=-bound, maxval=bound)
        params.append((w, b))
    return params


def prepare_params(params):
    """Cast weights to bf16 (biases f32); pad only layer-6 N: 10 -> 128."""
    prepped = []
    for idx, (w, b) in enumerate(params):
        if idx == len(params) - 1:
            # zero weight columns + large-negative bias for padded classes
            w = jnp.pad(w, ((0, 0), (0, N_OUT_PAD - N_OUT)))
            b = jnp.pad(b, ((0, 0), (0, N_OUT_PAD - N_OUT)),
                        constant_values=NEG_BIG)
        prepped.append((w.astype(jnp.bfloat16), b.astype(jnp.float32)))
    return prepped


# -------------------------- wrapper -----------------------------------------

def net_forward(x, kparams):
    """x: (B, 784) f32; kparams: output of prepare_params(). Returns (B,10) f32."""
    B = x.shape[0]
    TB = _choose_tb(B)
    B_pad = pl.cdiv(B, TB) * TB

    # bf16 activation stream; batch pad (if any) is fused with the cast so the
    # extra pass (when needed) writes half-size data.  No feature-dim pad.
    x_bf16 = x.astype(jnp.bfloat16)
    if B_pad != B:
        x_bf16 = jnp.pad(x_bf16, ((0, B_pad - B), (0, 0)))

    flat = [x_bf16]
    for w, b in kparams:
        flat.extend([w, b])

    # x tile pipelined over the batch; last dim == full array dim (784), so
    # Mosaic lane-pads it in VMEM without any HBM-side padding.
    in_specs = [pl.BlockSpec((TB, D_IN), lambda i: (i, 0))]
    for w, b in kparams:
        # Weights/biases resident across batch tiles (constant index_map ->
        # no re-DMA between grid steps).
        in_specs.append(pl.BlockSpec(w.shape, lambda i: (0, 0)))
        in_specs.append(pl.BlockSpec(b.shape, lambda i: (0, 0)))

    out = pl.pallas_call(
        _net_kernel,
        out_shape=jax.ShapeDtypeStruct((B_pad, N_OUT_PAD), jnp.bfloat16),
        grid=(B_pad // TB,),
        in_specs=in_specs,
        out_specs=pl.BlockSpec((TB, N_OUT_PAD), lambda i: (i, 0)),
        compiler_params=pltpu.CompilerParams(
            dimension_semantics=("parallel",)),
    )(*flat)

    # Slice off pad rows / pad classes, upcast the tiny (B, 10) result to f32.
    return out[:B, :N_OUT].astype(jnp.float32)


# -------------------------- reference (pure JAX) -----------------------------

def net_forward_ref(x, params):
    """Mirrors the kernel's matmul numerics: bf16 operands, f32 accumulation."""
    h = x
    for w, b in params[:-1]:
        y = jnp.dot(h.astype(jnp.bfloat16), w.astype(jnp.bfloat16),
                    preferred_element_type=jnp.float32) + b
        h = jnp.maximum(y, 0.0)
    w, b = params[-1]
    logits = jnp.dot(h.astype(jnp.bfloat16), w.astype(jnp.bfloat16),
                     preferred_element_type=jnp.float32) + b
    return jax.nn.log_softmax(logits, axis=-1)


# -------------------------- main ---------------------------------------------

if __name__ == "__main__":
    key = jax.random.PRNGKey(0)
    key, kx = jax.random.split(key)

    B = 256                          # 2 batch tiles (TB=128) -> exercises grid
    x = jax.random.normal(kx, (B, D_IN), jnp.float32)

    params = init_params(key)        # f32 master params (PyTorch-equivalent)
    kparams = prepare_params(params) # padded + bf16 kernel params

    out = net_forward(x, kparams)
    out = jax.block_until_ready(out)

    ref = net_forward_ref(x, params)
    assert out.shape == (B, N_OUT), out.shape
    max_err = jnp.max(jnp.abs(out - ref))
    # Tolerance covers the final bf16 output store (~0.4% relative rounding).
    assert jnp.allclose(out, ref, atol=5e-2, rtol=5e-2), f"max abs err {max_err}"

    print("KERNEL_OK")
</pallas_src>

<mosaic_0001>
module attributes {stable_mosaic.version = 11 : i64} {
  func.func @_net_kernel(%arg0: i32, %arg1: memref<128x784xbf16, #tpu.memory_space<vmem>>, %arg2: memref<784x256xbf16, #tpu.memory_space<vmem>>, %arg3: memref<1x256xf32, #tpu.memory_space<vmem>>, %arg4: memref<256x256xbf16, #tpu.memory_space<vmem>>, %arg5: memref<1x256xf32, #tpu.memory_space<vmem>>, %arg6: memref<256x256xbf16, #tpu.memory_space<vmem>>, %arg7: memref<1x256xf32, #tpu.memory_space<vmem>>, %arg8: memref<256x128xbf16, #tpu.memory_space<vmem>>, %arg9: memref<1x128xf32, #tpu.memory_space<vmem>>, %arg10: memref<128x128xbf16, #tpu.memory_space<vmem>>, %arg11: memref<1x128xf32, #tpu.memory_space<vmem>>, %arg12: memref<128x128xbf16, #tpu.memory_space<vmem>>, %arg13: memref<1x128xf32, #tpu.memory_space<vmem>>, %arg14: memref<128x128xbf16, #tpu.memory_space<vmem>>) attributes {dimension_semantics = [#tpu.dimension_semantics<parallel>], iteration_bounds = array<i64: 2>, scalar_prefetch = 0 : i64, scratch_operands = 0 : i64, tpu.core_type = #tpu.core_type<tc>, window_params = [{transform_indices = @transform_0, window_bounds = array<i64: 128, 784>}, {pipeline_mode = #tpu.pipeline_mode<synchronous>, transform_indices = @transform_1, window_bounds = array<i64: 784, 256>}, {pipeline_mode = #tpu.pipeline_mode<synchronous>, transform_indices = @transform_2, window_bounds = array<i64: 1, 256>}, {pipeline_mode = #tpu.pipeline_mode<synchronous>, transform_indices = @transform_3, window_bounds = array<i64: 256, 256>}, {pipeline_mode = #tpu.pipeline_mode<synchronous>, transform_indices = @transform_4, window_bounds = array<i64: 1, 256>}, {pipeline_mode = #tpu.pipeline_mode<synchronous>, transform_indices = @transform_5, window_bounds = array<i64: 256, 256>}, {pipeline_mode = #tpu.pipeline_mode<synchronous>, transform_indices = @transform_6, window_bounds = array<i64: 1, 256>}, {pipeline_mode = #tpu.pipeline_mode<synchronous>, transform_indices = @transform_7, window_bounds = array<i64: 256, 128>}, {pipeline_mode = #tpu.pipeline_mode<synchronous>, transform_indices = @transform_8, window_bounds = array<i64: 1, 128>}, {pipeline_mode = #tpu.pipeline_mode<synchronous>, transform_indices = @transform_9, window_bounds = array<i64: 128, 128>}, {pipeline_mode = #tpu.pipeline_mode<synchronous>, transform_indices = @transform_10, window_bounds = array<i64: 1, 128>}, {pipeline_mode = #tpu.pipeline_mode<synchronous>, transform_indices = @transform_11, window_bounds = array<i64: 128, 128>}, {pipeline_mode = #tpu.pipeline_mode<synchronous>, transform_indices = @transform_12, window_bounds = array<i64: 1, 128>}, {transform_indices = @transform_13, window_bounds = array<i64: 128, 128>}]} {
    %c0 = arith.constant 0 : index
    %c0_0 = arith.constant 0 : index
    %0 = vector.load %arg1[%c0, %c0_0] : memref<128x784xbf16, #tpu.memory_space<vmem>>, vector<128x784xbf16>
    %c0_1 = arith.constant 0 : index
    %c0_2 = arith.constant 0 : index
    %1 = vector.load %arg2[%c0_1, %c0_2] : memref<784x256xbf16, #tpu.memory_space<vmem>>, vector<784x256xbf16>
    %cst = arith.constant dense<0.000000e+00> : vector<128x256xf32>
    %2 = tpu.matmul %0, %1, %cst {dimension_numbers = #tpu.dot_dimension_numbers<[1], [0], [0], [1], [0, 0, 1, 1], [], []>} : vector<128x784xbf16>, vector<784x256xbf16>, vector<128x256xf32> -> vector<128x256xf32>
    %c0_3 = arith.constant 0 : index
    %c0_4 = arith.constant 0 : index
    %3 = vector.load %arg3[%c0_3, %c0_4] : memref<1x256xf32, #tpu.memory_space<vmem>>, vector<1x256xf32>
    %4 = vector.broadcast %3 : vector<1x256xf32> to vector<128x256xf32>
    %5 = arith.addf %2, %4 : vector<128x256xf32>
    %cst_5 = arith.constant 0.000000e+00 : f32
    %6 = vector.broadcast %cst_5 : f32 to vector<128x256xf32>
    %7 = arith.maximumf %5, %6 : vector<128x256xf32>
    %8 = arith.truncf %7 : vector<128x256xf32> to vector<128x256xbf16>
    %c0_6 = arith.constant 0 : index
    %c0_7 = arith.constant 0 : index
    %9 = vector.load %arg4[%c0_6, %c0_7] : memref<256x256xbf16, #tpu.memory_space<vmem>>, vector<256x256xbf16>
    %cst_8 = arith.constant dense<0.000000e+00> : vector<128x256xf32>
    %10 = tpu.matmul %8, %9, %cst_8 {dimension_numbers = #tpu.dot_dimension_numbers<[1], [0], [0], [1], [0, 0, 1, 1], [], []>} : vector<128x256xbf16>, vector<256x256xbf16>, vector<128x256xf32> -> vector<128x256xf32>
    %c0_9 = arith.constant 0 : index
    %c0_10 = arith.constant 0 : index
    %11 = vector.load %arg5[%c0_9, %c0_10] : memref<1x256xf32, #tpu.memory_space<vmem>>, vector<1x256xf32>
    %12 = vector.broadcast %11 : vector<1x256xf32> to vector<128x256xf32>
    %13 = arith.addf %10, %12 : vector<128x256xf32>
    %cst_11 = arith.constant 0.000000e+00 : f32
    %14 = vector.broadcast %cst_11 : f32 to vector<128x256xf32>
    %15 = arith.maximumf %13, %14 : vector<128x256xf32>
    %16 = arith.truncf %15 : vector<128x256xf32> to vector<128x256xbf16>
    %c0_12 = arith.constant 0 : index
    %c0_13 = arith.constant 0 : index
    %17 = vector.load %arg6[%c0_12, %c0_13] : memref<256x256xbf16, #tpu.memory_space<vmem>>, vector<256x256xbf16>
    %cst_14 = arith.constant dense<0.000000e+00> : vector<128x256xf32>
    %18 = tpu.matmul %16, %17, %cst_14 {dimension_numbers = #tpu.dot_dimension_numbers<[1], [0], [0], [1], [0, 0, 1, 1], [], []>} : vector<128x256xbf16>, vector<256x256xbf16>, vector<128x256xf32> -> vector<128x256xf32>
    %c0_15 = arith.constant 0 : index
    %c0_16 = arith.constant 0 : index
    %19 = vector.load %arg7[%c0_15, %c0_16] : memref<1x256xf32, #tpu.memory_space<vmem>>, vector<1x256xf32>
    %20 = vector.broadcast %19 : vector<1x256xf32> to vector<128x256xf32>
    %21 = arith.addf %18, %20 : vector<128x256xf32>
    %cst_17 = arith.constant 0.000000e+00 : f32
    %22 = vector.broadcast %cst_17 : f32 to vector<128x256xf32>
    %23 = arith.maximumf %21, %22 : vector<128x256xf32>
    %24 = arith.truncf %23 : vector<128x256xf32> to vector<128x256xbf16>
    %c0_18 = arith.constant 0 : index
    %c0_19 = arith.constant 0 : index
    %25 = vector.load %arg8[%c0_18, %c0_19] : memref<256x128xbf16, #tpu.memory_space<vmem>>, vector<256x128xbf16>
    %cst_20 = arith.constant dense<0.000000e+00> : vector<128x128xf32>
    %26 = tpu.matmul %24, %25, %cst_20 {dimension_numbers = #tpu.dot_dimension_numbers<[1], [0], [0], [1], [0, 0, 1, 1], [], []>} : vector<128x256xbf16>, vector<256x128xbf16>, vector<128x128xf32> -> vector<128x128xf32>
    %c0_21 = arith.constant 0 : index
    %c0_22 = arith.constant 0 : index
    %27 = vector.load %arg9[%c0_21, %c0_22] : memref<1x128xf32, #tpu.memory_space<vmem>>, vector<1x128xf32>
    %28 = vector.broadcast %27 : vector<1x128xf32> to vector<128x128xf32>
    %29 = arith.addf %26, %28 : vector<128x128xf32>
    %cst_23 = arith.constant 0.000000e+00 : f32
    %30 = vector.broadcast %cst_23 : f32 to vector<128x128xf32>
    %31 = arith.maximumf %29, %30 : vector<128x128xf32>
    %32 = arith.truncf %31 : vector<128x128xf32> to vector<128x128xbf16>
    %c0_24 = arith.constant 0 : index
    %c0_25 = arith.constant 0 : index
    %33 = vector.load %arg10[%c0_24, %c0_25] : memref<128x128xbf16, #tpu.memory_space<vmem>>, vector<128x128xbf16>
    %cst_26 = arith.constant dense<0.000000e+00> : vector<128x128xf32>
    %34 = tpu.matmul %32, %33, %cst_26 {dimension_numbers = #tpu.dot_dimension_numbers<[1], [0], [0], [1], [0, 0, 1, 1], [], []>} : vector<128x128xbf16>, vector<128x128xbf16>, vector<128x128xf32> -> vector<128x128xf32>
    %c0_27 = arith.constant 0 : index
    %c0_28 = arith.constant 0 : index
    %35 = vector.load %arg11[%c0_27, %c0_28] : memref<1x128xf32, #tpu.memory_space<vmem>>, vector<1x128xf32>
    %36 = vector.broadcast %35 : vector<1x128xf32> to vector<128x128xf32>
    %37 = arith.addf %34, %36 : vector<128x128xf32>
    %cst_29 = arith.constant 0.000000e+00 : f32
    %38 = vector.broadcast %cst_29 : f32 to vector<128x128xf32>
    %39 = arith.maximumf %37, %38 : vector<128x128xf32>
    %40 = arith.truncf %39 : vector<128x128xf32> to vector<128x128xbf16>
    %c0_30 = arith.constant 0 : index
    %c0_31 = arith.constant 0 : index
    %41 = vector.load %arg12[%c0_30, %c0_31] : memref<128x128xbf16, #tpu.memory_space<vmem>>, vector<128x128xbf16>
    %cst_32 = arith.constant dense<0.000000e+00> : vector<128x128xf32>
    %42 = tpu.matmul %40, %41, %cst_32 {dimension_numbers = #tpu.dot_dimension_numbers<[1], [0], [0], [1], [0, 0, 1, 1], [], []>} : vector<128x128xbf16>, vector<128x128xbf16>, vector<128x128xf32> -> vector<128x128xf32>
    %c0_33 = arith.constant 0 : index
    %c0_34 = arith.constant 0 : index
    %43 = vector.load %arg13[%c0_33, %c0_34] : memref<1x128xf32, #tpu.memory_space<vmem>>, vector<1x128xf32>
    %44 = vector.broadcast %43 : vector<1x128xf32> to vector<128x128xf32>
    %45 = arith.addf %42, %44 : vector<128x128xf32>
    %cst_35 = arith.constant dense<0xFF800000> : vector<128xf32>
    %46 = vector.multi_reduction <maximumf>, %45, %cst_35 [1] : vector<128x128xf32> to vector<128xf32>
    %47 = vector.shape_cast %46 : vector<128xf32> to vector<128x1xf32>
    %48 = vector.broadcast %47 : vector<128x1xf32> to vector<128x128xf32>
    %49 = arith.subf %45, %48 : vector<128x128xf32>
    %50 = math.exp %49 : vector<128x128xf32>
    %cst_36 = arith.constant dense<0.000000e+00> : vector<128xf32>
    %51 = vector.multi_reduction <add>, %50, %cst_36 [1] : vector<128x128xf32> to vector<128xf32>
    %52 = vector.shape_cast %51 : vector<128xf32> to vector<128x1xf32>
    %53 = math.log %52 : vector<128x1xf32>
    %54 = vector.broadcast %53 : vector<128x1xf32> to vector<128x128xf32>
    %55 = arith.subf %49, %54 : vector<128x128xf32>
    %56 = arith.truncf %55 : vector<128x128xf32> to vector<128x128xbf16>
    %c0_37 = arith.constant 0 : index
    %c0_38 = arith.constant 0 : index
    %57 = vector.load %arg14[%c0_37, %c0_38] : memref<128x128xbf16, #tpu.memory_space<vmem>>, vector<128x128xbf16>
    tpu.vector_store %arg14[%c0_37, %c0_38], %56 {strides = array<i32>} : memref<128x128xbf16, #tpu.memory_space<vmem>>, vector<128x128xbf16>,
    return
  }
  func.func @transform_0(%arg0: i32) -> (i32, i32) {
    %c0_i32 = arith.constant 0 : i32
    %c0_i32_0 = arith.constant 0 : i32
    return %arg0, %c0_i32 : i32, i32
  }
  func.func @transform_1(%arg0: i32) -> (i32, i32) {
    %c0_i32 = arith.constant 0 : i32
    %c0_i32_0 = arith.constant 0 : i32
    %c0_i32_1 = arith.constant 0 : i32
    return %c0_i32, %c0_i32_0 : i32, i32
  }
  func.func @transform_2(%arg0: i32) -> (i32, i32) {
    %c0_i32 = arith.constant 0 : i32
    %c0_i32_0 = arith.constant 0 : i32
    %c0_i32_1 = arith.constant 0 : i32
    return %c0_i32, %c0_i32_0 : i32, i32
  }
  func.func @transform_3(%arg0: i32) -> (i32, i32) {
    %c0_i32 = arith.constant 0 : i32
    %c0_i32_0 = arith.constant 0 : i32
    %c0_i32_1 = arith.constant 0 : i32
    return %c0_i32, %c0_i32_0 : i32, i32
  }
  func.func @transform_4(%arg0: i32) -> (i32, i32) {
    %c0_i32 = arith.constant 0 : i32
    %c0_i32_0 = arith.constant 0 : i32
    %c0_i32_1 = arith.constant 0 : i32
    return %c0_i32, %c0_i32_0 : i32, i32
  }
  func.func @transform_5(%arg0: i32) -> (i32, i32) {
    %c0_i32 = arith.constant 0 : i32
    %c0_i32_0 = arith.constant 0 : i32
    %c0_i32_1 = arith.constant 0 : i32
    return %c0_i32, %c0_i32_0 : i32, i32
  }
  func.func @transform_6(%arg0: i32) -> (i32, i32) {
    %c0_i32 = arith.constant 0 : i32
    %c0_i32_0 = arith.constant 0 : i32
    %c0_i32_1 = arith.constant 0 : i32
    return %c0_i32, %c0_i32_0 : i32, i32
  }
  func.func @transform_7(%arg0: i32) -> (i32, i32) {
    %c0_i32 = arith.constant 0 : i32
    %c0_i32_0 = arith.constant 0 : i32
    %c0_i32_1 = arith.constant 0 : i32
    return %c0_i32, %c0_i32_0 : i32, i32
  }
  func.func @transform_8(%arg0: i32) -> (i32, i32) {
    %c0_i32 = arith.constant 0 : i32
    %c0_i32_0 = arith.constant 0 : i32
    %c0_i32_1 = arith.constant 0 : i32
    return %c0_i32, %c0_i32_0 : i32, i32
  }
  func.func @transform_9(%arg0: i32) -> (i32, i32) {
    %c0_i32 = arith.constant 0 : i32
    %c0_i32_0 = arith.constant 0 : i32
    %c0_i32_1 = arith.constant 0 : i32
    return %c0_i32, %c0_i32_0 : i32, i32
  }
  func.func @transform_10(%arg0: i32) -> (i32, i32) {
    %c0_i32 = arith.constant 0 : i32
    %c0_i32_0 = arith.constant 0 : i32
    %c0_i32_1 = arith.constant 0 : i32
    return %c0_i32, %c0_i32_0 : i32, i32
  }
  func.func @transform_11(%arg0: i32) -> (i32, i32) {
    %c0_i32 = arith.constant 0 : i32
    %c0_i32_0 = arith.constant 0 : i32
    %c0_i32_1 = arith.constant 0 : i32
    return %c0_i32, %c0_i32_0 : i32, i32
  }
  func.func @transform_12(%arg0: i32) -> (i32, i32) {
    %c0_i32 = arith.constant 0 : i32
    %c0_i32_0 = arith.constant 0 : i32
    %c0_i32_1 = arith.constant 0 : i32
    return %c0_i32, %c0_i32_0 : i32, i32
  }
  func.func @transform_13(%arg0: i32) -> (i32, i32) {
    %c0_i32 = arith.constant 0 : i32
    %c0_i32_0 = arith.constant 0 : i32
    return %arg0, %c0_i32 : i32, i32
  }
}

</mosaic_0001>

<llo_original>
// kernel: tpu_custom_call.1
$region0: #{tpu_custom_call.1}
  #allocation0 [shape = 'u32[]', space=smem, size = 0x4, offset = 0x4, fixed_abs, tag = 'smem constant byte address 0x4 - core index']
  #allocation1 [shape = 'u32[144,128]{1,0:T(1,128)}', space=vmem, size = 0x12000, scoped, tag = 'internal scratch']
  %s0 = inlined_call_operand.vmem [shape: bf16[256,784], index: 0, kind: input, shape index: {}]
  %s1 = inlined_call_operand.vmem [shape: bf16[784,256], index: 1, kind: input, shape index: {}]
  %s2 = inlined_call_operand.vmem [shape: f32[1,256], index: 2, kind: input, shape index: {}]
  %s3 = inlined_call_operand.vmem [shape: bf16[256,256], index: 3, kind: input, shape index: {}]
  %s4 = inlined_call_operand.vmem [shape: f32[1,256], index: 4, kind: input, shape index: {}]
  %s5 = inlined_call_operand.vmem [shape: bf16[256,256], index: 5, kind: input, shape index: {}]
  %s6 = inlined_call_operand.vmem [shape: f32[1,256], index: 6, kind: input, shape index: {}]
  %s7 = inlined_call_operand.vmem [shape: bf16[256,128], index: 7, kind: input, shape index: {}]
  %s8 = inlined_call_operand.vmem [shape: f32[1,128], index: 8, kind: input, shape index: {}]
  %s9 = inlined_call_operand.vmem [shape: bf16[128,128], index: 9, kind: input, shape index: {}]
  %s10 = inlined_call_operand.vmem [shape: f32[1,128], index: 10, kind: input, shape index: {}]
  %s11 = inlined_call_operand.vmem [shape: bf16[128,128], index: 11, kind: input, shape index: {}]
  %s12 = inlined_call_operand.vmem [shape: f32[1,128], index: 12, kind: input, shape index: {}]
  %s13 = inlined_call_operand.hbm [shape: bf16[256,128], index: 13, kind: output, shape index: {}]
  %s14 = sld [smem:[#allocation0]]
  $region85: #{tpu_custom_call.1} parent=0
    _
  %s16 = ssub.s32 1, %s14
  %s17 = scalar_select 0, %s16, %s14
  $region1: #{tpu_custom_call.1} parent=0
    #allocation2 [shape = 'u8[65536]{0}', space=vmem, size = 0x10000, scoped, tag = 'output window, operand 0']
    #allocation3 [shape = 's32[2]{0}', space=sflag, size = 0x8, scoped, tag = 'scoped memory for tpu_custom_call.1']
    %18 = vsyncpa [#allocation3], 0
    %s19 = scalar_lea.sflag [#allocation3], 1
    %20 = vsyncpa %s19, 0
    loop: start=0, step=1, limit=4
    $region2: #{tpu_custom_call.1} parent=1 // loop_pre_header
      _
    $region3: #{tpu_custom_call.1} parent=1 // loop_header
      %s22 = sphi 0, %s26
      %p23 = scmp.ge.s32.totalorder %s22, 4
      %s32 = sphi 0, %s34
      %s35 = sphi 0, %s32
      %s36 = sphi 0, %s35
      %s52 = sphi 0, %s36
      %s56 = sphi 0, %s56
      %s58 = sphi 0, %s56
      %s59 = sphi 0, %s58
      %s73 = sphi 0, %s59
      %s77 = sphi 0, %s77
      %s79 = sphi 0, %s77
      %s80 = sphi 0, %s79
      %s94 = sphi 0, %s80
      %s98 = sphi 0, %s98
      %s100 = sphi 0, %s98
      %s101 = sphi 0, %s100
      %s115 = sphi 0, %s101
      %s119 = sphi 0, %s119
      %s121 = sphi 0, %s119
      %s122 = sphi 0, %s121
      %s136 = sphi 0, %s122
      %s140 = sphi 0, %s140
      %s142 = sphi 0, %s140
      %s143 = sphi 0, %s142
      %s157 = sphi 0, %s143
      %s161 = sphi 0, %s161
      %s163 = sphi 0, %s161
      %s164 = sphi 0, %s163
      %s178 = sphi 0, %s164
      %s182 = sphi 0, %s182
      %s184 = sphi 0, %s182
      %s185 = sphi 0, %s184
      %s199 = sphi 0, %s185
      %s203 = sphi 0, %s203
      %s205 = sphi 0, %s203
      %s206 = sphi 0, %s205
      %s220 = sphi 0, %s206
      %s224 = sphi 0, %s224
      %s226 = sphi 0, %s224
      %s227 = sphi 0, %s226
      %s241 = sphi 0, %s227
      %s245 = sphi 0, %s245
      %s247 = sphi 0, %s245
      %s248 = sphi 0, %s247
      %s262 = sphi 0, %s248
      %s266 = sphi 0, %s266
      %s268 = sphi 0, %s266
      %s269 = sphi 0, %s268
      %s283 = sphi 0, %s269
      %s287 = sphi 0, %s287
      %s289 = sphi 0, %s287
      %s290 = sphi 0, %s289
      %s304 = sphi 0, %s290
      %s310 = sphi 0, %s312
      %s313 = sphi 0, %s310
      %s314 = sphi 0, %s313
      %s330 = sphi 0, %s314
    $region4: #{tpu_custom_call.1} parent=1 // loop_header_branch
      %25 = sbr.rel (%p23) target = $region8
    $region5: #{tpu_custom_call.1} parent=1 // loop_body
      %s27 = ssub.s32 %s22, 1
      %s28 = ssub.s32 %s22, 2
      %s29 = sadd.s32 %s22, 1
      %s30 = ssub.s32 %s22, %s29
      %p31 = scmp.eq.s32.totalorder %s30, 0
      %s33 = sadd.s32 %s32, 1
      %s34 = scalar_select %p31, %s32, %s33
      %p37 = pneg %p31
      %p38 = scmp.eq.s32.totalorder %s22, 1
      %p39 = por %p37, %p38
      %p40 = scmp.ne.s32.totalorder %s32, %s35
      %p41 = scmp.eq.s32.totalorder %s22, 0
      %p42 = por %p40, %p41
      %p43 = scmp.ne.s32.totalorder %s32, %s35
      %p44 = scmp.eq.s32.totalorder %s27, 1
      %p45 = por %p43, %p44
      %p46 = scmp.ne.s32.totalorder %s35, %s36
      %p47 = scmp.eq.s32.totalorder %s27, 0
      %p48 = por %p46, %p47
      %p49 = scmp.ne.s32.totalorder %s35, %s36
      %p50 = scmp.eq.s32.totalorder %s28, 1
      %p51 = por %p49, %p50
      %p53 = scmp.ne.s32.totalorder %s36, %s52
      %p54 = scmp.eq.s32.totalorder %s28, 0
      %p55 = por %p53, %p54
      %s57 = sadd.s32 %s56, 1
      %p60 = scmp.eq.s32.totalorder %s22, 1
      %p61 = scmp.ne.s32.totalorder %s56, %s58
      %p62 = scmp.eq.s32.totalorder %s22, 0
      %p63 = por %p61, %p62
      %p64 = scmp.ne.s32.totalorder %s56, %s58
      %p65 = scmp.eq.s32.totalorder %s27, 1
      %p66 = por %p64, %p65
      %p67 = scmp.ne.s32.totalorder %s58, %s59
      %p68 = scmp.eq.s32.totalorder %s27, 0
      %p69 = por %p67, %p68
      %p70 = scmp.ne.s32.totalorder %s58, %s59
      %p71 = scmp.eq.s32.totalorder %s28, 1
      %p72 = por %p70, %p71
      %p74 = scmp.ne.s32.totalorder %s59, %s73
      %p75 = scmp.eq.s32.totalorder %s28, 0
      %p76 = por %p74, %p75
      %s78 = sadd.s32 %s77, 1
      %p81 = scmp.eq.s32.totalorder %s22, 1
      %p82 = scmp.ne.s32.totalorder %s77, %s79
      %p83 = scmp.eq.s32.totalorder %s22, 0
      %p84 = por %p82, %p83
      %p85 = scmp.ne.s32.totalorder %s77, %s79
      %p86 = scmp.eq.s32.totalorder %s27, 1
      %p87 = por %p85, %p86
      %p88 = scmp.ne.s32.totalorder %s79, %s80
      %p89 = scmp.eq.s32.totalorder %s27, 0
      %p90 = por %p88, %p89
      %p91 = scmp.ne.s32.totalorder %s79, %s80
      %p92 = scmp.eq.s32.totalorder %s28, 1
      %p93 = por %p91, %p92
      %p95 = scmp.ne.s32.totalorder %s80, %s94
      %p96 = scmp.eq.s32.totalorder %s28, 0
      %p97 = por %p95, %p96
      %s99 = sadd.s32 %s98, 1
      %p102 = scmp.eq.s32.totalorder %s22, 1
      %p103 = scmp.ne.s32.totalorder %s98, %s100
      %p104 = scmp.eq.s32.totalorder %s22, 0
      %p105 = por %p103, %p104
      %p106 = scmp.ne.s32.totalorder %s98, %s100
      %p107 = scmp.eq.s32.totalorder %s27, 1
      %p108 = por %p106, %p107
      %p109 = scmp.ne.s32.totalorder %s100, %s101
      %p110 = scmp.eq.s32.totalorder %s27, 0
      %p111 = por %p109, %p110
      %p112 = scmp.ne.s32.totalorder %s100, %s101
      %p113 = scmp.eq.s32.totalorder %s28, 1
      %p114 = por %p112, %p113
      %p116 = scmp.ne.s32.totalorder %s101, %s115
      %p117 = scmp.eq.s32.totalorder %s28, 0
      %p118 = por %p116, %p117
      %s120 = sadd.s32 %s119, 1
      %p123 = scmp.eq.s32.totalorder %s22, 1
      %p124 = scmp.ne.s32.totalorder %s119, %s121
      %p125 = scmp.eq.s32.totalorder %s22, 0
      %p126 = por %p124, %p125
      %p127 = scmp.ne.s32.totalorder %s119, %s121
      %p128 = scmp.eq.s32.totalorder %s27, 1
      %p129 = por %p127, %p128
      %p130 = scmp.ne.s32.totalorder %s121, %s122
      %p131 = scmp.eq.s32.totalorder %s27, 0
      %p132 = por %p130, %p131
      %p133 = scmp.ne.s32.totalorder %s121, %s122
      %p134 = scmp.eq.s32.totalorder %s28, 1
      %p135 = por %p133, %p134
      %p137 = scmp.ne.s32.totalorder %s122, %s136
      %p138 = scmp.eq.s32.totalorder %s28, 0
      %p139 = por %p137, %p138
      %s141 = sadd.s32 %s140, 1
      %p144 = scmp.eq.s32.totalorder %s22, 1
      %p145 = scmp.ne.s32.totalorder %s140, %s142
      %p146 = scmp.eq.s32.totalorder %s22, 0
      %p147 = por %p145, %p146
      %p148 = scmp.ne.s32.totalorder %s140, %s142
      %p149 = scmp.eq.s32.totalorder %s27, 1
      %p150 = por %p148, %p149
      %p151 = scmp.ne.s32.totalorder %s142, %s143
      %p152 = scmp.eq.s32.totalorder %s27, 0
      %p153 = por %p151, %p152
      %p154 = scmp.ne.s32.totalorder %s142, %s143
      %p155 = scmp.eq.s32.totalorder %s28, 1
      %p156 = por %p154, %p155
      %p158 = scmp.ne.s32.totalorder %s143, %s157
      %p159 = scmp.eq.s32.totalorder %s28, 0
      %p160 = por %p158, %p159
      %s162 = sadd.s32 %s161, 1
      %p165 = scmp.eq.s32.totalorder %s22, 1
      %p166 = scmp.ne.s32.totalorder %s161, %s163
      %p167 = scmp.eq.s32.totalorder %s22, 0
      %p168 = por %p166, %p167
      %p169 = scmp.ne.s32.totalorder %s161, %s163
      %p170 = scmp.eq.s32.totalorder %s27, 1
      %p171 = por %p169, %p170
      %p172 = scmp.ne.s32.totalorder %s163, %s164
      %p173 = scmp.eq.s32.totalorder %s27, 0
      %p174 = por %p172, %p173
      %p175 = scmp.ne.s32.totalorder %s163, %s164
      %p176 = scmp.eq.s32.totalorder %s28, 1
      %p177 = por %p175, %p176
      %p179 = scmp.ne.s32.totalorder %s164, %s178
      %p180 = scmp.eq.s32.totalorder %s28, 0
      %p181 = por %p179, %p180
      %s183 = sadd.s32 %s182, 1
      %p186 = scmp.eq.s32.totalorder %s22, 1
      %p187 = scmp.ne.s32.totalorder %s182, %s184
      %p188 = scmp.eq.s32.totalorder %s22, 0
      %p189 = por %p187, %p188
      %p190 = scmp.ne.s32.totalorder %s182, %s184
      %p191 = scmp.eq.s32.totalorder %s27, 1
      %p192 = por %p190, %p191
      %p193 = scmp.ne.s32.totalorder %s184, %s185
      %p194 = scmp.eq.s32.totalorder %s27, 0
      %p195 = por %p193, %p194
      %p196 = scmp.ne.s32.totalorder %s184, %s185
      %p197 = scmp.eq.s32.totalorder %s28, 1
      %p198 = por %p196, %p197
      %p200 = scmp.ne.s32.totalorder %s185, %s199
      %p201 = scmp.eq.s32.totalorder %s28, 0
      %p202 = por %p200, %p201
      %s204 = sadd.s32 %s203, 1
      %p207 = scmp.eq.s32.totalorder %s22, 1
      %p208 = scmp.ne.s32.totalorder %s203, %s205
      %p209 = scmp.eq.s32.totalorder %s22, 0
      %p210 = por %p208, %p209
      %p211 = scmp.ne.s32.totalorder %s203, %s205
      %p212 = scmp.eq.s32.totalorder %s27, 1
      %p213 = por %p211, %p212
      %p214 = scmp.ne.s32.totalorder %s205, %s206
      %p215 = scmp.eq.s32.totalorder %s27, 0
      %p216 = por %p214, %p215
      %p217 = scmp.ne.s32.totalorder %s205, %s206
      %p218 = scmp.eq.s32.totalorder %s28, 1
      %p219 = por %p217, %p218
      %p221 = scmp.ne.s32.totalorder %s206, %s220
      %p222 = scmp.eq.s32.totalorder %s28, 0
      %p223 = por %p221, %p222
      %s225 = sadd.s32 %s224, 1
      %p228 = scmp.eq.s32.totalorder %s22, 1
      %p229 = scmp.ne.s32.totalorder %s224, %s226
      %p230 = scmp.eq.s32.totalorder %s22, 0
      %p231 = por %p229, %p230
      %p232 = scmp.ne.s32.totalorder %s224, %s226
      %p233 = scmp.eq.s32.totalorder %s27, 1
      %p234 = por %p232, %p233
      %p235 = scmp.ne.s32.totalorder %s226, %s227
      %p236 = scmp.eq.s32.totalorder %s27, 0
      %p237 = por %p235, %p236
      %p238 = scmp.ne.s32.totalorder %s226, %s227
      %p239 = scmp.eq.s32.totalorder %s28, 1
      %p240 = por %p238, %p239
      %p242 = scmp.ne.s32.totalorder %s227, %s241
      %p243 = scmp.eq.s32.totalorder %s28, 0
      %p244 = por %p242, %p243
      %s246 = sadd.s32 %s245, 1
      %p249 = scmp.eq.s32.totalorder %s22, 1
      %p250 = scmp.ne.s32.totalorder %s245, %s247
      %p251 = scmp.eq.s32.totalorder %s22, 0
      %p252 = por %p250, %p251
      %p253 = scmp.ne.s32.totalorder %s245, %s247
      %p254 = scmp.eq.s32.totalorder %s27, 1
      %p255 = por %p253, %p254
      %p256 = scmp.ne.s32.totalorder %s247, %s248
      %p257 = scmp.eq.s32.totalorder %s27, 0
      %p258 = por %p256, %p257
      %p259 = scmp.ne.s32.totalorder %s247, %s248
      %p260 = scmp.eq.s32.totalorder %s28, 1
      %p261 = por %p259, %p260
      %p263 = scmp.ne.s32.totalorder %s248, %s262
      %p264 = scmp.eq.s32.totalorder %s28, 0
      %p265 = por %p263, %p264
      %s267 = sadd.s32 %s266, 1
      %p270 = scmp.eq.s32.totalorder %s22, 1
      %p271 = scmp.ne.s32.totalorder %s266, %s268
      %p272 = scmp.eq.s32.totalorder %s22, 0
      %p273 = por %p271, %p272
      %p274 = scmp.ne.s32.totalorder %s266, %s268
      %p275 = scmp.eq.s32.totalorder %s27, 1
      %p276 = por %p274, %p275
      %p277 = scmp.ne.s32.totalorder %s268, %s269
      %p278 = scmp.eq.s32.totalorder %s27, 0
      %p279 = por %p277, %p278
      %p280 = scmp.ne.s32.totalorder %s268, %s269
      %p281 = scmp.eq.s32.totalorder %s28, 1
      %p282 = por %p280, %p281
      %p284 = scmp.ne.s32.totalorder %s269, %s283
      %p285 = scmp.eq.s32.totalorder %s28, 0
      %p286 = por %p284, %p285
      %s288 = sadd.s32 %s287, 1
      %p291 = scmp.eq.s32.totalorder %s22, 1
      %p292 = scmp.ne.s32.totalorder %s287, %s289
      %p293 = scmp.eq.s32.totalorder %s22, 0
      %p294 = por %p292, %p293
      %p295 = scmp.ne.s32.totalorder %s287, %s289
      %p296 = scmp.eq.s32.totalorder %s27, 1
      %p297 = por %p295, %p296
      %p298 = scmp.ne.s32.totalorder %s289, %s290
      %p299 = scmp.eq.s32.totalorder %s27, 0
      %p300 = por %p298, %p299
      %p301 = scmp.ne.s32.totalorder %s289, %s290
      %p302 = scmp.eq.s32.totalorder %s28, 1
      %p303 = por %p301, %p302
      %p305 = scmp.ne.s32.totalorder %s290, %s304
      %p306 = scmp.eq.s32.totalorder %s28, 0
      %p307 = por %p305, %p306
      %s308 = ssub.s32 %s22, %s29
      %p309 = scmp.eq.s32.totalorder %s308, 0
      %s311 = sadd.s32 %s310, 1
      %s312 = scalar_select %p309, %s310, %s311
      %p315 = pneg %p309
      %p316 = scmp.eq.s32.totalorder %s22, 1
      %p317 = por %p315, %p316
      %p318 = scmp.ne.s32.totalorder %s310, %s313
      %p319 = scmp.eq.s32.totalorder %s22, 0
      %p320 = por %p318, %p319
      %p321 = scmp.ne.s32.totalorder %s310, %s313
      %p322 = scmp.eq.s32.totalorder %s27, 1
      %p323 = por %p321, %p322
      %p324 = scmp.ne.s32.totalorder %s313, %s314
      %p325 = scmp.eq.s32.totalorder %s27, 0
      %p326 = por %p324, %p325
      %p327 = scmp.ne.s32.totalorder %s313, %s314
      %p328 = scmp.eq.s32.totalorder %s28, 1
      %p329 = por %p327, %p328
      %p331 = scmp.ne.s32.totalorder %s314, %s330
      %p332 = scmp.eq.s32.totalorder %s28, 0
      %p333 = por %p331, %p332
      %p334 = scmp.le.s32.totalorder 1, %s22
      %p335 = scmp.lt.s32.totalorder %s22, 3
      %p336 = pnand %p334, %p335
      %p337 = pneg %p336
      // Predicated region
      $region9: #{tpu_custom_call.1} parent=5 // pred_check
        _
      $region10: #{tpu_custom_call.1} parent=5 // pred_check_branch
        %339 = sbr.rel (%p336) target = $region12
      $region11: #{tpu_custom_call.1} parent=5 // pred_region
        %s340 = ssub.s32 %s22, 1
        // Predicated region
        $region13: #{tpu_custom_call.1} parent=11 // pred_check
          %p341 = pneg %p69
        $region14: #{tpu_custom_call.1} parent=11 // pred_check_branch
          %343 = sbr.rel (%p341) target = $region16
        $region15: #{tpu_custom_call.1} parent=11 // pred_region
          _
        $region16: #{tpu_custom_call.1} parent=11 // pred_fallthru
          _
        // Predicated region
        $region17: #{tpu_custom_call.1} parent=11 // pred_check
          %p344 = pneg %p90
        $region18: #{tpu_custom_call.1} parent=11 // pred_check_branch
          %346 = sbr.rel (%p344) target = $region20
        $region19: #{tpu_custom_call.1} parent=11 // pred_region
          _
        $region20: #{tpu_custom_call.1} parent=11 // pred_fallthru
          _
        // Predicated region
        $region21: #{tpu_custom_call.1} parent=11 // pred_check
          %p347 = pneg %p111
        $region22: #{tpu_custom_call.1} parent=11 // pred_check_branch
          %349 = sbr.rel (%p347) target = $region24
        $region23: #{tpu_custom_call.1} parent=11 // pred_region
          _
        $region24: #{tpu_custom_call.1} parent=11 // pred_fallthru
          _
        // Predicated region
        $region25: #{tpu_custom_call.1} parent=11 // pred_check
          %p350 = pneg %p132
        $region26: #{tpu_custom_call.1} parent=11 // pred_check_branch
          %352 = sbr.rel (%p350) target = $region28
        $region27: #{tpu_custom_call.1} parent=11 // pred_region
          _
        $region28: #{tpu_custom_call.1} parent=11 // pred_fallthru
          _
        // Predicated region
        $region29: #{tpu_custom_call.1} parent=11 // pred_check
          %p353 = pneg %p153
        $region30: #{tpu_custom_call.1} parent=11 // pred_check_branch
          %355 = sbr.rel (%p353) target = $region32
        $region31: #{tpu_custom_call.1} parent=11 // pred_region
          _
        $region32: #{tpu_custom_call.1} parent=11 // pred_fallthru
          _
        // Predicated region
        $region33: #{tpu_custom_call.1} parent=11 // pred_check
          %p356 = pneg %p174
        $region34: #{tpu_custom_call.1} parent=11 // pred_check_branch
          %358 = sbr.rel (%p356) target = $region36
        $region35: #{tpu_custom_call.1} parent=11 // pred_region
          _
        $region36: #{tpu_custom_call.1} parent=11 // pred_fallthru
          _
        // Predicated region
        $region37: #{tpu_custom_call.1} parent=11 // pred_check
          %p359 = pneg %p195
        $region38: #{tpu_custom_call.1} parent=11 // pred_check_branch
          %361 = sbr.rel (%p359) target = $region40
        $region39: #{tpu_custom_call.1} parent=11 // pred_region
          _
        $region40: #{tpu_custom_call.1} parent=11 // pred_fallthru
          _
        // Predicated region
        $region41: #{tpu_custom_call.1} parent=11 // pred_check
          %p362 = pneg %p216
        $region42: #{tpu_custom_call.1} parent=11 // pred_check_branch
          %364 = sbr.rel (%p362) target = $region44
        $region43: #{tpu_custom_call.1} parent=11 // pred_region
          _
        $region44: #{tpu_custom_call.1} parent=11 // pred_fallthru
          _
        // Predicated region
        $region45: #{tpu_custom_call.1} parent=11 // pred_check
          %p365 = pneg %p237
        $region46: #{tpu_custom_call.1} parent=11 // pred_check_branch
          %367 = sbr.rel (%p365) target = $region48
        $region47: #{tpu_custom_call.1} parent=11 // pred_region
          _
        $region48: #{tpu_custom_call.1} parent=11 // pred_fallthru
          _
        // Predicated region
        $region49: #{tpu_custom_call.1} parent=11 // pred_check
          %p368 = pneg %p258
        $region50: #{tpu_custom_call.1} parent=11 // pred_check_branch
          %370 = sbr.rel (%p368) target = $region52
        $region51: #{tpu_custom_call.1} parent=11 // pred_region
          _
        $region52: #{tpu_custom_call.1} parent=11 // pred_fallthru
          _
        // Predicated region
        $region53: #{tpu_custom_call.1} parent=11 // pred_check
          %p371 = pneg %p279
        $region54: #{tpu_custom_call.1} parent=11 // pred_check_branch
          %373 = sbr.rel (%p371) target = $region56
        $region55: #{tpu_custom_call.1} parent=11 // pred_region
          _
        $region56: #{tpu_custom_call.1} parent=11 // pred_fallthru
          _
        // Predicated region
        $region57: #{tpu_custom_call.1} parent=11 // pred_check
          %p374 = pneg %p300
        $region58: #{tpu_custom_call.1} parent=11 // pred_check_branch
          %376 = sbr.rel (%p374) target = $region60
        $region59: #{tpu_custom_call.1} parent=11 // pred_region
          _
        $region60: #{tpu_custom_call.1} parent=11 // pred_fallthru
          _
      $region12: #{tpu_custom_call.1} parent=5 // pred_fallthru
        _
      %p377 = scmp.lt.s32.totalorder %s22, 2
      // Predicated region
      $region61: #{tpu_custom_call.1} parent=5 // pred_check
        %p378 = pneg %p377
      $region62: #{tpu_custom_call.1} parent=5 // pred_check_branch
        %380 = sbr.rel (%p378) target = $region64
      $region63: #{tpu_custom_call.1} parent=5 // pred_region
        // Predicated region
        $region65: #{tpu_custom_call.1} parent=63 // pred_check
          %p381 = pneg %p42
        $region66: #{tpu_custom_call.1} parent=63 // pred_check_branch
          %383 = sbr.rel (%p381) target = $region68
        $region67: #{tpu_custom_call.1} parent=63 // pred_region
          %s384 = smul.u32 16, %s22
          %p385 = scmp.lt.s32.totalorder %s384, 31
          %s386 = scalar_select %p385, %s384, 31
          %s387 = smul.addr %s386, 7
          %s388 = smul.addr %s387, 4
          %s389 = scalar_lea.vmem %s0, %s388
          %s390 = smul.u32 16, %s22
        $region68: #{tpu_custom_call.1} parent=63 // pred_fallthru
          _
      $region64: #{tpu_custom_call.1} parent=5 // pred_fallthru
        _
      %p391 = scmp.le.s32.totalorder 1, %s22
      %p392 = scmp.lt.s32.totalorder %s22, 3
      %p393 = pnand %p391, %p392
      %p394 = pneg %p393
      // Predicated region
      $region69: #{tpu_custom_call.1} parent=5 // pred_check
        _
      $region70: #{tpu_custom_call.1} parent=5 // pred_check_branch
        %396 = sbr.rel (%p393) target = $region72
      $region71: #{tpu_custom_call.1} parent=5 // pred_region
        %s397 = ssub.s32 %s22, 1
        %s398 = smul.u32 16, %s27
        %p399 = scmp.lt.s32.totalorder %s398, 31
        %s400 = scalar_select %p399, %s398, 31
        %s401 = smul.addr %s400, 7
        %s402 = smul.addr %s401, 4
        %s403 = scalar_lea.vmem %s0, %s402
        %p404 = pneg %p48
        %p405 = pneg %p45
        %p406 = pneg %p69
        %p407 = pneg %p66
        %p408 = pneg %p90
        %p409 = pneg %p87
        %p410 = pneg %p111
        %p411 = pneg %p108
        %p412 = pneg %p132
        %p413 = pneg %p129
        %p414 = pneg %p153
        %p415 = pneg %p150
        %p416 = pneg %p174
        %p417 = pneg %p171
        %p418 = pneg %p195
        %p419 = pneg %p192
        %p420 = pneg %p216
        %p421 = pneg %p213
        %p422 = pneg %p237
        %p423 = pneg %p234
        %p424 = pneg %p258
        %p425 = pneg %p255
        %p426 = pneg %p279
        %p427 = pneg %p276
        %p428 = pneg %p300
        %p429 = pneg %p297
        %p430 = pneg %p326
        %p431 = pneg %p323
        %s432 = sand.u32 %s313, 1
        %s433 = scalar_lea.sflag [#allocation3], %s432
        %s434 = sand.u32 %s313, 1
        %s435 = smul.addr %s434, 64
        %s436 = scalar_lea.vmem [#allocation2], %s435
        %s437 = smul.u32 16, %s27
        %p438 = scmp.lt.s32.totalorder %s437, 31
        %s439 = scalar_select %p438, %s437, 31
        %s440 = smul.addr %s439, 7
        %s441 = smul.addr %s440, 4
        %s442 = scalar_lea.vmem %s0, %s441
        %s443 = smul.u32 16, %s27
        %s444 = smul.u32 16, %s27
        %v446 = vld [vmem:[%s442] sm:$0xff]
        %v447 = vld [vmem:[%s442 + $0x8] sm:$0xff]
        %v448 = vld [vmem:[%s442 + $0x10] sm:$0xff]
        %v449 = vld [vmem:[%s442 + $0x18] sm:$0xf]
        %v450 = vld [vmem:[%s442 + $0x1c] sm:$0xff]
        %v451 = vld [vmem:[%s442 + $0x24] sm:$0xff]
        %v452 = vld [vmem:[%s442 + $0x2c] sm:$0xff]
        %v453 = vld [vmem:[%s442 + $0x34] sm:$0xf]
        %v454 = vld [vmem:[%s442 + $0x38] sm:$0xff]
        %v455 = vld [vmem:[%s442 + $0x40] sm:$0xff]
        %v456 = vld [vmem:[%s442 + $0x48] sm:$0xff]
        %v457 = vld [vmem:[%s442 + $0x50] sm:$0xf]
        %v458 = vld [vmem:[%s442 + $0x54] sm:$0xff]
        %v459 = vld [vmem:[%s442 + $0x5c] sm:$0xff]
        %v460 = vld [vmem:[%s442 + $0x64] sm:$0xff]
        %v461 = vld [vmem:[%s442 + $0x6c] sm:$0xf]
        %v462 = vld [vmem:[%s442 + $0x70] sm:$0xff]
        %v463 = vld [vmem:[%s442 + $0x78] sm:$0xff]
        %v464 = vld [vmem:[%s442 + $0x80] sm:$0xff]
        %v465 = vld [vmem:[%s442 + $0x88] sm:$0xf]
        %v466 = vld [vmem:[%s442 + $0x8c] sm:$0xff]
        %v467 = vld [vmem:[%s442 + $0x94] sm:$0xff]
        %v468 = vld [vmem:[%s442 + $0x9c] sm:$0xff]
        %v469 = vld [vmem:[%s442 + $0xa4] sm:$0xf]
        %v470 = vld [vmem:[%s442 + $0xa8] sm:$0xff]
        %v471 = vld [vmem:[%s442 + $0xb0] sm:$0xff]
        %v472 = vld [vmem:[%s442 + $0xb8] sm:$0xff]
        %v473 = vld [vmem:[%s442 + $0xc0] sm:$0xf]
        %v474 = vld [vmem:[%s442 + $0xc4] sm:$0xff]
        %v475 = vld [vmem:[%s442 + $0xcc] sm:$0xff]
        %v476 = vld [vmem:[%s442 + $0xd4] sm:$0xff]
        %v477 = vld [vmem:[%s442 + $0xdc] sm:$0xf]
        %v478 = vld [vmem:[%s442 + $0xe0] sm:$0xff]
        %v479 = vld [vmem:[%s442 + $0xe8] sm:$0xff]
        %v480 = vld [vmem:[%s442 + $0xf0] sm:$0xff]
        %v481 = vld [vmem:[%s442 + $0xf8] sm:$0xf]
        %v482 = vld [vmem:[%s442 + $0xfc] sm:$0xff]
        %v483 = vld [vmem:[%s442 + $0x104] sm:$0xff]
        %v484 = vld [vmem:[%s442 + $0x10c] sm:$0xff]
        %v485 = vld [vmem:[%s442 + $0x114] sm:$0xf]
        %v486 = vld [vmem:[%s442 + $0x118] sm:$0xff]
        %v487 = vld [vmem:[%s442 + $0x120] sm:$0xff]
        %v488 = vld [vmem:[%s442 + $0x128] sm:$0xff]
        %v489 = vld [vmem:[%s442 + $0x130] sm:$0xf]
        %v490 = vld [vmem:[%s442 + $0x134] sm:$0xff]
        %v491 = vld [vmem:[%s442 + $0x13c] sm:$0xff]
        %v492 = vld [vmem:[%s442 + $0x144] sm:$0xff]
        %v493 = vld [vmem:[%s442 + $0x14c] sm:$0xf]
        %v494 = vld [vmem:[%s442 + $0x150] sm:$0xff]
        %v495 = vld [vmem:[%s442 + $0x158] sm:$0xff]
        %v496 = vld [vmem:[%s442 + $0x160] sm:$0xff]
        %v497 = vld [vmem:[%s442 + $0x168] sm:$0xf]
        %v498 = vld [vmem:[%s442 + $0x16c] sm:$0xff]
        %v499 = vld [vmem:[%s442 + $0x174] sm:$0xff]
        %v500 = vld [vmem:[%s442 + $0x17c] sm:$0xff]
        %v501 = vld [vmem:[%s442 + $0x184] sm:$0xf]
        %v502 = vld [vmem:[%s442 + $0x188] sm:$0xff]
        %v503 = vld [vmem:[%s442 + $0x190] sm:$0xff]
        %v504 = vld [vmem:[%s442 + $0x198] sm:$0xff]
        %v505 = vld [vmem:[%s442 + $0x1a0] sm:$0xf]
        %v506 = vld [vmem:[%s442 + $0x1a4] sm:$0xff]
        %v507 = vld [vmem:[%s442 + $0x1ac] sm:$0xff]
        %v508 = vld [vmem:[%s442 + $0x1b4] sm:$0xff]
        %v509 = vld [vmem:[%s442 + $0x1bc] sm:$0xf]
        %v510 = vld [vmem:[%s1] sm:$0xff]
        %v511 = vld [vmem:[%s1 + $0x8] sm:$0xff]
        %v512 = vld [vmem:[%s1 + $0x10] sm:$0xff]
        %v513 = vld [vmem:[%s1 + $0x18] sm:$0xff]
        %v514 = vld [vmem:[%s1 + $0x20] sm:$0xff]
        %v515 = vld [vmem:[%s1 + $0x28] sm:$0xff]
        %v516 = vld [vmem:[%s1 + $0x30] sm:$0xff]
        %v517 = vld [vmem:[%s1 + $0x38] sm:$0xff]
        %v518 = vld [vmem:[%s1 + $0x40] sm:$0xff]
        %v519 = vld [vmem:[%s1 + $0x48] sm:$0xff]
        %v520 = vld [vmem:[%s1 + $0x50] sm:$0xff]
        %v521 = vld [vmem:[%s1 + $0x58] sm:$0xff]
        %v522 = vld [vmem:[%s1 + $0x60] sm:$0xff]
        %v523 = vld [vmem:[%s1 + $0x68] sm:$0xff]
        %v524 = vld [vmem:[%s1 + $0x70] sm:$0xff]
        %v525 = vld [vmem:[%s1 + $0x78] sm:$0xff]
        %v526 = vld [vmem:[%s1 + $0x80] sm:$0xff]
        %v527 = vld [vmem:[%s1 + $0x88] sm:$0xff]
        %v528 = vld [vmem:[%s1 + $0x90] sm:$0xff]
        %v529 = vld [vmem:[%s1 + $0x98] sm:$0xff]
        %v530 = vld [vmem:[%s1 + $0xa0] sm:$0xff]
        %v531 = vld [vmem:[%s1 + $0xa8] sm:$0xff]
        %v532 = vld [vmem:[%s1 + $0xb0] sm:$0xff]
        %v533 = vld [vmem:[%s1 + $0xb8] sm:$0xff]
        %v534 = vld [vmem:[%s1 + $0xc0] sm:$0xff]
        %v535 = vld [vmem:[%s1 + $0xc8] sm:$0xff]
        %v536 = vld [vmem:[%s1 + $0xd0] sm:$0xff]
        %v537 = vld [vmem:[%s1 + $0xd8] sm:$0xff]
        %v538 = vld [vmem:[%s1 + $0xe0] sm:$0xff]
        %v539 = vld [vmem:[%s1 + $0xe8] sm:$0xff]
        %v540 = vld [vmem:[%s1 + $0xf0] sm:$0xff]
        %v541 = vld [vmem:[%s1 + $0xf8] sm:$0xff]
        %v542 = vld [vmem:[%s1 + $0x100] sm:$0xff]
        %v543 = vld [vmem:[%s1 + $0x108] sm:$0xff]
        %v544 = vld [vmem:[%s1 + $0x110] sm:$0xff]
        %v545 = vld [vmem:[%s1 + $0x118] sm:$0xff]
        %v546 = vld [vmem:[%s1 + $0x120] sm:$0xff]
        %v547 = vld [vmem:[%s1 + $0x128] sm:$0xff]
        %v548 = vld [vmem:[%s1 + $0x130] sm:$0xff]
        %v549 = vld [vmem:[%s1 + $0x138] sm:$0xff]
        %v550 = vld [vmem:[%s1 + $0x140] sm:$0xff]
        %v551 = vld [vmem:[%s1 + $0x148] sm:$0xff]
        %v552 = vld [vmem:[%s1 + $0x150] sm:$0xff]
        %v553 = vld [vmem:[%s1 + $0x158] sm:$0xff]
        %v554 = vld [vmem:[%s1 + $0x160] sm:$0xff]
        %v555 = vld [vmem:[%s1 + $0x168] sm:$0xff]
        %v556 = vld [vmem:[%s1 + $0x170] sm:$0xff]
        %v557 = vld [vmem:[%s1 + $0x178] sm:$0xff]
        %v558 = vld [vmem:[%s1 + $0x180] sm:$0xff]
        %v559 = vld [vmem:[%s1 + $0x188] sm:$0xff]
        %v560 = vld [vmem:[%s1 + $0x190] sm:$0xff]
        %v561 = vld [vmem:[%s1 + $0x198] sm:$0xff]
        %v562 = vld [vmem:[%s1 + $0x1a0] sm:$0xff]
        %v563 = vld [vmem:[%s1 + $0x1a8] sm:$0xff]
        %v564 = vld [vmem:[%s1 + $0x1b0] sm:$0xff]
        %v565 = vld [vmem:[%s1 + $0x1b8] sm:$0xff]
        %v566 = vld [vmem:[%s1 + $0x1c0] sm:$0xff]
        %v567 = vld [vmem:[%s1 + $0x1c8] sm:$0xff]
        %v568 = vld [vmem:[%s1 + $0x1d0] sm:$0xff]
        %v569 = vld [vmem:[%s1 + $0x1d8] sm:$0xff]
        %v570 = vld [vmem:[%s1 + $0x1e0] sm:$0xff]
        %v571 = vld [vmem:[%s1 + $0x1e8] sm:$0xff]
        %v572 = vld [vmem:[%s1 + $0x1f0] sm:$0xff]
        %v573 = vld [vmem:[%s1 + $0x1f8] sm:$0xff]
        %v574 = vld [vmem:[%s1 + $0x200] sm:$0xff]
        %v575 = vld [vmem:[%s1 + $0x208] sm:$0xff]
        %v576 = vld [vmem:[%s1 + $0x210] sm:$0xff]
        %v577 = vld [vmem:[%s1 + $0x218] sm:$0xff]
        %v578 = vld [vmem:[%s1 + $0x220] sm:$0xff]
        %v579 = vld [vmem:[%s1 + $0x228] sm:$0xff]
        %v580 = vld [vmem:[%s1 + $0x230] sm:$0xff]
        %v581 = vld [vmem:[%s1 + $0x238] sm:$0xff]
        %v582 = vld [vmem:[%s1 + $0x240] sm:$0xff]
        %v583 = vld [vmem:[%s1 + $0x248] sm:$0xff]
        %v584 = vld [vmem:[%s1 + $0x250] sm:$0xff]
        %v585 = vld [vmem:[%s1 + $0x258] sm:$0xff]
        %v586 = vld [vmem:[%s1 + $0x260] sm:$0xff]
        %v587 = vld [vmem:[%s1 + $0x268] sm:$0xff]
        %v588 = vld [vmem:[%s1 + $0x270] sm:$0xff]
        %v589 = vld [vmem:[%s1 + $0x278] sm:$0xff]
        %v590 = vld [vmem:[%s1 + $0x280] sm:$0xff]
        %v591 = vld [vmem:[%s1 + $0x288] sm:$0xff]
        %v592 = vld [vmem:[%s1 + $0x290] sm:$0xff]
        %v593 = vld [vmem:[%s1 + $0x298] sm:$0xff]
        %v594 = vld [vmem:[%s1 + $0x2a0] sm:$0xff]
        %v595 = vld [vmem:[%s1 + $0x2a8] sm:$0xff]
        %v596 = vld [vmem:[%s1 + $0x2b0] sm:$0xff]
        %v597 = vld [vmem:[%s1 + $0x2b8] sm:$0xff]
        %v598 = vld [vmem:[%s1 + $0x2c0] sm:$0xff]
        %v599 = vld [vmem:[%s1 + $0x2c8] sm:$0xff]
        %v600 = vld [vmem:[%s1 + $0x2d0] sm:$0xff]
        %v601 = vld [vmem:[%s1 + $0x2d8] sm:$0xff]
        %v602 = vld [vmem:[%s1 + $0x2e0] sm:$0xff]
        %v603 = vld [vmem:[%s1 + $0x2e8] sm:$0xff]
        %v604 = vld [vmem:[%s1 + $0x2f0] sm:$0xff]
        %v605 = vld [vmem:[%s1 + $0x2f8] sm:$0xff]
        %v606 = vld [vmem:[%s1 + $0x300] sm:$0xff]
        %v607 = vld [vmem:[%s1 + $0x308] sm:$0xff]
        %v608 = vld [vmem:[%s2] sm:$0x3]
        %v610 = vlaneseq
        %v611 = vshrl.u32 %v610, 7
        %v612 = vsub.s32 0, %v611
        %v613 = vrot.slane %v608, %v612
        %v614 = vlaneseq
        %v615 = vshrl.u32 %v614, 7
        %v616 = vsub.s32 1, %v615
        %v617 = vrot.slane %v608, %v616
        %v684 = vunpack.c.l.b16 %v446
        %v685 = vunpack.c.h.b16 %v446
        %v686 = vunpack.c.l.b16 %v447
        %v687 = vunpack.c.h.b16 %v447
        %v688 = vunpack.c.l.b16 %v448
        %v689 = vunpack.c.h.b16 %v448
        %v690 = vunpack.c.l.b16 %v449
        %v691 = vunpack.c.l.b16 %v450
        %v692 = vunpack.c.h.b16 %v450
        %v693 = vunpack.c.l.b16 %v451
        %v694 = vunpack.c.h.b16 %v451
        %v695 = vunpack.c.l.b16 %v452
        %v696 = vunpack.c.h.b16 %v452
        %v697 = vunpack.c.l.b16 %v453
        %v698 = vunpack.c.l.b16 %v454
        %v699 = vunpack.c.h.b16 %v454
        %v700 = vunpack.c.l.b16 %v455
        %v701 = vunpack.c.h.b16 %v455
        %v702 = vunpack.c.l.b16 %v456
        %v703 = vunpack.c.h.b16 %v456
        %v704 = vunpack.c.l.b16 %v457
        %v705 = vunpack.c.l.b16 %v458
        %v706 = vunpack.c.h.b16 %v458
        %v707 = vunpack.c.l.b16 %v459
        %v708 = vunpack.c.h.b16 %v459
        %v709 = vunpack.c.l.b16 %v460
        %v710 = vunpack.c.h.b16 %v460
        %v711 = vunpack.c.l.b16 %v461
        %v712 = vunpack.c.l.b16 %v462
        %v713 = vunpack.c.h.b16 %v462
        %v714 = vunpack.c.l.b16 %v463
        %v715 = vunpack.c.h.b16 %v463
        %v716 = vunpack.c.l.b16 %v464
        %v717 = vunpack.c.h.b16 %v464
        %v718 = vunpack.c.l.b16 %v465
        %v719 = vunpack.c.l.b16 %v466
        %v720 = vunpack.c.h.b16 %v466
        %v721 = vunpack.c.l.b16 %v467
        %v722 = vunpack.c.h.b16 %v467
        %v723 = vunpack.c.l.b16 %v468
        %v724 = vunpack.c.h.b16 %v468
        %v725 = vunpack.c.l.b16 %v469
        %v726 = vunpack.c.l.b16 %v470
        %v727 = vunpack.c.h.b16 %v470
        %v728 = vunpack.c.l.b16 %v471
        %v729 = vunpack.c.h.b16 %v471
        %v730 = vunpack.c.l.b16 %v472
        %v731 = vunpack.c.h.b16 %v472
        %v732 = vunpack.c.l.b16 %v473
        %v733 = vunpack.c.l.b16 %v474
        %v734 = vunpack.c.h.b16 %v474
        %v735 = vunpack.c.l.b16 %v475
        %v736 = vunpack.c.h.b16 %v475
        %v737 = vunpack.c.l.b16 %v476
        %v738 = vunpack.c.h.b16 %v476
        %v739 = vunpack.c.l.b16 %v477
        %v740 = vunpack.c.l.b16 %v478
        %v741 = vunpack.c.h.b16 %v478
        %v742 = vunpack.c.l.b16 %v479
        %v743 = vunpack.c.h.b16 %v479
        %v744 = vunpack.c.l.b16 %v480
        %v745 = vunpack.c.h.b16 %v480
        %v746 = vunpack.c.l.b16 %v481
        %v747 = vunpack.c.l.b16 %v482
        %v748 = vunpack.c.h.b16 %v482
        %v749 = vunpack.c.l.b16 %v483
        %v750 = vunpack.c.h.b16 %v483
        %v751 = vunpack.c.l.b16 %v484
        %v752 = vunpack.c.h.b16 %v484
        %v753 = vunpack.c.l.b16 %v485
        %v754 = vunpack.c.l.b16 %v486
        %v755 = vunpack.c.h.b16 %v486
        %v756 = vunpack.c.l.b16 %v487
        %v757 = vunpack.c.h.b16 %v487
        %v758 = vunpack.c.l.b16 %v488
        %v759 = vunpack.c.h.b16 %v488
        %v760 = vunpack.c.l.b16 %v489
        %v761 = vunpack.c.l.b16 %v490
        %v762 = vunpack.c.h.b16 %v490
        %v763 = vunpack.c.l.b16 %v491
        %v764 = vunpack.c.h.b16 %v491
        %v765 = vunpack.c.l.b16 %v492
        %v766 = vunpack.c.h.b16 %v492
        %v767 = vunpack.c.l.b16 %v493
        %v768 = vunpack.c.l.b16 %v494
        %v769 = vunpack.c.h.b16 %v494
        %v770 = vunpack.c.l.b16 %v495
        %v771 = vunpack.c.h.b16 %v495
        %v772 = vunpack.c.l.b16 %v496
        %v773 = vunpack.c.h.b16 %v496
        %v774 = vunpack.c.l.b16 %v497
        %v775 = vunpack.c.l.b16 %v498
        %v776 = vunpack.c.h.b16 %v498
        %v777 = vunpack.c.l.b16 %v499
        %v778 = vunpack.c.h.b16 %v499
        %v779 = vunpack.c.l.b16 %v500
        %v780 = vunpack.c.h.b16 %v500
        %v781 = vunpack.c.l.b16 %v501
        %v782 = vunpack.c.l.b16 %v502
        %v783 = vunpack.c.h.b16 %v502
        %v784 = vunpack.c.l.b16 %v503
        %v785 = vunpack.c.h.b16 %v503
        %v786 = vunpack.c.l.b16 %v504
        %v787 = vunpack.c.h.b16 %v504
        %v788 = vunpack.c.l.b16 %v505
        %v789 = vunpack.c.l.b16 %v506
        %v790 = vunpack.c.h.b16 %v506
        %v791 = vunpack.c.l.b16 %v507
        %v792 = vunpack.c.h.b16 %v507
        %v793 = vunpack.c.l.b16 %v508
        %v794 = vunpack.c.h.b16 %v508
        %v795 = vunpack.c.l.b16 %v509
        %v796 = vpack.c.b16 %v691, %v684
        %v797 = vpack.c.b16 %v692, %v685
        %v798 = vpack.c.b16 %v693, %v686
        %v799 = vpack.c.b16 %v694, %v687
        %v800 = vpack.c.b16 %v695, %v688
        %v801 = vpack.c.b16 %v696, %v689
        %v802 = vpack.c.b16 %v697, %v690
        %v803 = vpack.c.b16 %v705, %v698
        %v804 = vpack.c.b16 %v706, %v699
        %v805 = vpack.c.b16 %v707, %v700
        %v806 = vpack.c.b16 %v708, %v701
        %v807 = vpack.c.b16 %v709, %v702
        %v808 = vpack.c.b16 %v710, %v703
        %v809 = vpack.c.b16 %v711, %v704
        %v810 = vpack.c.b16 %v719, %v712
        %v811 = vpack.c.b16 %v720, %v713
        %v812 = vpack.c.b16 %v721, %v714
        %v813 = vpack.c.b16 %v722, %v715
        %v814 = vpack.c.b16 %v723, %v716
        %v815 = vpack.c.b16 %v724, %v717
        %v816 = vpack.c.b16 %v725, %v718
        %v817 = vpack.c.b16 %v733, %v726
        %v818 = vpack.c.b16 %v734, %v727
        %v819 = vpack.c.b16 %v735, %v728
        %v820 = vpack.c.b16 %v736, %v729
        %v821 = vpack.c.b16 %v737, %v730
        %v822 = vpack.c.b16 %v738, %v731
        %v823 = vpack.c.b16 %v739, %v732
        %v824 = vpack.c.b16 %v747, %v740
        %v825 = vpack.c.b16 %v748, %v741
        %v826 = vpack.c.b16 %v749, %v742
        %v827 = vpack.c.b16 %v750, %v743
        %v828 = vpack.c.b16 %v751, %v744
        %v829 = vpack.c.b16 %v752, %v745
        %v830 = vpack.c.b16 %v753, %v746
        %v831 = vpack.c.b16 %v761, %v754
        %v832 = vpack.c.b16 %v762, %v755
        %v833 = vpack.c.b16 %v763, %v756
        %v834 = vpack.c.b16 %v764, %v757
        %v835 = vpack.c.b16 %v765, %v758
        %v836 = vpack.c.b16 %v766, %v759
        %v837 = vpack.c.b16 %v767, %v760
        %v838 = vpack.c.b16 %v775, %v768
        %v839 = vpack.c.b16 %v776, %v769
        %v840 = vpack.c.b16 %v777, %v770
        %v841 = vpack.c.b16 %v778, %v771
        %v842 = vpack.c.b16 %v779, %v772
        %v843 = vpack.c.b16 %v780, %v773
        %v844 = vpack.c.b16 %v781, %v774
        %v845 = vpack.c.b16 %v789, %v782
        %v846 = vpack.c.b16 %v790, %v783
        %v847 = vpack.c.b16 %v791, %v784
        %v848 = vpack.c.b16 %v792, %v785
        %v849 = vpack.c.b16 %v793, %v786
        %v850 = vpack.c.b16 %v794, %v787
        %v851 = vpack.c.b16 %v795, %v788
        %v998 = vunpack.c.l.b16 %v510
        %v999 = vunpack.c.h.b16 %v510
        %v1000 = vunpack.c.l.b16 %v511
        %v1001 = vunpack.c.h.b16 %v511
        %v1002 = vunpack.c.l.b16 %v512
        %v1003 = vunpack.c.h.b16 %v512
        %v1004 = vunpack.c.l.b16 %v513
        %v1005 = vunpack.c.h.b16 %v513
        %v1006 = vunpack.c.l.b16 %v514
        %v1007 = vunpack.c.h.b16 %v514
        %v1008 = vunpack.c.l.b16 %v515
        %v1009 = vunpack.c.h.b16 %v515
        %v1010 = vunpack.c.l.b16 %v516
        %v1011 = vunpack.c.h.b16 %v516
        %v1012 = vunpack.c.l.b16 %v517
        %v1013 = vunpack.c.h.b16 %v517
        %v1014 = vunpack.c.l.b16 %v518
        %v1015 = vunpack.c.h.b16 %v518
        %v1016 = vunpack.c.l.b16 %v519
        %v1017 = vunpack.c.h.b16 %v519
        %v1018 = vunpack.c.l.b16 %v520
        %v1019 = vunpack.c.h.b16 %v520
        %v1020 = vunpack.c.l.b16 %v521
        %v1021 = vunpack.c.h.b16 %v521
        %v1022 = vunpack.c.l.b16 %v522
        %v1023 = vunpack.c.h.b16 %v522
        %v1024 = vunpack.c.l.b16 %v523
        %v1025 = vunpack.c.h.b16 %v523
        %v1026 = vunpack.c.l.b16 %v524
        %v1027 = vunpack.c.h.b16 %v524
        %v1028 = vunpack.c.l.b16 %v525
        %v1029 = vunpack.c.h.b16 %v525
        %v1030 = vunpack.c.l.b16 %v526
        %v1031 = vunpack.c.h.b16 %v526
        %v1032 = vunpack.c.l.b16 %v527
        %v1033 = vunpack.c.h.b16 %v527
        %v1034 = vunpack.c.l.b16 %v528
        %v1035 = vunpack.c.h.b16 %v528
        %v1036 = vunpack.c.l.b16 %v529
        %v1037 = vunpack.c.h.b16 %v529
        %v1038 = vunpack.c.l.b16 %v530
        %v1039 = vunpack.c.h.b16 %v530
        %v1040 = vunpack.c.l.b16 %v531
        %v1041 = vunpack.c.h.b16 %v531
        %v1042 = vunpack.c.l.b16 %v532
        %v1043 = vunpack.c.h.b16 %v532
        %v1044 = vunpack.c.l.b16 %v533
        %v1045 = vunpack.c.h.b16 %v533
        %v1046 = vunpack.c.l.b16 %v534
        %v1047 = vunpack.c.h.b16 %v534
        %v1048 = vunpack.c.l.b16 %v535
        %v1049 = vunpack.c.h.b16 %v535
        %v1050 = vunpack.c.l.b16 %v536
        %v1051 = vunpack.c.h.b16 %v536
        %v1052 = vunpack.c.l.b16 %v537
        %v1053 = vunpack.c.h.b16 %v537
        %v1054 = vunpack.c.l.b16 %v538
        %v1055 = vunpack.c.h.b16 %v538
        %v1056 = vunpack.c.l.b16 %v539
        %v1057 = vunpack.c.h.b16 %v539
        %v1058 = vunpack.c.l.b16 %v540
        %v1059 = vunpack.c.h.b16 %v540
        %v1060 = vunpack.c.l.b16 %v541
        %v1061 = vunpack.c.h.b16 %v541
        %v1062 = vunpack.c.l.b16 %v542
        %v1063 = vunpack.c.h.b16 %v542
        %v1064 = vunpack.c.l.b16 %v543
        %v1065 = vunpack.c.h.b16 %v543
        %v1066 = vunpack.c.l.b16 %v544
        %v1067 = vunpack.c.h.b16 %v544
        %v1068 = vunpack.c.l.b16 %v545
        %v1069 = vunpack.c.h.b16 %v545
        %v1070 = vunpack.c.l.b16 %v546
        %v1071 = vunpack.c.h.b16 %v546
        %v1072 = vunpack.c.l.b16 %v547
        %v1073 = vunpack.c.h.b16 %v547
        %v1074 = vunpack.c.l.b16 %v548
        %v1075 = vunpack.c.h.b16 %v548
        %v1076 = vunpack.c.l.b16 %v549
        %v1077 = vunpack.c.h.b16 %v549
        %v1078 = vunpack.c.l.b16 %v550
        %v1079 = vunpack.c.h.b16 %v550
        %v1080 = vunpack.c.l.b16 %v551
        %v1081 = vunpack.c.h.b16 %v551
        %v1082 = vunpack.c.l.b16 %v552
        %v1083 = vunpack.c.h.b16 %v552
        %v1084 = vunpack.c.l.b16 %v553
        %v1085 = vunpack.c.h.b16 %v553
        %v1086 = vunpack.c.l.b16 %v554
        %v1087 = vunpack.c.h.b16 %v554
        %v1088 = vunpack.c.l.b16 %v555
        %v1089 = vunpack.c.h.b16 %v555
        %v1090 = vunpack.c.l.b16 %v556
        %v1091 = vunpack.c.h.b16 %v556
        %v1092 = vunpack.c.l.b16 %v557
        %v1093 = vunpack.c.h.b16 %v557
        %v1094 = vunpack.c.l.b16 %v558
        %v1095 = vunpack.c.h.b16 %v558
        %v1096 = vunpack.c.l.b16 %v559
        %v1097 = vunpack.c.h.b16 %v559
        %v1098 = vunpack.c.l.b16 %v560
        %v1099 = vunpack.c.h.b16 %v560
        %v1100 = vunpack.c.l.b16 %v561
        %v1101 = vunpack.c.h.b16 %v561
        %v1102 = vunpack.c.l.b16 %v562
        %v1103 = vunpack.c.h.b16 %v562
        %v1104 = vunpack.c.l.b16 %v563
        %v1105 = vunpack.c.h.b16 %v563
        %v1106 = vunpack.c.l.b16 %v564
        %v1107 = vunpack.c.h.b16 %v564
        %v1108 = vunpack.c.l.b16 %v565
        %v1109 = vunpack.c.h.b16 %v565
        %v1110 = vunpack.c.l.b16 %v566
        %v1111 = vunpack.c.h.b16 %v566
        %v1112 = vunpack.c.l.b16 %v567
        %v1113 = vunpack.c.h.b16 %v567
        %v1114 = vunpack.c.l.b16 %v568
        %v1115 = vunpack.c.h.b16 %v568
        %v1116 = vunpack.c.l.b16 %v569
        %v1117 = vunpack.c.h.b16 %v569
        %v1118 = vunpack.c.l.b16 %v570
        %v1119 = vunpack.c.h.b16 %v570
        %v1120 = vunpack.c.l.b16 %v571
        %v1121 = vunpack.c.h.b16 %v571
        %v1122 = vunpack.c.l.b16 %v572
        %v1123 = vunpack.c.h.b16 %v572
        %v1124 = vunpack.c.l.b16 %v573
        %v1125 = vunpack.c.h.b16 %v573
        %v1126 = vunpack.c.l.b16 %v574
        %v1127 = vunpack.c.h.b16 %v574
        %v1128 = vunpack.c.l.b16 %v575
        %v1129 = vunpack.c.h.b16 %v575
        %v1130 = vunpack.c.l.b16 %v576
        %v1131 = vunpack.c.h.b16 %v576
        %v1132 = vunpack.c.l.b16 %v577
        %v1133 = vunpack.c.h.b16 %v577
        %v1134 = vunpack.c.l.b16 %v578
        %v1135 = vunpack.c.h.b16 %v578
        %v1136 = vunpack.c.l.b16 %v579
        %v1137 = vunpack.c.h.b16 %v579
        %v1138 = vunpack.c.l.b16 %v580
        %v1139 = vunpack.c.h.b16 %v580
        %v1140 = vunpack.c.l.b16 %v581
        %v1141 = vunpack.c.h.b16 %v581
        %v1142 = vunpack.c.l.b16 %v582
        %v1143 = vunpack.c.h.b16 %v582
        %v1144 = vunpack.c.l.b16 %v583
        %v1145 = vunpack.c.h.b16 %v583
        %v1146 = vunpack.c.l.b16 %v584
        %v1147 = vunpack.c.h.b16 %v584
        %v1148 = vunpack.c.l.b16 %v585
        %v1149 = vunpack.c.h.b16 %v585
        %v1150 = vunpack.c.l.b16 %v586
        %v1151 = vunpack.c.h.b16 %v586
        %v1152 = vunpack.c.l.b16 %v587
        %v1153 = vunpack.c.h.b16 %v587
        %v1154 = vunpack.c.l.b16 %v588
        %v1155 = vunpack.c.h.b16 %v588
        %v1156 = vunpack.c.l.b16 %v589
        %v1157 = vunpack.c.h.b16 %v589
        %v1158 = vunpack.c.l.b16 %v590
        %v1159 = vunpack.c.h.b16 %v590
        %v1160 = vunpack.c.l.b16 %v591
        %v1161 = vunpack.c.h.b16 %v591
        %v1162 = vunpack.c.l.b16 %v592
        %v1163 = vunpack.c.h.b16 %v592
        %v1164 = vunpack.c.l.b16 %v593
        %v1165 = vunpack.c.h.b16 %v593
        %v1166 = vunpack.c.l.b16 %v594
        %v1167 = vunpack.c.h.b16 %v594
        %v1168 = vunpack.c.l.b16 %v595
        %v1169 = vunpack.c.h.b16 %v595
        %v1170 = vunpack.c.l.b16 %v596
        %v1171 = vunpack.c.h.b16 %v596
        %v1172 = vunpack.c.l.b16 %v597
        %v1173 = vunpack.c.h.b16 %v597
        %v1174 = vunpack.c.l.b16 %v598
        %v1175 = vunpack.c.h.b16 %v598
        %v1176 = vunpack.c.l.b16 %v599
        %v1177 = vunpack.c.h.b16 %v599
        %v1178 = vunpack.c.l.b16 %v600
        %v1179 = vunpack.c.h.b16 %v600
        %v1180 = vunpack.c.l.b16 %v601
        %v1181 = vunpack.c.h.b16 %v601
        %v1182 = vunpack.c.l.b16 %v602
        %v1183 = vunpack.c.h.b16 %v602
        %v1184 = vunpack.c.l.b16 %v603
        %v1185 = vunpack.c.h.b16 %v603
        %v1186 = vunpack.c.l.b16 %v604
        %v1187 = vunpack.c.h.b16 %v604
        %v1188 = vunpack.c.l.b16 %v605
        %v1189 = vunpack.c.h.b16 %v605
        %v1190 = vunpack.c.l.b16 %v606
        %v1191 = vunpack.c.h.b16 %v606
        %v1192 = vunpack.c.l.b16 %v607
        %v1193 = vunpack.c.h.b16 %v607
        %v1194 = vpack.c.b16 %v1000, %v998
        %v1195 = vpack.c.b16 %v1001, %v999
        %v1196 = vpack.c.b16 %v1004, %v1002
        %v1197 = vpack.c.b16 %v1005, %v1003
        %v1198 = vpack.c.b16 %v1008, %v1006
        %v1199 = vpack.c.b16 %v1009, %v1007
        %v1200 = vpack.c.b16 %v1012, %v1010
        %v1201 = vpack.c.b16 %v1013, %v1011
        %v1202 = vpack.c.b16 %v1016, %v1014
        %v1203 = vpack.c.b16 %v1017, %v1015
        %v1204 = vpack.c.b16 %v1020, %v1018
        %v1205 = vpack.c.b16 %v1021, %v1019
        %v1206 = vpack.c.b16 %v1024, %v1022
        %v1207 = vpack.c.b16 %v1025, %v1023
        %v1208 = vpack.c.b16 %v1028, %v1026
        %v1209 = vpack.c.b16 %v1029, %v1027
        %v1210 = vpack.c.b16 %v1032, %v1030
        %v1211 = vpack.c.b16 %v1033, %v1031
        %v1212 = vpack.c.b16 %v1036, %v1034
        %v1213 = vpack.c.b16 %v1037, %v1035
        %v1214 = vpack.c.b16 %v1040, %v1038
        %v1215 = vpack.c.b16 %v1041, %v1039
        %v1216 = vpack.c.b16 %v1044, %v1042
        %v1217 = vpack.c.b16 %v1045, %v1043
        %v1218 = vpack.c.b16 %v1048, %v1046
        %v1219 = vpack.c.b16 %v1049, %v1047
        %v1220 = vpack.c.b16 %v1052, %v1050
        %v1221 = vpack.c.b16 %v1053, %v1051
        %v1222 = vpack.c.b16 %v1056, %v1054
        %v1223 = vpack.c.b16 %v1057, %v1055
        %v1224 = vpack.c.b16 %v1060, %v1058
        %v1225 = vpack.c.b16 %v1061, %v1059
        %v1226 = vpack.c.b16 %v1064, %v1062
        %v1227 = vpack.c.b16 %v1065, %v1063
        %v1228 = vpack.c.b16 %v1068, %v1066
        %v1229 = vpack.c.b16 %v1069, %v1067
        %v1230 = vpack.c.b16 %v1072, %v1070
        %v1231 = vpack.c.b16 %v1073, %v1071
        %v1232 = vpack.c.b16 %v1076, %v1074
        %v1233 = vpack.c.b16 %v1077, %v1075
        %v1234 = vpack.c.b16 %v1080, %v1078
        %v1235 = vpack.c.b16 %v1081, %v1079
        %v1236 = vpack.c.b16 %v1084, %v1082
        %v1237 = vpack.c.b16 %v1085, %v1083
        %v1238 = vpack.c.b16 %v1088, %v1086
        %v1239 = vpack.c.b16 %v1089, %v1087
        %v1240 = vpack.c.b16 %v1092, %v1090
        %v1241 = vpack.c.b16 %v1093, %v1091
        %v1242 = vpack.c.b16 %v1096, %v1094
        %v1243 = vpack.c.b16 %v1097, %v1095
        %v1244 = vpack.c.b16 %v1100, %v1098
        %v1245 = vpack.c.b16 %v1101, %v1099
        %v1246 = vpack.c.b16 %v1104, %v1102
        %v1247 = vpack.c.b16 %v1105, %v1103
        %v1248 = vpack.c.b16 %v1108, %v1106
        %v1249 = vpack.c.b16 %v1109, %v1107
        %v1250 = vpack.c.b16 %v1112, %v1110
        %v1251 = vpack.c.b16 %v1113, %v1111
        %v1252 = vpack.c.b16 %v1116, %v1114
        %v1253 = vpack.c.b16 %v1117, %v1115
        %v1254 = vpack.c.b16 %v1120, %v1118
        %v1255 = vpack.c.b16 %v1121, %v1119
        %v1256 = vpack.c.b16 %v1124, %v1122
        %v1257 = vpack.c.b16 %v1125, %v1123
        %v1258 = vpack.c.b16 %v1128, %v1126
        %v1259 = vpack.c.b16 %v1129, %v1127
        %v1260 = vpack.c.b16 %v1132, %v1130
        %v1261 = vpack.c.b16 %v1133, %v1131
        %v1262 = vpack.c.b16 %v1136, %v1134
        %v1263 = vpack.c.b16 %v1137, %v1135
        %v1264 = vpack.c.b16 %v1140, %v1138
        %v1265 = vpack.c.b16 %v1141, %v1139
        %v1266 = vpack.c.b16 %v1144, %v1142
        %v1267 = vpack.c.b16 %v1145, %v1143
        %v1268 = vpack.c.b16 %v1148, %v1146
        %v1269 = vpack.c.b16 %v1149, %v1147
        %v1270 = vpack.c.b16 %v1152, %v1150
        %v1271 = vpack.c.b16 %v1153, %v1151
        %v1272 = vpack.c.b16 %v1156, %v1154
        %v1273 = vpack.c.b16 %v1157, %v1155
        %v1274 = vpack.c.b16 %v1160, %v1158
        %v1275 = vpack.c.b16 %v1161, %v1159
        %v1276 = vpack.c.b16 %v1164, %v1162
        %v1277 = vpack.c.b16 %v1165, %v1163
        %v1278 = vpack.c.b16 %v1168, %v1166
        %v1279 = vpack.c.b16 %v1169, %v1167
        %v1280 = vpack.c.b16 %v1172, %v1170
        %v1281 = vpack.c.b16 %v1173, %v1171
        %v1282 = vpack.c.b16 %v1176, %v1174
        %v1283 = vpack.c.b16 %v1177, %v1175
        %v1284 = vpack.c.b16 %v1180, %v1178
        %v1285 = vpack.c.b16 %v1181, %v1179
        %v1286 = vpack.c.b16 %v1184, %v1182
        %v1287 = vpack.c.b16 %v1185, %v1183
        %v1288 = vpack.c.b16 %v1188, %v1186
        %v1289 = vpack.c.b16 %v1189, %v1187
        %v1290 = vpack.c.b16 %v1192, %v1190
        %v1291 = vpack.c.b16 %v1193, %v1191
        %vm1390 = vcmask 130048
        %v1392 = vsel %vm1390, %v802, 0
        %v1395 = vsel %vm1390, %v809, 0
        %v1398 = vsel %vm1390, %v816, 0
        %v1401 = vsel %vm1390, %v823, 0
        %v1404 = vsel %vm1390, %v830, 0
        %v1407 = vsel %vm1390, %v837, 0
        %v1410 = vsel %vm1390, %v844, 0
        %v1413 = vsel %vm1390, %v851, 0
        %1415 = vmatprep.subr.bf16.mxu0 %v1195
        %1416 = vmatpush1.bf16.msra.mxu0 %v1194
        %1417 = vmatprep.subr.bf16.mxu0 %v1197
        %1418 = vmatpush1.bf16.msra.mxu0 %v1196
        %1419 = vmatprep.subr.bf16.mxu0 %v1199
        %1420 = vmatpush1.bf16.msra.mxu0 %v1198
        %1421 = vmatprep.subr.bf16.mxu0 %v1201
        %1422 = vmatpush1.bf16.msra.mxu0 %v1200
        %1423 = vmatprep.subr.bf16.mxu0 %v1203
        %1424 = vmatpush1.bf16.msra.mxu0 %v1202
        %1425 = vmatprep.subr.bf16.mxu0 %v1205
        %1426 = vmatpush1.bf16.msra.mxu0 %v1204
        %1427 = vmatprep.subr.bf16.mxu0 %v1207
        %1428 = vmatpush1.bf16.msra.mxu0 %v1206
        %1429 = vmatprep.subr.bf16.mxu0 %v1209
        %1430 = vmatpush1.bf16.msra.mxu0 %v1208
        %1431 = vmatprep.subr.bf16.mxu0 %v1211
        %1432 = vmatpush1.bf16.msra.mxu0 %v1210
        %1433 = vmatprep.subr.bf16.mxu0 %v1213
        %1434 = vmatpush1.bf16.msra.mxu0 %v1212
        %1435 = vmatprep.subr.bf16.mxu0 %v1215
        %1436 = vmatpush1.bf16.msra.mxu0 %v1214
        %1437 = vmatprep.subr.bf16.mxu0 %v1217
        %1438 = vmatpush1.bf16.msra.mxu0 %v1216
        %1439 = vmatprep.subr.bf16.mxu0 %v1219
        %1440 = vmatpush1.bf16.msra.mxu0 %v1218
        %1441 = vmatprep.subr.bf16.mxu0 %v1221
        %1442 = vmatpush1.bf16.msra.mxu0 %v1220
        %1443 = vmatprep.subr.bf16.mxu0 %v1223
        %1444 = vmatpush1.bf16.msra.mxu0 %v1222
        %1445 = vmatprep.subr.bf16.mxu0 %v1225
        %1446 = vmatpush1.bf16.msra.mxu0 %v1224
        %1447 = vmatprep.mubr.bf16.mxu0 %v797
        %1448 = vmatmul.mubr.bf16.gmra.mrb[0].mxu0 %v796
        %v1449 = vpop.f32.mrb[0].mxu0
        %v1450 = vadd.f32 %v613, %v1449
        %v1451 = vpop.f32.mrb[0].mxu0
        %v1452 = vadd.f32 %v617, %v1451
        %v1453 = vpop.f32.mrb[0].mxu0
        %v1454 = vadd.f32 %v613, %v1453
        %v1455 = vpop.f32.mrb[0].mxu0
        %v1456 = vadd.f32 %v617, %v1455
        %1457 = vmatprep.mubr.bf16.mxu0 %v804
        %1458 = vmatmul.mubr.bf16.gmra.mrb[0].mxu0 %v803
        %v1459 = vpop.f32.mrb[0].mxu0
        %v1460 = vadd.f32 %v613, %v1459
        %v1461 = vpop.f32.mrb[0].mxu0
        %v1462 = vadd.f32 %v617, %v1461
        %v1463 = vpop.f32.mrb[0].mxu0
        %v1464 = vadd.f32 %v613, %v1463
        %v1465 = vpop.f32.mrb[0].mxu0
        %v1466 = vadd.f32 %v617, %v1465
        %1467 = vmatprep.mubr.bf16.mxu0 %v811
        %1468 = vmatmul.mubr.bf16.gmra.mrb[0].mxu0 %v810
        %v1469 = vpop.f32.mrb[0].mxu0
        %v1470 = vadd.f32 %v613, %v1469
        %v1471 = vpop.f32.mrb[0].mxu0
        %v1472 = vadd.f32 %v617, %v1471
        %v1473 = vpop.f32.mrb[0].mxu0
        %v1474 = vadd.f32 %v613, %v1473
        %v1475 = vpop.f32.mrb[0].mxu0
        %v1476 = vadd.f32 %v617, %v1475
        %1477 = vmatprep.mubr.bf16.mxu0 %v818
        %1478 = vmatmul.mubr.bf16.gmra.mrb[0].mxu0 %v817
        %v1479 = vpop.f32.mrb[0].mxu0
        %v1480 = vadd.f32 %v613, %v1479
        %v1481 = vpop.f32.mrb[0].mxu0
        %v1482 = vadd.f32 %v617, %v1481
        %v1483 = vpop.f32.mrb[0].mxu0
        %v1484 = vadd.f32 %v613, %v1483
        %v1485 = vpop.f32.mrb[0].mxu0
        %v1486 = vadd.f32 %v617, %v1485
        %1487 = vmatprep.mubr.bf16.mxu0 %v825
        %1488 = vmatmul.mubr.bf16.gmra.mrb[0].mxu0 %v824
        %v1489 = vpop.f32.mrb[0].mxu0
        %v1490 = vadd.f32 %v613, %v1489
        %v1491 = vpop.f32.mrb[0].mxu0
        %v1492 = vadd.f32 %v617, %v1491
        %v1493 = vpop.f32.mrb[0].mxu0
        %v1494 = vadd.f32 %v613, %v1493
        %v1495 = vpop.f32.mrb[0].mxu0
        %v1496 = vadd.f32 %v617, %v1495
        %1497 = vmatprep.mubr.bf16.mxu0 %v832
        %1498 = vmatmul.mubr.bf16.gmra.mrb[0].mxu0 %v831
        %v1499 = vpop.f32.mrb[0].mxu0
        %v1500 = vadd.f32 %v613, %v1499
        %v1501 = vpop.f32.mrb[0].mxu0
        %v1502 = vadd.f32 %v617, %v1501
        %v1503 = vpop.f32.mrb[0].mxu0
        %v1504 = vadd.f32 %v613, %v1503
        %v1505 = vpop.f32.mrb[0].mxu0
        %v1506 = vadd.f32 %v617, %v1505
        %1507 = vmatprep.mubr.bf16.mxu0 %v839
        %1508 = vmatmul.mubr.bf16.gmra.mrb[0].mxu0 %v838
        %v1509 = vpop.f32.mrb[0].mxu0
        %v1510 = vadd.f32 %v613, %v1509
        %v1511 = vpop.f32.mrb[0].mxu0
        %v1512 = vadd.f32 %v617, %v1511
        %v1513 = vpop.f32.mrb[0].mxu0
        %v1514 = vadd.f32 %v613, %v1513
        %v1515 = vpop.f32.mrb[0].mxu0
        %v1516 = vadd.f32 %v617, %v1515
        %1517 = vmatprep.mubr.bf16.mxu0 %v846
        %1518 = vmatmul.mubr.bf16.gmra.mrb[0].mxu0 %v845
        %v1519 = vpop.f32.mrb[0].mxu0
        %v1520 = vadd.f32 %v613, %v1519
        %v1521 = vpop.f32.mrb[0].mxu0
        %v1522 = vadd.f32 %v617, %v1521
        %v1523 = vpop.f32.mrb[0].mxu0
        %v1524 = vadd.f32 %v613, %v1523
        %v1525 = vpop.f32.mrb[0].mxu0
        %v1526 = vadd.f32 %v617, %v1525
        %1527 = vdwg.mxu0
        %1528 = vmatprep.subr.bf16.mxu0 %v1227
        %1529 = vmatpush1.bf16.msra.mxu0 %v1226
        %1530 = vmatprep.subr.bf16.mxu0 %v1229
        %1531 = vmatpush1.bf16.msra.mxu0 %v1228
        %1532 = vmatprep.subr.bf16.mxu0 %v1231
        %1533 = vmatpush1.bf16.msra.mxu0 %v1230
        %1534 = vmatprep.subr.bf16.mxu0 %v1233
        %1535 = vmatpush1.bf16.msra.mxu0 %v1232
        %1536 = vmatprep.subr.bf16.mxu0 %v1235
        %1537 = vmatpush1.bf16.msra.mxu0 %v1234
        %1538 = vmatprep.subr.bf16.mxu0 %v1237
        %1539 = vmatpush1.bf16.msra.mxu0 %v1236
        %1540 = vmatprep.subr.bf16.mxu0 %v1239
        %1541 = vmatpush1.bf16.msra.mxu0 %v1238
        %1542 = vmatprep.subr.bf16.mxu0 %v1241
        %1543 = vmatpush1.bf16.msra.mxu0 %v1240
        %1544 = vmatprep.subr.bf16.mxu0 %v1243
        %1545 = vmatpush1.bf16.msra.mxu0 %v1242
        %1546 = vmatprep.subr.bf16.mxu0 %v1245
        %1547 = vmatpush1.bf16.msra.mxu0 %v1244
        %1548 = vmatprep.subr.bf16.mxu0 %v1247
        %1549 = vmatpush1.bf16.msra.mxu0 %v1246
        %1550 = vmatprep.subr.bf16.mxu0 %v1249
        %1551 = vmatpush1.bf16.msra.mxu0 %v1248
        %1552 = vmatprep.subr.bf16.mxu0 %v1251
        %1553 = vmatpush1.bf16.msra.mxu0 %v1250
        %1554 = vmatprep.subr.bf16.mxu0 %v1253
        %1555 = vmatpush1.bf16.msra.mxu0 %v1252
        %1556 = vmatprep.subr.bf16.mxu0 %v1255
        %1557 = vmatpush1.bf16.msra.mxu0 %v1254
        %1558 = vmatprep.subr.bf16.mxu0 %v1257
        %1559 = vmatpush1.bf16.msra.mxu0 %v1256
        %1560 = vmatprep.mubr.bf16.mxu0 %v799
        %1561 = vmatmul.mubr.bf16.gmra.mrb[0].mxu0 %v798
        %v1562 = vpop.f32.mrb[0].mxu0
        %v1563 = vadd.f32 %v1450, %v1562
        %v1564 = vpop.f32.mrb[0].mxu0
        %v1565 = vadd.f32 %v1452, %v1564
        %v1566 = vpop.f32.mrb[0].mxu0
        %v1567 = vadd.f32 %v1454, %v1566
        %v1568 = vpop.f32.mrb[0].mxu0
        %v1569 = vadd.f32 %v1456, %v1568
        %1570 = vmatprep.mubr.bf16.mxu0 %v806
        %1571 = vmatmul.mubr.bf16.gmra.mrb[0].mxu0 %v805
        %v1572 = vpop.f32.mrb[0].mxu0
        %v1573 = vadd.f32 %v1460, %v1572
        %v1574 = vpop.f32.mrb[0].mxu0
        %v1575 = vadd.f32 %v1462, %v1574
        %v1576 = vpop.f32.mrb[0].mxu0
        %v1577 = vadd.f32 %v1464, %v1576
        %v1578 = vpop.f32.mrb[0].mxu0
        %v1579 = vadd.f32 %v1466, %v1578
        %1580 = vmatprep.mubr.bf16.mxu0 %v813
        %1581 = vmatmul.mubr.bf16.gmra.mrb[0].mxu0 %v812
        %v1582 = vpop.f32.mrb[0].mxu0
        %v1583 = vadd.f32 %v1470, %v1582
        %v1584 = vpop.f32.mrb[0].mxu0
        %v1585 = vadd.f32 %v1472, %v1584
        %v1586 = vpop.f32.mrb[0].mxu0
        %v1587 = vadd.f32 %v1474, %v1586
        %v1588 = vpop.f32.mrb[0].mxu0
        %v1589 = vadd.f32 %v1476, %v1588
        %1590 = vmatprep.mubr.bf16.mxu0 %v820
        %1591 = vmatmul.mubr.bf16.gmra.mrb[0].mxu0 %v819
        %v1592 = vpop.f32.mrb[0].mxu0
        %v1593 = vadd.f32 %v1480, %v1592
        %v1594 = vpop.f32.mrb[0].mxu0
        %v1595 = vadd.f32 %v1482, %v1594
        %v1596 = vpop.f32.mrb[0].mxu0
        %v1597 = vadd.f32 %v1484, %v1596
        %v1598 = vpop.f32.mrb[0].mxu0
        %v1599 = vadd.f32 %v1486, %v1598
        %1600 = vmatprep.mubr.bf16.mxu0 %v827
        %1601 = vmatmul.mubr.bf16.gmra.mrb[0].mxu0 %v826
        %v1602 = vpop.f32.mrb[0].mxu0
        %v1603 = vadd.f32 %v1490, %v1602
        %v1604 = vpop.f32.mrb[0].mxu0
        %v1605 = vadd.f32 %v1492, %v1604
        %v1606 = vpop.f32.mrb[0].mxu0
        %v1607 = vadd.f32 %v1494, %v1606
        %v1608 = vpop.f32.mrb[0].mxu0
        %v1609 = vadd.f32 %v1496, %v1608
        %1610 = vmatprep.mubr.bf16.mxu0 %v834
        %1611 = vmatmul.mubr.bf16.gmra.mrb[0].mxu0 %v833
        %v1612 = vpop.f32.mrb[0].mxu0
        %v1613 = vadd.f32 %v1500, %v1612
        %v1614 = vpop.f32.mrb[0].mxu0
        %v1615 = vadd.f32 %v1502, %v1614
        %v1616 = vpop.f32.mrb[0].mxu0
        %v1617 = vadd.f32 %v1504, %v1616
        %v1618 = vpop.f32.mrb[0].mxu0
        %v1619 = vadd.f32 %v1506, %v1618
        %1620 = vmatprep.mubr.bf16.mxu0 %v841
        %1621 = vmatmul.mubr.bf16.gmra.mrb[0].mxu0 %v840
        %v1622 = vpop.f32.mrb[0].mxu0
        %v1623 = vadd.f32 %v1510, %v1622
        %v1624 = vpop.f32.mrb[0].mxu0
        %v1625 = vadd.f32 %v1512, %v1624
        %v1626 = vpop.f32.mrb[0].mxu0
        %v1627 = vadd.f32 %v1514, %v1626
        %v1628 = vpop.f32.mrb[0].mxu0
        %v1629 = vadd.f32 %v1516, %v1628
        %1630 = vmatprep.mubr.bf16.mxu0 %v848
        %1631 = vmatmul.mubr.bf16.gmra.mrb[0].mxu0 %v847
        %v1632 = vpop.f32.mrb[0].mxu0
        %v1633 = vadd.f32 %v1520, %v1632
        %v1634 = vpop.f32.mrb[0].mxu0
        %v1635 = vadd.f32 %v1522, %v1634
        %v1636 = vpop.f32.mrb[0].mxu0
        %v1637 = vadd.f32 %v1524, %v1636
        %v1638 = vpop.f32.mrb[0].mxu0
        %v1639 = vadd.f32 %v1526, %v1638
        %1640 = vdwg.mxu0
        %1641 = vmatprep.subr.bf16.mxu0 %v1259
        %1642 = vmatpush1.bf16.msra.mxu0 %v1258
        %1643 = vmatprep.subr.bf16.mxu0 %v1261
        %1644 = vmatpush1.bf16.msra.mxu0 %v1260
        %1645 = vmatprep.subr.bf16.mxu0 %v1263
        %1646 = vmatpush1.bf16.msra.mxu0 %v1262
        %1647 = vmatprep.subr.bf16.mxu0 %v1265
        %1648 = vmatpush1.bf16.msra.mxu0 %v1264
        %1649 = vmatprep.subr.bf16.mxu0 %v1267
        %1650 = vmatpush1.bf16.msra.mxu0 %v1266
        %1651 = vmatprep.subr.bf16.mxu0 %v1269
        %1652 = vmatpush1.bf16.msra.mxu0 %v1268
        %1653 = vmatprep.subr.bf16.mxu0 %v1271
        %1654 = vmatpush1.bf16.msra.mxu0 %v1270
        %1655 = vmatprep.subr.bf16.mxu0 %v1273
        %1656 = vmatpush1.bf16.msra.mxu0 %v1272
        %1657 = vmatprep.subr.bf16.mxu0 %v1275
        %1658 = vmatpush1.bf16.msra.mxu0 %v1274
        %1659 = vmatprep.subr.bf16.mxu0 %v1277
        %1660 = vmatpush1.bf16.msra.mxu0 %v1276
        %1661 = vmatprep.subr.bf16.mxu0 %v1279
        %1662 = vmatpush1.bf16.msra.mxu0 %v1278
        %1663 = vmatprep.subr.bf16.mxu0 %v1281
        %1664 = vmatpush1.bf16.msra.mxu0 %v1280
        %1665 = vmatprep.subr.bf16.mxu0 %v1283
        %1666 = vmatpush1.bf16.msra.mxu0 %v1282
        %1667 = vmatprep.subr.bf16.mxu0 %v1285
        %1668 = vmatpush1.bf16.msra.mxu0 %v1284
        %1669 = vmatprep.subr.bf16.mxu0 %v1287
        %1670 = vmatpush1.bf16.msra.mxu0 %v1286
        %1671 = vmatprep.subr.bf16.mxu0 %v1289
        %1672 = vmatpush1.bf16.msra.mxu0 %v1288
        %1673 = vmatprep.mubr.bf16.mxu0 %v801
        %1674 = vmatmul.mubr.bf16.gmra.mrb[0].mxu0 %v800
        %v1675 = vpop.f32.mrb[0].mxu0
        %v1676 = vadd.f32 %v1563, %v1675
        %v1677 = vpop.f32.mrb[0].mxu0
        %v1678 = vadd.f32 %v1565, %v1677
        %v1679 = vpop.f32.mrb[0].mxu0
        %v1680 = vadd.f32 %v1567, %v1679
        %v1681 = vpop.f32.mrb[0].mxu0
        %v1682 = vadd.f32 %v1569, %v1681
        %1683 = vmatprep.mubr.bf16.mxu0 %v808
        %1684 = vmatmul.mubr.bf16.gmra.mrb[0].mxu0 %v807
        %v1685 = vpop.f32.mrb[0].mxu0
        %v1686 = vadd.f32 %v1573, %v1685
        %v1687 = vpop.f32.mrb[0].mxu0
        %v1688 = vadd.f32 %v1575, %v1687
        %v1689 = vpop.f32.mrb[0].mxu0
        %v1690 = vadd.f32 %v1577, %v1689
        %v1691 = vpop.f32.mrb[0].mxu0
        %v1692 = vadd.f32 %v1579, %v1691
        %1693 = vmatprep.mubr.bf16.mxu0 %v815
        %1694 = vmatmul.mubr.bf16.gmra.mrb[0].mxu0 %v814
        %v1695 = vpop.f32.mrb[0].mxu0
        %v1696 = vadd.f32 %v1583, %v1695
        %v1697 = vpop.f32.mrb[0].mxu0
        %v1698 = vadd.f32 %v1585, %v1697
        %v1699 = vpop.f32.mrb[0].mxu0
        %v1700 = vadd.f32 %v1587, %v1699
        %v1701 = vpop.f32.mrb[0].mxu0
        %v1702 = vadd.f32 %v1589, %v1701
        %1703 = vmatprep.mubr.bf16.mxu0 %v822
        %1704 = vmatmul.mubr.bf16.gmra.mrb[0].mxu0 %v821
        %v1705 = vpop.f32.mrb[0].mxu0
        %v1706 = vadd.f32 %v1593, %v1705
        %v1707 = vpop.f32.mrb[0].mxu0
        %v1708 = vadd.f32 %v1595, %v1707
        %v1709 = vpop.f32.mrb[0].mxu0
        %v1710 = vadd.f32 %v1597, %v1709
        %v1711 = vpop.f32.mrb[0].mxu0
        %v1712 = vadd.f32 %v1599, %v1711
        %1713 = vmatprep.mubr.bf16.mxu0 %v829
        %1714 = vmatmul.mubr.bf16.gmra.mrb[0].mxu0 %v828
        %v1715 = vpop.f32.mrb[0].mxu0
        %v1716 = vadd.f32 %v1603, %v1715
        %v1717 = vpop.f32.mrb[0].mxu0
        %v1718 = vadd.f32 %v1605, %v1717
        %v1719 = vpop.f32.mrb[0].mxu0
        %v1720 = vadd.f32 %v1607, %v1719
        %v1721 = vpop.f32.mrb[0].mxu0
        %v1722 = vadd.f32 %v1609, %v1721
        %1723 = vmatprep.mubr.bf16.mxu0 %v836
        %1724 = vmatmul.mubr.bf16.gmra.mrb[0].mxu0 %v835
        %v1725 = vpop.f32.mrb[0].mxu0
        %v1726 = vadd.f32 %v1613, %v1725
        %v1727 = vpop.f32.mrb[0].mxu0
        %v1728 = vadd.f32 %v1615, %v1727
        %v1729 = vpop.f32.mrb[0].mxu0
        %v1730 = vadd.f32 %v1617, %v1729
        %v1731 = vpop.f32.mrb[0].mxu0
        %v1732 = vadd.f32 %v1619, %v1731
        %1733 = vmatprep.mubr.bf16.mxu0 %v843
        %1734 = vmatmul.mubr.bf16.gmra.mrb[0].mxu0 %v842
        %v1735 = vpop.f32.mrb[0].mxu0
        %v1736 = vadd.f32 %v1623, %v1735
        %v1737 = vpop.f32.mrb[0].mxu0
        %v1738 = vadd.f32 %v1625, %v1737
        %v1739 = vpop.f32.mrb[0].mxu0
        %v1740 = vadd.f32 %v1627, %v1739
        %v1741 = vpop.f32.mrb[0].mxu0
        %v1742 = vadd.f32 %v1629, %v1741
        %1743 = vmatprep.mubr.bf16.mxu0 %v850
        %1744 = vmatmul.mubr.bf16.gmra.mrb[0].mxu0 %v849
        %v1745 = vpop.f32.mrb[0].mxu0
        %v1746 = vadd.f32 %v1633, %v1745
        %v1747 = vpop.f32.mrb[0].mxu0
        %v1748 = vadd.f32 %v1635, %v1747
        %v1749 = vpop.f32.mrb[0].mxu0
        %v1750 = vadd.f32 %v1637, %v1749
        %v1751 = vpop.f32.mrb[0].mxu0
        %v1752 = vadd.f32 %v1639, %v1751
        %1753 = vdwg.mxu0
        %1754 = vmatprep.subr.bf16.mxu0 %v1291
        %1755 = vmatpush1.bf16.msra.mxu0 %v1290
        %1756 = vmatprep.subr.bf16.mxu0 0
        %1757 = vmatpush1.bf16.msra.mxu0 0
        %1758 = vmatprep.subr.bf16.mxu0 0
        %1759 = vmatpush1.bf16.msra.mxu0 0
        %1760 = vmatprep.subr.bf16.mxu0 0
        %1761 = vmatpush1.bf16.msra.mxu0 0
        %1762 = vmatprep.subr.bf16.mxu0 0
        %1763 = vmatpush1.bf16.msra.mxu0 0
        %1764 = vmatprep.subr.bf16.mxu0 0
        %1765 = vmatpush1.bf16.msra.mxu0 0
        %1766 = vmatprep.subr.bf16.mxu0 0
        %1767 = vmatpush1.bf16.msra.mxu0 0
        %1768 = vmatprep.subr.bf16.mxu0 0
        %1769 = vmatpush1.bf16.msra.mxu0 0
        %1770 = vmatprep.subr.bf16.mxu0 0
        %1771 = vmatpush1.bf16.msra.mxu0 0
        %1772 = vmatprep.subr.bf16.mxu0 0
        %1773 = vmatpush1.bf16.msra.mxu0 0
        %1774 = vmatprep.subr.bf16.mxu0 0
        %1775 = vmatpush1.bf16.msra.mxu0 0
        %1776 = vmatprep.subr.bf16.mxu0 0
        %1777 = vmatpush1.bf16.msra.mxu0 0
        %1778 = vmatprep.subr.bf16.mxu0 0
        %1779 = vmatpush1.bf16.msra.mxu0 0
        %1780 = vmatprep.subr.bf16.mxu0 0
        %1781 = vmatpush1.bf16.msra.mxu0 0
        %1782 = vmatprep.subr.bf16.mxu0 0
        %1783 = vmatpush1.bf16.msra.mxu0 0
        %1784 = vmatprep.subr.bf16.mxu0 0
        %1785 = vmatpush1.bf16.msra.mxu0 0
        %1786 = vmatprep.mubr.bf16.mxu0 0
        %1787 = vmatmul.mubr.bf16.gmra.mrb[0].mxu0 %v1392
        %v1788 = vpop.f32.mrb[0].mxu0
        %v1789 = vadd.f32 %v1676, %v1788
        %v1790 = vpop.f32.mrb[0].mxu0
        %v1791 = vadd.f32 %v1678, %v1790
        %v1792 = vpop.f32.mrb[0].mxu0
        %v1793 = vadd.f32 %v1680, %v1792
        %v1794 = vpop.f32.mrb[0].mxu0
        %v1795 = vadd.f32 %v1682, %v1794
        %1796 = vmatprep.mubr.bf16.mxu0 0
        %1797 = vmatmul.mubr.bf16.gmra.mrb[0].mxu0 %v1395
        %v1798 = vpop.f32.mrb[0].mxu0
        %v1799 = vadd.f32 %v1686, %v1798
        %v1800 = vpop.f32.mrb[0].mxu0
        %v1801 = vadd.f32 %v1688, %v1800
        %v1802 = vpop.f32.mrb[0].mxu0
        %v1803 = vadd.f32 %v1690, %v1802
        %v1804 = vpop.f32.mrb[0].mxu0
        %v1805 = vadd.f32 %v1692, %v1804
        %1806 = vmatprep.mubr.bf16.mxu0 0
        %1807 = vmatmul.mubr.bf16.gmra.mrb[0].mxu0 %v1398
        %v1808 = vpop.f32.mrb[0].mxu0
        %v1809 = vadd.f32 %v1696, %v1808
        %v1810 = vpop.f32.mrb[0].mxu0
        %v1811 = vadd.f32 %v1698, %v1810
        %v1812 = vpop.f32.mrb[0].mxu0
        %v1813 = vadd.f32 %v1700, %v1812
        %v1814 = vpop.f32.mrb[0].mxu0
        %v1815 = vadd.f32 %v1702, %v1814
        %1816 = vmatprep.mubr.bf16.mxu0 0
        %1817 = vmatmul.mubr.bf16.gmra.mrb[0].mxu0 %v1401
        %v1818 = vpop.f32.mrb[0].mxu0
        %v1819 = vadd.f32 %v1706, %v1818
        %v1820 = vpop.f32.mrb[0].mxu0
        %v1821 = vadd.f32 %v1708, %v1820
        %v1822 = vpop.f32.mrb[0].mxu0
        %v1823 = vadd.f32 %v1710, %v1822
        %v1824 = vpop.f32.mrb[0].mxu0
        %v1825 = vadd.f32 %v1712, %v1824
        %1826 = vmatprep.mubr.bf16.mxu0 0
        %1827 = vmatmul.mubr.bf16.gmra.mrb[0].mxu0 %v1404
        %v1828 = vpop.f32.mrb[0].mxu0
        %v1829 = vadd.f32 %v1716, %v1828
        %v1830 = vpop.f32.mrb[0].mxu0
        %v1831 = vadd.f32 %v1718, %v1830
        %v1832 = vpop.f32.mrb[0].mxu0
        %v1833 = vadd.f32 %v1720, %v1832
        %v1834 = vpop.f32.mrb[0].mxu0
        %v1835 = vadd.f32 %v1722, %v1834
        %1836 = vmatprep.mubr.bf16.mxu0 0
        %1837 = vmatmul.mubr.bf16.gmra.mrb[0].mxu0 %v1407
        %v1838 = vpop.f32.mrb[0].mxu0
        %v1839 = vadd.f32 %v1726, %v1838
        %v1840 = vpop.f32.mrb[0].mxu0
        %v1841 = vadd.f32 %v1728, %v1840
        %v1842 = vpop.f32.mrb[0].mxu0
        %v1843 = vadd.f32 %v1730, %v1842
        %v1844 = vpop.f32.mrb[0].mxu0
        %v1845 = vadd.f32 %v1732, %v1844
        %1846 = vmatprep.mubr.bf16.mxu0 0
        %1847 = vmatmul.mubr.bf16.gmra.mrb[0].mxu0 %v1410
        %v1848 = vpop.f32.mrb[0].mxu0
        %v1849 = vadd.f32 %v1736, %v1848
        %v1850 = vpop.f32.mrb[0].mxu0
        %v1851 = vadd.f32 %v1738, %v1850
        %v1852 = vpop.f32.mrb[0].mxu0
        %v1853 = vadd.f32 %v1740, %v1852
        %v1854 = vpop.f32.mrb[0].mxu0
        %v1855 = vadd.f32 %v1742, %v1854
        %1856 = vmatprep.mubr.bf16.mxu0 0
        %1857 = vmatmul.mubr.bf16.gmra.mrb[0].mxu0 %v1413
        %v1858 = vpop.f32.mrb[0].mxu0
        %v1859 = vadd.f32 %v1746, %v1858
        %v1860 = vpop.f32.mrb[0].mxu0
        %v1861 = vadd.f32 %v1748, %v1860
        %v1862 = vpop.f32.mrb[0].mxu0
        %v1863 = vadd.f32 %v1750, %v1862
        %v1864 = vpop.f32.mrb[0].mxu0
        %v1865 = vadd.f32 %v1752, %v1864
        %1866 = vdwg.mxu0
        %v1867 = vmax.f32 %v1789, 0.0
        %v1868 = vmax.f32 %v1791, 0.0
        %v1869 = vmax.f32 %v1793, 0.0
        %v1870 = vmax.f32 %v1795, 0.0
        %v1871 = vmax.f32 %v1799, 0.0
        %v1872 = vmax.f32 %v1801, 0.0
        %v1873 = vmax.f32 %v1803, 0.0
        %v1874 = vmax.f32 %v1805, 0.0
        %v1875 = vmax.f32 %v1809, 0.0
        %v1876 = vmax.f32 %v1811, 0.0
        %v1877 = vmax.f32 %v1813, 0.0
        %v1878 = vmax.f32 %v1815, 0.0
        %v1879 = vmax.f32 %v1819, 0.0
        %v1880 = vmax.f32 %v1821, 0.0
        %v1881 = vmax.f32 %v1823, 0.0
        %v1882 = vmax.f32 %v1825, 0.0
        %v1883 = vmax.f32 %v1829, 0.0
        %v1884 = vmax.f32 %v1831, 0.0
        %v1885 = vmax.f32 %v1833, 0.0
        %v1886 = vmax.f32 %v1835, 0.0
        %v1887 = vmax.f32 %v1839, 0.0
        %v1888 = vmax.f32 %v1841, 0.0
        %v1889 = vmax.f32 %v1843, 0.0
        %v1890 = vmax.f32 %v1845, 0.0
        %v1891 = vmax.f32 %v1849, 0.0
        %v1892 = vmax.f32 %v1851, 0.0
        %v1893 = vmax.f32 %v1853, 0.0
        %v1894 = vmax.f32 %v1855, 0.0
        %v1895 = vmax.f32 %v1859, 0.0
        %v1896 = vmax.f32 %v1861, 0.0
        %v1897 = vmax.f32 %v1863, 0.0
        %v1898 = vmax.f32 %v1865, 0.0
        %v1899 = vpack.c.bf16 %v1869, %v1867
        %v1900 = vpack.c.bf16 %v1870, %v1868
        %v1901 = vpack.c.bf16 %v1873, %v1871
        %v1902 = vpack.c.bf16 %v1874, %v1872
        %v1903 = vpack.c.bf16 %v1877, %v1875
        %v1904 = vpack.c.bf16 %v1878, %v1876
        %v1905 = vpack.c.bf16 %v1881, %v1879
        %v1906 = vpack.c.bf16 %v1882, %v1880
        %v1907 = vpack.c.bf16 %v1885, %v1883
        %v1908 = vpack.c.bf16 %v1886, %v1884
        %v1909 = vpack.c.bf16 %v1889, %v1887
        %v1910 = vpack.c.bf16 %v1890, %v1888
        %v1911 = vpack.c.bf16 %v1893, %v1891
        %v1912 = vpack.c.bf16 %v1894, %v1892
        %v1913 = vpack.c.bf16 %v1897, %v1895
        %v1914 = vpack.c.bf16 %v1898, %v1896
        %v1915 = vld [vmem:[%s3] sm:$0xff]
        %v1916 = vld [vmem:[%s3 + $0x8] sm:$0xff]
        %v1917 = vld [vmem:[%s3 + $0x10] sm:$0xff]
        %v1918 = vld [vmem:[%s3 + $0x18] sm:$0xff]
        %v1919 = vld [vmem:[%s3 + $0x20] sm:$0xff]
        %v1920 = vld [vmem:[%s3 + $0x28] sm:$0xff]
        %v1921 = vld [vmem:[%s3 + $0x30] sm:$0xff]
        %v1922 = vld [vmem:[%s3 + $0x38] sm:$0xff]
        %v1923 = vld [vmem:[%s3 + $0x40] sm:$0xff]
        %v1924 = vld [vmem:[%s3 + $0x48] sm:$0xff]
        %v1925 = vld [vmem:[%s3 + $0x50] sm:$0xff]
        %v1926 = vld [vmem:[%s3 + $0x58] sm:$0xff]
        %v1927 = vld [vmem:[%s3 + $0x60] sm:$0xff]
        %v1928 = vld [vmem:[%s3 + $0x68] sm:$0xff]
        %v1929 = vld [vmem:[%s3 + $0x70] sm:$0xff]
        %v1930 = vld [vmem:[%s3 + $0x78] sm:$0xff]
        %v1931 = vld [vmem:[%s3 + $0x80] sm:$0xff]
        %v1932 = vld [vmem:[%s3 + $0x88] sm:$0xff]
        %v1933 = vld [vmem:[%s3 + $0x90] sm:$0xff]
        %v1934 = vld [vmem:[%s3 + $0x98] sm:$0xff]
        %v1935 = vld [vmem:[%s3 + $0xa0] sm:$0xff]
        %v1936 = vld [vmem:[%s3 + $0xa8] sm:$0xff]
        %v1937 = vld [vmem:[%s3 + $0xb0] sm:$0xff]
        %v1938 = vld [vmem:[%s3 + $0xb8] sm:$0xff]
        %v1939 = vld [vmem:[%s3 + $0xc0] sm:$0xff]
        %v1940 = vld [vmem:[%s3 + $0xc8] sm:$0xff]
        %v1941 = vld [vmem:[%s3 + $0xd0] sm:$0xff]
        %v1942 = vld [vmem:[%s3 + $0xd8] sm:$0xff]
        %v1943 = vld [vmem:[%s3 + $0xe0] sm:$0xff]
        %v1944 = vld [vmem:[%s3 + $0xe8] sm:$0xff]
        %v1945 = vld [vmem:[%s3 + $0xf0] sm:$0xff]
        %v1946 = vld [vmem:[%s3 + $0xf8] sm:$0xff]
        %v1947 = vld [vmem:[%s4] sm:$0x3]
        %v1949 = vlaneseq
        %v1950 = vshrl.u32 %v1949, 7
        %v1951 = vsub.s32 0, %v1950
        %v1952 = vrot.slane %v1947, %v1951
        %v1953 = vlaneseq
        %v1954 = vshrl.u32 %v1953, 7
        %v1955 = vsub.s32 1, %v1954
        %v1956 = vrot.slane %v1947, %v1955
        %v1991 = vunpack.c.l.b16 %v1915
        %v1992 = vunpack.c.h.b16 %v1915
        %v1993 = vunpack.c.l.b16 %v1916
        %v1994 = vunpack.c.h.b16 %v1916
        %v1995 = vunpack.c.l.b16 %v1917
        %v1996 = vunpack.c.h.b16 %v1917
        %v1997 = vunpack.c.l.b16 %v1918
        %v1998 = vunpack.c.h.b16 %v1918
        %v1999 = vunpack.c.l.b16 %v1919
        %v2000 = vunpack.c.h.b16 %v1919
        %v2001 = vunpack.c.l.b16 %v1920
        %v2002 = vunpack.c.h.b16 %v1920
        %v2003 = vunpack.c.l.b16 %v1921
        %v2004 = vunpack.c.h.b16 %v1921
        %v2005 = vunpack.c.l.b16 %v1922
        %v2006 = vunpack.c.h.b16 %v1922
        %v2007 = vunpack.c.l.b16 %v1923
        %v2008 = vunpack.c.h.b16 %v1923
        %v2009 = vunpack.c.l.b16 %v1924
        %v2010 = vunpack.c.h.b16 %v1924
        %v2011 = vunpack.c.l.b16 %v1925
        %v2012 = vunpack.c.h.b16 %v1925
        %v2013 = vunpack.c.l.b16 %v1926
        %v2014 = vunpack.c.h.b16 %v1926
        %v2015 = vunpack.c.l.b16 %v1927
        %v2016 = vunpack.c.h.b16 %v1927
        %v2017 = vunpack.c.l.b16 %v1928
        %v2018 = vunpack.c.h.b16 %v1928
        %v2019 = vunpack.c.l.b16 %v1929
        %v2020 = vunpack.c.h.b16 %v1929
        %v2021 = vunpack.c.l.b16 %v1930
        %v2022 = vunpack.c.h.b16 %v1930
        %v2023 = vunpack.c.l.b16 %v1931
        %v2024 = vunpack.c.h.b16 %v1931
        %v2025 = vunpack.c.l.b16 %v1932
        %v2026 = vunpack.c.h.b16 %v1932
        %v2027 = vunpack.c.l.b16 %v1933
        %v2028 = vunpack.c.h.b16 %v1933
        %v2029 = vunpack.c.l.b16 %v1934
        %v2030 = vunpack.c.h.b16 %v1934
        %v2031 = vunpack.c.l.b16 %v1935
        %v2032 = vunpack.c.h.b16 %v1935
        %v2033 = vunpack.c.l.b16 %v1936
        %v2034 = vunpack.c.h.b16 %v1936
        %v2035 = vunpack.c.l.b16 %v1937
        %v2036 = vunpack.c.h.b16 %v1937
        %v2037 = vunpack.c.l.b16 %v1938
        %v2038 = vunpack.c.h.b16 %v1938
        %v2039 = vunpack.c.l.b16 %v1939
        %v2040 = vunpack.c.h.b16 %v1939
        %v2041 = vunpack.c.l.b16 %v1940
        %v2042 = vunpack.c.h.b16 %v1940
        %v2043 = vunpack.c.l.b16 %v1941
        %v2044 = vunpack.c.h.b16 %v1941
        %v2045 = vunpack.c.l.b16 %v1942
        %v2046 = vunpack.c.h.b16 %v1942
        %v2047 = vunpack.c.l.b16 %v1943
        %v2048 = vunpack.c.h.b16 %v1943
        %v2049 = vunpack.c.l.b16 %v1944
        %v2050 = vunpack.c.h.b16 %v1944
        %v2051 = vunpack.c.l.b16 %v1945
        %v2052 = vunpack.c.h.b16 %v1945
        %v2053 = vunpack.c.l.b16 %v1946
        %v2054 = vunpack.c.h.b16 %v1946
        %v2055 = vpack.c.b16 %v1993, %v1991
        %v2056 = vpack.c.b16 %v1994, %v1992
        %v2057 = vpack.c.b16 %v1997, %v1995
        %v2058 = vpack.c.b16 %v1998, %v1996
        %v2059 = vpack.c.b16 %v2001, %v1999
        %v2060 = vpack.c.b16 %v2002, %v2000
        %v2061 = vpack.c.b16 %v2005, %v2003
        %v2062 = vpack.c.b16 %v2006, %v2004
        %v2063 = vpack.c.b16 %v2009, %v2007
        %v2064 = vpack.c.b16 %v2010, %v2008
        %v2065 = vpack.c.b16 %v2013, %v2011
        %v2066 = vpack.c.b16 %v2014, %v2012
        %v2067 = vpack.c.b16 %v2017, %v2015
        %v2068 = vpack.c.b16 %v2018, %v2016
        %v2069 = vpack.c.b16 %v2021, %v2019
        %v2070 = vpack.c.b16 %v2022, %v2020
        %v2071 = vpack.c.b16 %v2025, %v2023
        %v2072 = vpack.c.b16 %v2026, %v2024
        %v2073 = vpack.c.b16 %v2029, %v2027
        %v2074 = vpack.c.b16 %v2030, %v2028
        %v2075 = vpack.c.b16 %v2033, %v2031
        %v2076 = vpack.c.b16 %v2034, %v2032
        %v2077 = vpack.c.b16 %v2037, %v2035
        %v2078 = vpack.c.b16 %v2038, %v2036
        %v2079 = vpack.c.b16 %v2041, %v2039
        %v2080 = vpack.c.b16 %v2042, %v2040
        %v2081 = vpack.c.b16 %v2045, %v2043
        %v2082 = vpack.c.b16 %v2046, %v2044
        %v2083 = vpack.c.b16 %v2049, %v2047
        %v2084 = vpack.c.b16 %v2050, %v2048
        %v2085 = vpack.c.b16 %v2053, %v2051
        %v2086 = vpack.c.b16 %v2054, %v2052
        %2119 = vmatprep.subr.bf16.mxu0 %v2056
        %2120 = vmatpush1.bf16.msra.mxu0 %v2055
        %2121 = vmatprep.subr.bf16.mxu0 %v2058
        %2122 = vmatpush1.bf16.msra.mxu0 %v2057
        %2123 = vmatprep.subr.bf16.mxu0 %v2060
        %2124 = vmatpush1.bf16.msra.mxu0 %v2059
        %2125 = vmatprep.subr.bf16.mxu0 %v2062
        %2126 = vmatpush1.bf16.msra.mxu0 %v2061
        %2127 = vmatprep.subr.bf16.mxu0 %v2064
        %2128 = vmatpush1.bf16.msra.mxu0 %v2063
        %2129 = vmatprep.subr.bf16.mxu0 %v2066
        %2130 = vmatpush1.bf16.msra.mxu0 %v2065
        %2131 = vmatprep.subr.bf16.mxu0 %v2068
        %2132 = vmatpush1.bf16.msra.mxu0 %v2067
        %2133 = vmatprep.subr.bf16.mxu0 %v2070
        %2134 = vmatpush1.bf16.msra.mxu0 %v2069
        %2135 = vmatprep.subr.bf16.mxu0 %v2072
        %2136 = vmatpush1.bf16.msra.mxu0 %v2071
        %2137 = vmatprep.subr.bf16.mxu0 %v2074
        %2138 = vmatpush1.bf16.msra.mxu0 %v2073
        %2139 = vmatprep.subr.bf16.mxu0 %v2076
        %2140 = vmatpush1.bf16.msra.mxu0 %v2075
        %2141 = vmatprep.subr.bf16.mxu0 %v2078
        %2142 = vmatpush1.bf16.msra.mxu0 %v2077
        %2143 = vmatprep.subr.bf16.mxu0 %v2080
        %2144 = vmatpush1.bf16.msra.mxu0 %v2079
        %2145 = vmatprep.subr.bf16.mxu0 %v2082
        %2146 = vmatpush1.bf16.msra.mxu0 %v2081
        %2147 = vmatprep.subr.bf16.mxu0 %v2084
        %2148 = vmatpush1.bf16.msra.mxu0 %v2083
        %2149 = vmatprep.subr.bf16.mxu0 %v2086
        %2150 = vmatpush1.bf16.msra.mxu0 %v2085
        %2151 = vmatprep.mubr.bf16.mxu0 %v1900
        %2152 = vmatmul.mubr.bf16.gmra.mrb[0].mxu0 %v1899
        %v2153 = vpop.f32.mrb[0].mxu0
        %v2154 = vadd.f32 %v1952, %v2153
        %v2155 = vpop.f32.mrb[0].mxu0
        %v2156 = vadd.f32 %v1956, %v2155
        %v2157 = vpop.f32.mrb[0].mxu0
        %v2158 = vadd.f32 %v1952, %v2157
        %v2159 = vpop.f32.mrb[0].mxu0
        %v2160 = vadd.f32 %v1956, %v2159
        %2161 = vmatprep.mubr.bf16.mxu0 %v1902
        %2162 = vmatmul.mubr.bf16.gmra.mrb[0].mxu0 %v1901
        %v2163 = vpop.f32.mrb[0].mxu0
        %v2164 = vadd.f32 %v1952, %v2163
        %v2165 = vpop.f32.mrb[0].mxu0
        %v2166 = vadd.f32 %v1956, %v2165
        %v2167 = vpop.f32.mrb[0].mxu0
        %v2168 = vadd.f32 %v1952, %v2167
        %v2169 = vpop.f32.mrb[0].mxu0
        %v2170 = vadd.f32 %v1956, %v2169
        %2171 = vmatprep.mubr.bf16.mxu0 %v1904
        %2172 = vmatmul.mubr.bf16.gmra.mrb[0].mxu0 %v1903
        %v2173 = vpop.f32.mrb[0].mxu0
        %v2174 = vadd.f32 %v1952, %v2173
        %v2175 = vpop.f32.mrb[0].mxu0
        %v2176 = vadd.f32 %v1956, %v2175
        %v2177 = vpop.f32.mrb[0].mxu0
        %v2178 = vadd.f32 %v1952, %v2177
        %v2179 = vpop.f32.mrb[0].mxu0
        %v2180 = vadd.f32 %v1956, %v2179
        %2181 = vmatprep.mubr.bf16.mxu0 %v1906
        %2182 = vmatmul.mubr.bf16.gmra.mrb[0].mxu0 %v1905
        %v2183 = vpop.f32.mrb[0].mxu0
        %v2184 = vadd.f32 %v1952, %v2183
        %v2185 = vpop.f32.mrb[0].mxu0
        %v2186 = vadd.f32 %v1956, %v2185
        %v2187 = vpop.f32.mrb[0].mxu0
        %v2188 = vadd.f32 %v1952, %v2187
        %v2189 = vpop.f32.mrb[0].mxu0
        %v2190 = vadd.f32 %v1956, %v2189
        %2191 = vmatprep.mubr.bf16.mxu0 %v1908
        %2192 = vmatmul.mubr.bf16.gmra.mrb[0].mxu0 %v1907
        %v2193 = vpop.f32.mrb[0].mxu0
        %v2194 = vadd.f32 %v1952, %v2193
        %v2195 = vpop.f32.mrb[0].mxu0
        %v2196 = vadd.f32 %v1956, %v2195
        %v2197 = vpop.f32.mrb[0].mxu0
        %v2198 = vadd.f32 %v1952, %v2197
        %v2199 = vpop.f32.mrb[0].mxu0
        %v2200 = vadd.f32 %v1956, %v2199
        %2201 = vmatprep.mubr.bf16.mxu0 %v1910
        %2202 = vmatmul.mubr.bf16.gmra.mrb[0].mxu0 %v1909
        %v2203 = vpop.f32.mrb[0].mxu0
        %v2204 = vadd.f32 %v1952, %v2203
        %v2205 = vpop.f32.mrb[0].mxu0
        %v2206 = vadd.f32 %v1956, %v2205
        %v2207 = vpop.f32.mrb[0].mxu0
        %v2208 = vadd.f32 %v1952, %v2207
        %v2209 = vpop.f32.mrb[0].mxu0
        %v2210 = vadd.f32 %v1956, %v2209
        %2211 = vmatprep.mubr.bf16.mxu0 %v1912
        %2212 = vmatmul.mubr.bf16.gmra.mrb[0].mxu0 %v1911
        %v2213 = vpop.f32.mrb[0].mxu0
        %v2214 = vadd.f32 %v1952, %v2213
        %v2215 = vpop.f32.mrb[0].mxu0
        %v2216 = vadd.f32 %v1956, %v2215
        %v2217 = vpop.f32.mrb[0].mxu0
        %v2218 = vadd.f32 %v1952, %v2217
        %v2219 = vpop.f32.mrb[0].mxu0
        %v2220 = vadd.f32 %v1956, %v2219
        %2221 = vmatprep.mubr.bf16.mxu0 %v1914
        %2222 = vmatmul.mubr.bf16.gmra.mrb[0].mxu0 %v1913
        %v2223 = vpop.f32.mrb[0].mxu0
        %v2224 = vadd.f32 %v1952, %v2223
        %v2225 = vpop.f32.mrb[0].mxu0
        %v2226 = vadd.f32 %v1956, %v2225
        %v2227 = vpop.f32.mrb[0].mxu0
        %v2228 = vadd.f32 %v1952, %v2227
        %v2229 = vpop.f32.mrb[0].mxu0
        %v2230 = vadd.f32 %v1956, %v2229
        %2231 = vdwg.mxu0
        %v2232 = vmax.f32 %v2154, 0.0
        %v2233 = vmax.f32 %v2156, 0.0
        %v2234 = vmax.f32 %v2158, 0.0
        %v2235 = vmax.f32 %v2160, 0.0
        %v2236 = vmax.f32 %v2164, 0.0
        %v2237 = vmax.f32 %v2166, 0.0
        %v2238 = vmax.f32 %v2168, 0.0
        %v2239 = vmax.f32 %v2170, 0.0
        %v2240 = vmax.f32 %v2174, 0.0
        %v2241 = vmax.f32 %v2176, 0.0
        %v2242 = vmax.f32 %v2178, 0.0
        %v2243 = vmax.f32 %v2180, 0.0
        %v2244 = vmax.f32 %v2184, 0.0
        %v2245 = vmax.f32 %v2186, 0.0
        %v2246 = vmax.f32 %v2188, 0.0
        %v2247 = vmax.f32 %v2190, 0.0
        %v2248 = vmax.f32 %v2194, 0.0
        %v2249 = vmax.f32 %v2196, 0.0
        %v2250 = vmax.f32 %v2198, 0.0
        %v2251 = vmax.f32 %v2200, 0.0
        %v2252 = vmax.f32 %v2204, 0.0
        %v2253 = vmax.f32 %v2206, 0.0
        %v2254 = vmax.f32 %v2208, 0.0
        %v2255 = vmax.f32 %v2210, 0.0
        %v2256 = vmax.f32 %v2214, 0.0
        %v2257 = vmax.f32 %v2216, 0.0
        %v2258 = vmax.f32 %v2218, 0.0
        %v2259 = vmax.f32 %v2220, 0.0
        %v2260 = vmax.f32 %v2224, 0.0
        %v2261 = vmax.f32 %v2226, 0.0
        %v2262 = vmax.f32 %v2228, 0.0
        %v2263 = vmax.f32 %v2230, 0.0
        %v2264 = vpack.c.bf16 %v2234, %v2232
        %v2265 = vpack.c.bf16 %v2235, %v2233
        %v2266 = vpack.c.bf16 %v2238, %v2236
        %v2267 = vpack.c.bf16 %v2239, %v2237
        %v2268 = vpack.c.bf16 %v2242, %v2240
        %v2269 = vpack.c.bf16 %v2243, %v2241
        %v2270 = vpack.c.bf16 %v2246, %v2244
        %v2271 = vpack.c.bf16 %v2247, %v2245
        %v2272 = vpack.c.bf16 %v2250, %v2248
        %v2273 = vpack.c.bf16 %v2251, %v2249
        %v2274 = vpack.c.bf16 %v2254, %v2252
        %v2275 = vpack.c.bf16 %v2255, %v2253
        %v2276 = vpack.c.bf16 %v2258, %v2256
        %v2277 = vpack.c.bf16 %v2259, %v2257
        %v2278 = vpack.c.bf16 %v2262, %v2260
        %v2279 = vpack.c.bf16 %v2263, %v2261
        %v2280 = vld [vmem:[%s5] sm:$0xff]
        %v2281 = vld [vmem:[%s5 + $0x8] sm:$0xff]
        %v2282 = vld [vmem:[%s5 + $0x10] sm:$0xff]
        %v2283 = vld [vmem:[%s5 + $0x18] sm:$0xff]
        %v2284 = vld [vmem:[%s5 + $0x20] sm:$0xff]
        %v2285 = vld [vmem:[%s5 + $0x28] sm:$0xff]
        %v2286 = vld [vmem:[%s5 + $0x30] sm:$0xff]
        %v2287 = vld [vmem:[%s5 + $0x38] sm:$0xff]
        %v2288 = vld [vmem:[%s5 + $0x40] sm:$0xff]
        %v2289 = vld [vmem:[%s5 + $0x48] sm:$0xff]
        %v2290 = vld [vmem:[%s5 + $0x50] sm:$0xff]
        %v2291 = vld [vmem:[%s5 + $0x58] sm:$0xff]
        %v2292 = vld [vmem:[%s5 + $0x60] sm:$0xff]
        %v2293 = vld [vmem:[%s5 + $0x68] sm:$0xff]
        %v2294 = vld [vmem:[%s5 + $0x70] sm:$0xff]
        %v2295 = vld [vmem:[%s5 + $0x78] sm:$0xff]
        %v2296 = vld [vmem:[%s5 + $0x80] sm:$0xff]
        %v2297 = vld [vmem:[%s5 + $0x88] sm:$0xff]
        %v2298 = vld [vmem:[%s5 + $0x90] sm:$0xff]
        %v2299 = vld [vmem:[%s5 + $0x98] sm:$0xff]
        %v2300 = vld [vmem:[%s5 + $0xa0] sm:$0xff]
        %v2301 = vld [vmem:[%s5 + $0xa8] sm:$0xff]
        %v2302 = vld [vmem:[%s5 + $0xb0] sm:$0xff]
        %v2303 = vld [vmem:[%s5 + $0xb8] sm:$0xff]
        %v2304 = vld [vmem:[%s5 + $0xc0] sm:$0xff]
        %v2305 = vld [vmem:[%s5 + $0xc8] sm:$0xff]
        %v2306 = vld [vmem:[%s5 + $0xd0] sm:$0xff]
        %v2307 = vld [vmem:[%s5 + $0xd8] sm:$0xff]
        %v2308 = vld [vmem:[%s5 + $0xe0] sm:$0xff]
        %v2309 = vld [vmem:[%s5 + $0xe8] sm:$0xff]
        %v2310 = vld [vmem:[%s5 + $0xf0] sm:$0xff]
        %v2311 = vld [vmem:[%s5 + $0xf8] sm:$0xff]
        %v2312 = vld [vmem:[%s6] sm:$0x3]
        %v2314 = vlaneseq
        %v2315 = vshrl.u32 %v2314, 7
        %v2316 = vsub.s32 0, %v2315
        %v2317 = vrot.slane %v2312, %v2316
        %v2318 = vlaneseq
        %v2319 = vshrl.u32 %v2318, 7
        %v2320 = vsub.s32 1, %v2319
        %v2321 = vrot.slane %v2312, %v2320
        %v2356 = vunpack.c.l.b16 %v2280
        %v2357 = vunpack.c.h.b16 %v2280
        %v2358 = vunpack.c.l.b16 %v2281
        %v2359 = vunpack.c.h.b16 %v2281
        %v2360 = vunpack.c.l.b16 %v2282
        %v2361 = vunpack.c.h.b16 %v2282
        %v2362 = vunpack.c.l.b16 %v2283
        %v2363 = vunpack.c.h.b16 %v2283
        %v2364 = vunpack.c.l.b16 %v2284
        %v2365 = vunpack.c.h.b16 %v2284
        %v2366 = vunpack.c.l.b16 %v2285
        %v2367 = vunpack.c.h.b16 %v2285
        %v2368 = vunpack.c.l.b16 %v2286
        %v2369 = vunpack.c.h.b16 %v2286
        %v2370 = vunpack.c.l.b16 %v2287
        %v2371 = vunpack.c.h.b16 %v2287
        %v2372 = vunpack.c.l.b16 %v2288
        %v2373 = vunpack.c.h.b16 %v2288
        %v2374 = vunpack.c.l.b16 %v2289
        %v2375 = vunpack.c.h.b16 %v2289
        %v2376 = vunpack.c.l.b16 %v2290
        %v2377 = vunpack.c.h.b16 %v2290
        %v2378 = vunpack.c.l.b16 %v2291
        %v2379 = vunpack.c.h.b16 %v2291
        %v2380 = vunpack.c.l.b16 %v2292
        %v2381 = vunpack.c.h.b16 %v2292
        %v2382 = vunpack.c.l.b16 %v2293
        %v2383 = vunpack.c.h.b16 %v2293
        %v2384 = vunpack.c.l.b16 %v2294
        %v2385 = vunpack.c.h.b16 %v2294
        %v2386 = vunpack.c.l.b16 %v2295
        %v2387 = vunpack.c.h.b16 %v2295
        %v2388 = vunpack.c.l.b16 %v2296
        %v2389 = vunpack.c.h.b16 %v2296
        %v2390 = vunpack.c.l.b16 %v2297
        %v2391 = vunpack.c.h.b16 %v2297
        %v2392 = vunpack.c.l.b16 %v2298
        %v2393 = vunpack.c.h.b16 %v2298
        %v2394 = vunpack.c.l.b16 %v2299
        %v2395 = vunpack.c.h.b16 %v2299
        %v2396 = vunpack.c.l.b16 %v2300
        %v2397 = vunpack.c.h.b16 %v2300
        %v2398 = vunpack.c.l.b16 %v2301
        %v2399 = vunpack.c.h.b16 %v2301
        %v2400 = vunpack.c.l.b16 %v2302
        %v2401 = vunpack.c.h.b16 %v2302
        %v2402 = vunpack.c.l.b16 %v2303
        %v2403 = vunpack.c.h.b16 %v2303
        %v2404 = vunpack.c.l.b16 %v2304
        %v2405 = vunpack.c.h.b16 %v2304
        %v2406 = vunpack.c.l.b16 %v2305
        %v2407 = vunpack.c.h.b16 %v2305
        %v2408 = vunpack.c.l.b16 %v2306
        %v2409 = vunpack.c.h.b16 %v2306
        %v2410 = vunpack.c.l.b16 %v2307
        %v2411 = vunpack.c.h.b16 %v2307
        %v2412 = vunpack.c.l.b16 %v2308
        %v2413 = vunpack.c.h.b16 %v2308
        %v2414 = vunpack.c.l.b16 %v2309
        %v2415 = vunpack.c.h.b16 %v2309
        %v2416 = vunpack.c.l.b16 %v2310
        %v2417 = vunpack.c.h.b16 %v2310
        %v2418 = vunpack.c.l.b16 %v2311
        %v2419 = vunpack.c.h.b16 %v2311
        %v2420 = vpack.c.b16 %v2358, %v2356
        %v2421 = vpack.c.b16 %v2359, %v2357
        %v2422 = vpack.c.b16 %v2362, %v2360
        %v2423 = vpack.c.b16 %v2363, %v2361
        %v2424 = vpack.c.b16 %v2366, %v2364
        %v2425 = vpack.c.b16 %v2367, %v2365
        %v2426 = vpack.c.b16 %v2370, %v2368
        %v2427 = vpack.c.b16 %v2371, %v2369
        %v2428 = vpack.c.b16 %v2374, %v2372
        %v2429 = vpack.c.b16 %v2375, %v2373
        %v2430 = vpack.c.b16 %v2378, %v2376
        %v2431 = vpack.c.b16 %v2379, %v2377
        %v2432 = vpack.c.b16 %v2382, %v2380
        %v2433 = vpack.c.b16 %v2383, %v2381
        %v2434 = vpack.c.b16 %v2386, %v2384
        %v2435 = vpack.c.b16 %v2387, %v2385
        %v2436 = vpack.c.b16 %v2390, %v2388
        %v2437 = vpack.c.b16 %v2391, %v2389
        %v2438 = vpack.c.b16 %v2394, %v2392
        %v2439 = vpack.c.b16 %v2395, %v2393
        %v2440 = vpack.c.b16 %v2398, %v2396
        %v2441 = vpack.c.b16 %v2399, %v2397
        %v2442 = vpack.c.b16 %v2402, %v2400
        %v2443 = vpack.c.b16 %v2403, %v2401
        %v2444 = vpack.c.b16 %v2406, %v2404
        %v2445 = vpack.c.b16 %v2407, %v2405
        %v2446 = vpack.c.b16 %v2410, %v2408
        %v2447 = vpack.c.b16 %v2411, %v2409
        %v2448 = vpack.c.b16 %v2414, %v2412
        %v2449 = vpack.c.b16 %v2415, %v2413
        %v2450 = vpack.c.b16 %v2418, %v2416
        %v2451 = vpack.c.b16 %v2419, %v2417
        %2484 = vmatprep.subr.bf16.mxu0 %v2421
        %2485 = vmatpush1.bf16.msra.mxu0 %v2420
        %2486 = vmatprep.subr.bf16.mxu0 %v2423
        %2487 = vmatpush1.bf16.msra.mxu0 %v2422
        %2488 = vmatprep.subr.bf16.mxu0 %v2425
        %2489 = vmatpush1.bf16.msra.mxu0 %v2424
        %2490 = vmatprep.subr.bf16.mxu0 %v2427
        %2491 = vmatpush1.bf16.msra.mxu0 %v2426
        %2492 = vmatprep.subr.bf16.mxu0 %v2429
        %2493 = vmatpush1.bf16.msra.mxu0 %v2428
        %2494 = vmatprep.subr.bf16.mxu0 %v2431
        %2495 = vmatpush1.bf16.msra.mxu0 %v2430
        %2496 = vmatprep.subr.bf16.mxu0 %v2433
        %2497 = vmatpush1.bf16.msra.mxu0 %v2432
        %2498 = vmatprep.subr.bf16.mxu0 %v2435
        %2499 = vmatpush1.bf16.msra.mxu0 %v2434
        %2500 = vmatprep.subr.bf16.mxu0 %v2437
        %2501 = vmatpush1.bf16.msra.mxu0 %v2436
        %2502 = vmatprep.subr.bf16.mxu0 %v2439
        %2503 = vmatpush1.bf16.msra.mxu0 %v2438
        %2504 = vmatprep.subr.bf16.mxu0 %v2441
        %2505 = vmatpush1.bf16.msra.mxu0 %v2440
        %2506 = vmatprep.subr.bf16.mxu0 %v2443
        %2507 = vmatpush1.bf16.msra.mxu0 %v2442
        %2508 = vmatprep.subr.bf16.mxu0 %v2445
        %2509 = vmatpush1.bf16.msra.mxu0 %v2444
        %2510 = vmatprep.subr.bf16.mxu0 %v2447
        %2511 = vmatpush1.bf16.msra.mxu0 %v2446
        %2512 = vmatprep.subr.bf16.mxu0 %v2449
        %2513 = vmatpush1.bf16.msra.mxu0 %v2448
        %2514 = vmatprep.subr.bf16.mxu0 %v2451
        %2515 = vmatpush1.bf16.msra.mxu0 %v2450
        %2516 = vmatprep.mubr.bf16.mxu0 %v2265
        %2517 = vmatmul.mubr.bf16.gmra.mrb[0].mxu0 %v2264
        %v2518 = vpop.f32.mrb[0].mxu0
        %v2519 = vadd.f32 %v2317, %v2518
        %v2520 = vpop.f32.mrb[0].mxu0
        %v2521 = vadd.f32 %v2321, %v2520
        %v2522 = vpop.f32.mrb[0].mxu0
        %v2523 = vadd.f32 %v2317, %v2522
        %v2524 = vpop.f32.mrb[0].mxu0
        %v2525 = vadd.f32 %v2321, %v2524
        %2526 = vmatprep.mubr.bf16.mxu0 %v2267
        %2527 = vmatmul.mubr.bf16.gmra.mrb[0].mxu0 %v2266
        %v2528 = vpop.f32.mrb[0].mxu0
        %v2529 = vadd.f32 %v2317, %v2528
        %v2530 = vpop.f32.mrb[0].mxu0
        %v2531 = vadd.f32 %v2321, %v2530
        %v2532 = vpop.f32.mrb[0].mxu0
        %v2533 = vadd.f32 %v2317, %v2532
        %v2534 = vpop.f32.mrb[0].mxu0
        %v2535 = vadd.f32 %v2321, %v2534
        %2536 = vmatprep.mubr.bf16.mxu0 %v2269
        %2537 = vmatmul.mubr.bf16.gmra.mrb[0].mxu0 %v2268
        %v2538 = vpop.f32.mrb[0].mxu0
        %v2539 = vadd.f32 %v2317, %v2538
        %v2540 = vpop.f32.mrb[0].mxu0
        %v2541 = vadd.f32 %v2321, %v2540
        %v2542 = vpop.f32.mrb[0].mxu0
        %v2543 = vadd.f32 %v2317, %v2542
        %v2544 = vpop.f32.mrb[0].mxu0
        %v2545 = vadd.f32 %v2321, %v2544
        %2546 = vmatprep.mubr.bf16.mxu0 %v2271
        %2547 = vmatmul.mubr.bf16.gmra.mrb[0].mxu0 %v2270
        %v2548 = vpop.f32.mrb[0].mxu0
        %v2549 = vadd.f32 %v2317, %v2548
        %v2550 = vpop.f32.mrb[0].mxu0
        %v2551 = vadd.f32 %v2321, %v2550
        %v2552 = vpop.f32.mrb[0].mxu0
        %v2553 = vadd.f32 %v2317, %v2552
        %v2554 = vpop.f32.mrb[0].mxu0
        %v2555 = vadd.f32 %v2321, %v2554
        %2556 = vmatprep.mubr.bf16.mxu0 %v2273
        %2557 = vmatmul.mubr.bf16.gmra.mrb[0].mxu0 %v2272
        %v2558 = vpop.f32.mrb[0].mxu0
        %v2559 = vadd.f32 %v2317, %v2558
        %v2560 = vpop.f32.mrb[0].mxu0
        %v2561 = vadd.f32 %v2321, %v2560
        %v2562 = vpop.f32.mrb[0].mxu0
        %v2563 = vadd.f32 %v2317, %v2562
        %v2564 = vpop.f32.mrb[0].mxu0
        %v2565 = vadd.f32 %v2321, %v2564
        %2566 = vmatprep.mubr.bf16.mxu0 %v2275
        %2567 = vmatmul.mubr.bf16.gmra.mrb[0].mxu0 %v2274
        %v2568 = vpop.f32.mrb[0].mxu0
        %v2569 = vadd.f32 %v2317, %v2568
        %v2570 = vpop.f32.mrb[0].mxu0
        %v2571 = vadd.f32 %v2321, %v2570
        %v2572 = vpop.f32.mrb[0].mxu0
        %v2573 = vadd.f32 %v2317, %v2572
        %v2574 = vpop.f32.mrb[0].mxu0
        %v2575 = vadd.f32 %v2321, %v2574
        %2576 = vmatprep.mubr.bf16.mxu0 %v2277
        %2577 = vmatmul.mubr.bf16.gmra.mrb[0].mxu0 %v2276
        %v2578 = vpop.f32.mrb[0].mxu0
        %v2579 = vadd.f32 %v2317, %v2578
        %v2580 = vpop.f32.mrb[0].mxu0
        %v2581 = vadd.f32 %v2321, %v2580
        %v2582 = vpop.f32.mrb[0].mxu0
        %v2583 = vadd.f32 %v2317, %v2582
        %v2584 = vpop.f32.mrb[0].mxu0
        %v2585 = vadd.f32 %v2321, %v2584
        %2586 = vmatprep.mubr.bf16.mxu0 %v2279
        %2587 = vmatmul.mubr.bf16.gmra.mrb[0].mxu0 %v2278
        %v2588 = vpop.f32.mrb[0].mxu0
        %v2589 = vadd.f32 %v2317, %v2588
        %v2590 = vpop.f32.mrb[0].mxu0
        %v2591 = vadd.f32 %v2321, %v2590
        %v2592 = vpop.f32.mrb[0].mxu0
        %v2593 = vadd.f32 %v2317, %v2592
        %v2594 = vpop.f32.mrb[0].mxu0
        %v2595 = vadd.f32 %v2321, %v2594
        %2596 = vdwg.mxu0
        %v2597 = vmax.f32 %v2519, 0.0
        %v2598 = vmax.f32 %v2521, 0.0
        %v2599 = vmax.f32 %v2523, 0.0
        %v2600 = vmax.f32 %v2525, 0.0
        %v2601 = vmax.f32 %v2529, 0.0
        %v2602 = vmax.f32 %v2531, 0.0
        %v2603 = vmax.f32 %v2533, 0.0
        %v2604 = vmax.f32 %v2535, 0.0
        %v2605 = vmax.f32 %v2539, 0.0
        %v2606 = vmax.f32 %v2541, 0.0
        %v2607 = vmax.f32 %v2543, 0.0
        %v2608 = vmax.f32 %v2545, 0.0
        %v2609 = vmax.f32 %v2549, 0.0
        %v2610 = vmax.f32 %v2551, 0.0
        %v2611 = vmax.f32 %v2553, 0.0
        %v2612 = vmax.f32 %v2555, 0.0
        %v2613 = vmax.f32 %v2559, 0.0
        %v2614 = vmax.f32 %v2561, 0.0
        %v2615 = vmax.f32 %v2563, 0.0
        %v2616 = vmax.f32 %v2565, 0.0
        %v2617 = vmax.f32 %v2569, 0.0
        %v2618 = vmax.f32 %v2571, 0.0
        %v2619 = vmax.f32 %v2573, 0.0
        %v2620 = vmax.f32 %v2575, 0.0
        %v2621 = vmax.f32 %v2579, 0.0
        %v2622 = vmax.f32 %v2581, 0.0
        %v2623 = vmax.f32 %v2583, 0.0
        %v2624 = vmax.f32 %v2585, 0.0
        %v2625 = vmax.f32 %v2589, 0.0
        %v2626 = vmax.f32 %v2591, 0.0
        %v2627 = vmax.f32 %v2593, 0.0
        %v2628 = vmax.f32 %v2595, 0.0
        %v2629 = vpack.c.bf16 %v2599, %v2597
        %v2630 = vpack.c.bf16 %v2600, %v2598
        %v2631 = vpack.c.bf16 %v2603, %v2601
        %v2632 = vpack.c.bf16 %v2604, %v2602
        %v2633 = vpack.c.bf16 %v2607, %v2605
        %v2634 = vpack.c.bf16 %v2608, %v2606
        %v2635 = vpack.c.bf16 %v2611, %v2609
        %v2636 = vpack.c.bf16 %v2612, %v2610
        %v2637 = vpack.c.bf16 %v2615, %v2613
        %v2638 = vpack.c.bf16 %v2616, %v2614
        %v2639 = vpack.c.bf16 %v2619, %v2617
        %v2640 = vpack.c.bf16 %v2620, %v2618
        %v2641 = vpack.c.bf16 %v2623, %v2621
        %v2642 = vpack.c.bf16 %v2624, %v2622
        %v2643 = vpack.c.bf16 %v2627, %v2625
        %v2644 = vpack.c.bf16 %v2628, %v2626
        %v2645 = vld [vmem:[%s7] sm:$0xf]
        %v2646 = vld [vmem:[%s7 + $0x4] sm:$0xf]
        %v2647 = vld [vmem:[%s7 + $0x8] sm:$0xf]
        %v2648 = vld [vmem:[%s7 + $0xc] sm:$0xf]
        %v2649 = vld [vmem:[%s7 + $0x10] sm:$0xf]
        %v2650 = vld [vmem:[%s7 + $0x14] sm:$0xf]
        %v2651 = vld [vmem:[%s7 + $0x18] sm:$0xf]
        %v2652 = vld [vmem:[%s7 + $0x1c] sm:$0xf]
        %v2653 = vld [vmem:[%s7 + $0x20] sm:$0xf]
        %v2654 = vld [vmem:[%s7 + $0x24] sm:$0xf]
        %v2655 = vld [vmem:[%s7 + $0x28] sm:$0xf]
        %v2656 = vld [vmem:[%s7 + $0x2c] sm:$0xf]
        %v2657 = vld [vmem:[%s7 + $0x30] sm:$0xf]
        %v2658 = vld [vmem:[%s7 + $0x34] sm:$0xf]
        %v2659 = vld [vmem:[%s7 + $0x38] sm:$0xf]
        %v2660 = vld [vmem:[%s7 + $0x3c] sm:$0xf]
        %v2661 = vld [vmem:[%s7 + $0x40] sm:$0xf]
        %v2662 = vld [vmem:[%s7 + $0x44] sm:$0xf]
        %v2663 = vld [vmem:[%s7 + $0x48] sm:$0xf]
        %v2664 = vld [vmem:[%s7 + $0x4c] sm:$0xf]
        %v2665 = vld [vmem:[%s7 + $0x50] sm:$0xf]
        %v2666 = vld [vmem:[%s7 + $0x54] sm:$0xf]
        %v2667 = vld [vmem:[%s7 + $0x58] sm:$0xf]
        %v2668 = vld [vmem:[%s7 + $0x5c] sm:$0xf]
        %v2669 = vld [vmem:[%s7 + $0x60] sm:$0xf]
        %v2670 = vld [vmem:[%s7 + $0x64] sm:$0xf]
        %v2671 = vld [vmem:[%s7 + $0x68] sm:$0xf]
        %v2672 = vld [vmem:[%s7 + $0x6c] sm:$0xf]
        %v2673 = vld [vmem:[%s7 + $0x70] sm:$0xf]
        %v2674 = vld [vmem:[%s7 + $0x74] sm:$0xf]
        %v2675 = vld [vmem:[%s7 + $0x78] sm:$0xf]
        %v2676 = vld [vmem:[%s7 + $0x7c] sm:$0xf]
        %v2677 = vld [vmem:[%s8] sm:$0x1]
        %v2679 = vlaneseq
        %v2680 = vshrl.u32 %v2679, 7
        %v2681 = vsub.s32 0, %v2680
        %v2682 = vrot.slane %v2677, %v2681
        %v2716 = vunpack.c.l.b16 %v2645
        %v2717 = vunpack.c.l.b16 %v2646
        %v2718 = vunpack.c.l.b16 %v2647
        %v2719 = vunpack.c.l.b16 %v2648
        %v2720 = vunpack.c.l.b16 %v2649
        %v2721 = vunpack.c.l.b16 %v2650
        %v2722 = vunpack.c.l.b16 %v2651
        %v2723 = vunpack.c.l.b16 %v2652
        %v2724 = vunpack.c.l.b16 %v2653
        %v2725 = vunpack.c.l.b16 %v2654
        %v2726 = vunpack.c.l.b16 %v2655
        %v2727 = vunpack.c.l.b16 %v2656
        %v2728 = vunpack.c.l.b16 %v2657
        %v2729 = vunpack.c.l.b16 %v2658
        %v2730 = vunpack.c.l.b16 %v2659
        %v2731 = vunpack.c.l.b16 %v2660
        %v2732 = vunpack.c.l.b16 %v2661
        %v2733 = vunpack.c.l.b16 %v2662
        %v2734 = vunpack.c.l.b16 %v2663
        %v2735 = vunpack.c.l.b16 %v2664
        %v2736 = vunpack.c.l.b16 %v2665
        %v2737 = vunpack.c.l.b16 %v2666
        %v2738 = vunpack.c.l.b16 %v2667
        %v2739 = vunpack.c.l.b16 %v2668
        %v2740 = vunpack.c.l.b16 %v2669
        %v2741 = vunpack.c.l.b16 %v2670
        %v2742 = vunpack.c.l.b16 %v2671
        %v2743 = vunpack.c.l.b16 %v2672
        %v2744 = vunpack.c.l.b16 %v2673
        %v2745 = vunpack.c.l.b16 %v2674
        %v2746 = vunpack.c.l.b16 %v2675
        %v2747 = vunpack.c.l.b16 %v2676
        %v2748 = vpack.c.b16 %v2717, %v2716
        %v2749 = vpack.c.b16 %v2719, %v2718
        %v2750 = vpack.c.b16 %v2721, %v2720
        %v2751 = vpack.c.b16 %v2723, %v2722
        %v2752 = vpack.c.b16 %v2725, %v2724
        %v2753 = vpack.c.b16 %v2727, %v2726
        %v2754 = vpack.c.b16 %v2729, %v2728
        %v2755 = vpack.c.b16 %v2731, %v2730
        %v2756 = vpack.c.b16 %v2733, %v2732
        %v2757 = vpack.c.b16 %v2735, %v2734
        %v2758 = vpack.c.b16 %v2737, %v2736
        %v2759 = vpack.c.b16 %v2739, %v2738
        %v2760 = vpack.c.b16 %v2741, %v2740
        %v2761 = vpack.c.b16 %v2743, %v2742
        %v2762 = vpack.c.b16 %v2745, %v2744
        %v2763 = vpack.c.b16 %v2747, %v2746
        %2780 = vmatprep.subr.bf16.mxu0 0
        %2781 = vmatpush1.bf16.msra.mxu0 %v2748
        %2782 = vmatprep.subr.bf16.mxu0 0
        %2783 = vmatpush1.bf16.msra.mxu0 %v2749
        %2784 = vmatprep.subr.bf16.mxu0 0
        %2785 = vmatpush1.bf16.msra.mxu0 %v2750
        %2786 = vmatprep.subr.bf16.mxu0 0
        %2787 = vmatpush1.bf16.msra.mxu0 %v2751
        %2788 = vmatprep.subr.bf16.mxu0 0
        %2789 = vmatpush1.bf16.msra.mxu0 %v2752
        %2790 = vmatprep.subr.bf16.mxu0 0
        %2791 = vmatpush1.bf16.msra.mxu0 %v2753
        %2792 = vmatprep.subr.bf16.mxu0 0
        %2793 = vmatpush1.bf16.msra.mxu0 %v2754
        %2794 = vmatprep.subr.bf16.mxu0 0
        %2795 = vmatpush1.bf16.msra.mxu0 %v2755
        %2796 = vmatprep.subr.bf16.mxu0 0
        %2797 = vmatpush1.bf16.msra.mxu0 %v2756
        %2798 = vmatprep.subr.bf16.mxu0 0
        %2799 = vmatpush1.bf16.msra.mxu0 %v2757
        %2800 = vmatprep.subr.bf16.mxu0 0
        %2801 = vmatpush1.bf16.msra.mxu0 %v2758
        %2802 = vmatprep.subr.bf16.mxu0 0
        %2803 = vmatpush1.bf16.msra.mxu0 %v2759
        %2804 = vmatprep.subr.bf16.mxu0 0
        %2805 = vmatpush1.bf16.msra.mxu0 %v2760
        %2806 = vmatprep.subr.bf16.mxu0 0
        %2807 = vmatpush1.bf16.msra.mxu0 %v2761
        %2808 = vmatprep.subr.bf16.mxu0 0
        %2809 = vmatpush1.bf16.msra.mxu0 %v2762
        %2810 = vmatprep.subr.bf16.mxu0 0
        %2811 = vmatpush1.bf16.msra.mxu0 %v2763
        %2812 = vmatprep.mubr.bf16.mxu0 %v2630
        %2813 = vmatmul.mubr.bf16.gmra.mrb[0].mxu0 %v2629
        %v2814 = vpop.f32.mrb[0].mxu0
        %v2815 = vadd.f32 %v2682, %v2814
        %v2816 = vpop.f32.mrb[0].mxu0
        %v2817 = vpop.f32.mrb[0].mxu0
        %v2818 = vadd.f32 %v2682, %v2817
        %v2819 = vpop.f32.mrb[0].mxu0
        %2820 = vmatprep.mubr.bf16.mxu0 %v2632
        %2821 = vmatmul.mubr.bf16.gmra.mrb[0].mxu0 %v2631
        %v2822 = vpop.f32.mrb[0].mxu0
        %v2823 = vadd.f32 %v2682, %v2822
        %v2824 = vpop.f32.mrb[0].mxu0
        %v2825 = vpop.f32.mrb[0].mxu0
        %v2826 = vadd.f32 %v2682, %v2825
        %v2827 = vpop.f32.mrb[0].mxu0
        %2828 = vmatprep.mubr.bf16.mxu0 %v2634
        %2829 = vmatmul.mubr.bf16.gmra.mrb[0].mxu0 %v2633
        %v2830 = vpop.f32.mrb[0].mxu0
        %v2831 = vadd.f32 %v2682, %v2830
        %v2832 = vpop.f32.mrb[0].mxu0
        %v2833 = vpop.f32.mrb[0].mxu0
        %v2834 = vadd.f32 %v2682, %v2833
        %v2835 = vpop.f32.mrb[0].mxu0
        %2836 = vmatprep.mubr.bf16.mxu0 %v2636
        %2837 = vmatmul.mubr.bf16.gmra.mrb[0].mxu0 %v2635
        %v2838 = vpop.f32.mrb[0].mxu0
        %v2839 = vadd.f32 %v2682, %v2838
        %v2840 = vpop.f32.mrb[0].mxu0
        %v2841 = vpop.f32.mrb[0].mxu0
        %v2842 = vadd.f32 %v2682, %v2841
        %v2843 = vpop.f32.mrb[0].mxu0
        %2844 = vmatprep.mubr.bf16.mxu0 %v2638
        %2845 = vmatmul.mubr.bf16.gmra.mrb[0].mxu0 %v2637
        %v2846 = vpop.f32.mrb[0].mxu0
        %v2847 = vadd.f32 %v2682, %v2846
        %v2848 = vpop.f32.mrb[0].mxu0
        %v2849 = vpop.f32.mrb[0].mxu0
        %v2850 = vadd.f32 %v2682, %v2849
        %v2851 = vpop.f32.mrb[0].mxu0
        %2852 = vmatprep.mubr.bf16.mxu0 %v2640
        %2853 = vmatmul.mubr.bf16.gmra.mrb[0].mxu0 %v2639
        %v2854 = vpop.f32.mrb[0].mxu0
        %v2855 = vadd.f32 %v2682, %v2854
        %v2856 = vpop.f32.mrb[0].mxu0
        %v2857 = vpop.f32.mrb[0].mxu0
        %v2858 = vadd.f32 %v2682, %v2857
        %v2859 = vpop.f32.mrb[0].mxu0
        %2860 = vmatprep.mubr.bf16.mxu0 %v2642
        %2861 = vmatmul.mubr.bf16.gmra.mrb[0].mxu0 %v2641
        %v2862 = vpop.f32.mrb[0].mxu0
        %v2863 = vadd.f32 %v2682, %v2862
        %v2864 = vpop.f32.mrb[0].mxu0
        %v2865 = vpop.f32.mrb[0].mxu0
        %v2866 = vadd.f32 %v2682, %v2865
        %v2867 = vpop.f32.mrb[0].mxu0
        %2868 = vmatprep.mubr.bf16.mxu0 %v2644
        %2869 = vmatmul.mubr.bf16.gmra.mrb[0].mxu0 %v2643
        %v2870 = vpop.f32.mrb[0].mxu0
        %v2871 = vadd.f32 %v2682, %v2870
        %v2872 = vpop.f32.mrb[0].mxu0
        %v2873 = vpop.f32.mrb[0].mxu0
        %v2874 = vadd.f32 %v2682, %v2873
        %v2875 = vpop.f32.mrb[0].mxu0
        %2876 = vdwg.mxu0
        %v2877 = vmax.f32 %v2815, 0.0
        %v2878 = vmax.f32 %v2818, 0.0
        %v2879 = vmax.f32 %v2823, 0.0
        %v2880 = vmax.f32 %v2826, 0.0
        %v2881 = vmax.f32 %v2831, 0.0
        %v2882 = vmax.f32 %v2834, 0.0
        %v2883 = vmax.f32 %v2839, 0.0
        %v2884 = vmax.f32 %v2842, 0.0
        %v2885 = vmax.f32 %v2847, 0.0
        %v2886 = vmax.f32 %v2850, 0.0
        %v2887 = vmax.f32 %v2855, 0.0
        %v2888 = vmax.f32 %v2858, 0.0
        %v2889 = vmax.f32 %v2863, 0.0
        %v2890 = vmax.f32 %v2866, 0.0
        %v2891 = vmax.f32 %v2871, 0.0
        %v2892 = vmax.f32 %v2874, 0.0
        %v2893 = vpack.c.bf16 %v2878, %v2877
        %v2894 = vpack.c.bf16 %v2880, %v2879
        %v2895 = vpack.c.bf16 %v2882, %v2881
        %v2896 = vpack.c.bf16 %v2884, %v2883
        %v2897 = vpack.c.bf16 %v2886, %v2885
        %v2898 = vpack.c.bf16 %v2888, %v2887
        %v2899 = vpack.c.bf16 %v2890, %v2889
        %v2900 = vpack.c.bf16 %v2892, %v2891
        %v2901 = vld [vmem:[%s9] sm:$0xf]
        %v2902 = vld [vmem:[%s9 + $0x4] sm:$0xf]
        %v2903 = vld [vmem:[%s9 + $0x8] sm:$0xf]
        %v2904 = vld [vmem:[%s9 + $0xc] sm:$0xf]
        %v2905 = vld [vmem:[%s9 + $0x10] sm:$0xf]
        %v2906 = vld [vmem:[%s9 + $0x14] sm:$0xf]
        %v2907 = vld [vmem:[%s9 + $0x18] sm:$0xf]
        %v2908 = vld [vmem:[%s9 + $0x1c] sm:$0xf]
        %v2909 = vld [vmem:[%s9 + $0x20] sm:$0xf]
        %v2910 = vld [vmem:[%s9 + $0x24] sm:$0xf]
        %v2911 = vld [vmem:[%s9 + $0x28] sm:$0xf]
        %v2912 = vld [vmem:[%s9 + $0x2c] sm:$0xf]
        %v2913 = vld [vmem:[%s9 + $0x30] sm:$0xf]
        %v2914 = vld [vmem:[%s9 + $0x34] sm:$0xf]
        %v2915 = vld [vmem:[%s9 + $0x38] sm:$0xf]
        %v2916 = vld [vmem:[%s9 + $0x3c] sm:$0xf]
        %v2917 = vld [vmem:[%s10] sm:$0x1]
        %v2919 = vlaneseq
        %v2920 = vshrl.u32 %v2919, 7
        %v2921 = vsub.s32 0, %v2920
        %v2922 = vrot.slane %v2917, %v2921
        %v2940 = vunpack.c.l.b16 %v2901
        %v2941 = vunpack.c.l.b16 %v2902
        %v2942 = vunpack.c.l.b16 %v2903
        %v2943 = vunpack.c.l.b16 %v2904
        %v2944 = vunpack.c.l.b16 %v2905
        %v2945 = vunpack.c.l.b16 %v2906
        %v2946 = vunpack.c.l.b16 %v2907
        %v2947 = vunpack.c.l.b16 %v2908
        %v2948 = vunpack.c.l.b16 %v2909
        %v2949 = vunpack.c.l.b16 %v2910
        %v2950 = vunpack.c.l.b16 %v2911
        %v2951 = vunpack.c.l.b16 %v2912
        %v2952 = vunpack.c.l.b16 %v2913
        %v2953 = vunpack.c.l.b16 %v2914
        %v2954 = vunpack.c.l.b16 %v2915
        %v2955 = vunpack.c.l.b16 %v2916
        %v2956 = vpack.c.b16 %v2941, %v2940
        %v2957 = vpack.c.b16 %v2943, %v2942
        %v2958 = vpack.c.b16 %v2945, %v2944
        %v2959 = vpack.c.b16 %v2947, %v2946
        %v2960 = vpack.c.b16 %v2949, %v2948
        %v2961 = vpack.c.b16 %v2951, %v2950
        %v2962 = vpack.c.b16 %v2953, %v2952
        %v2963 = vpack.c.b16 %v2955, %v2954
        %2972 = vmatprep.subr.bf16.mxu0 0
        %2973 = vmatpush1.bf16.msra.mxu0 %v2956
        %2974 = vmatprep.subr.bf16.mxu0 0
        %2975 = vmatpush1.bf16.msra.mxu0 %v2957
        %2976 = vmatprep.subr.bf16.mxu0 0
        %2977 = vmatpush1.bf16.msra.mxu0 %v2958
        %2978 = vmatprep.subr.bf16.mxu0 0
        %2979 = vmatpush1.bf16.msra.mxu0 %v2959
        %2980 = vmatprep.subr.bf16.mxu0 0
        %2981 = vmatpush1.bf16.msra.mxu0 %v2960
        %2982 = vmatprep.subr.bf16.mxu0 0
        %2983 = vmatpush1.bf16.msra.mxu0 %v2961
        %2984 = vmatprep.subr.bf16.mxu0 0
        %2985 = vmatpush1.bf16.msra.mxu0 %v2962
        %2986 = vmatprep.subr.bf16.mxu0 0
        %2987 = vmatpush1.bf16.msra.mxu0 %v2963
        %2988 = vmatprep.subr.bf16.mxu0 0
        %2989 = vmatpush1.bf16.msra.mxu0 0
        %2990 = vmatprep.subr.bf16.mxu0 0
        %2991 = vmatpush1.bf16.msra.mxu0 0
        %2992 = vmatprep.subr.bf16.mxu0 0
        %2993 = vmatpush1.bf16.msra.mxu0 0
        %2994 = vmatprep.subr.bf16.mxu0 0
        %2995 = vmatpush1.bf16.msra.mxu0 0
        %2996 = vmatprep.subr.bf16.mxu0 0
        %2997 = vmatpush1.bf16.msra.mxu0 0
        %2998 = vmatprep.subr.bf16.mxu0 0
        %2999 = vmatpush1.bf16.msra.mxu0 0
        %3000 = vmatprep.subr.bf16.mxu0 0
        %3001 = vmatpush1.bf16.msra.mxu0 0
        %3002 = vmatprep.subr.bf16.mxu0 0
        %3003 = vmatpush1.bf16.msra.mxu0 0
        %3004 = vmatprep.mubr.bf16.mxu0 0
        %3005 = vmatmul.mubr.bf16.gmra.mrb[0].mxu0 %v2893
        %v3006 = vpop.f32.mrb[0].mxu0
        %v3007 = vadd.f32 %v2922, %v3006
        %v3008 = vpop.f32.mrb[0].mxu0
        %v3009 = vpop.f32.mrb[0].mxu0
        %v3010 = vadd.f32 %v2922, %v3009
        %v3011 = vpop.f32.mrb[0].mxu0
        %3012 = vmatprep.mubr.bf16.mxu0 0
        %3013 = vmatmul.mubr.bf16.gmra.mrb[0].mxu0 %v2894
        %v3014 = vpop.f32.mrb[0].mxu0
        %v3015 = vadd.f32 %v2922, %v3014
        %v3016 = vpop.f32.mrb[0].mxu0
        %v3017 = vpop.f32.mrb[0].mxu0
        %v3018 = vadd.f32 %v2922, %v3017
        %v3019 = vpop.f32.mrb[0].mxu0
        %3020 = vmatprep.mubr.bf16.mxu0 0
        %3021 = vmatmul.mubr.bf16.gmra.mrb[0].mxu0 %v2895
        %v3022 = vpop.f32.mrb[0].mxu0
        %v3023 = vadd.f32 %v2922, %v3022
        %v3024 = vpop.f32.mrb[0].mxu0
        %v3025 = vpop.f32.mrb[0].mxu0
        %v3026 = vadd.f32 %v2922, %v3025
        %v3027 = vpop.f32.mrb[0].mxu0
        %3028 = vmatprep.mubr.bf16.mxu0 0
        %3029 = vmatmul.mubr.bf16.gmra.mrb[0].mxu0 %v2896
        %v3030 = vpop.f32.mrb[0].mxu0
        %v3031 = vadd.f32 %v2922, %v3030
        %v3032 = vpop.f32.mrb[0].mxu0
        %v3033 = vpop.f32.mrb[0].mxu0
        %v3034 = vadd.f32 %v2922, %v3033
        %v3035 = vpop.f32.mrb[0].mxu0
        %3036 = vmatprep.mubr.bf16.mxu0 0
        %3037 = vmatmul.mubr.bf16.gmra.mrb[0].mxu0 %v2897
        %v3038 = vpop.f32.mrb[0].mxu0
        %v3039 = vadd.f32 %v2922, %v3038
        %v3040 = vpop.f32.mrb[0].mxu0
        %v3041 = vpop.f32.mrb[0].mxu0
        %v3042 = vadd.f32 %v2922, %v3041
        %v3043 = vpop.f32.mrb[0].mxu0
        %3044 = vmatprep.mubr.bf16.mxu0 0
        %3045 = vmatmul.mubr.bf16.gmra.mrb[0].mxu0 %v2898
        %v3046 = vpop.f32.mrb[0].mxu0
        %v3047 = vadd.f32 %v2922, %v3046
        %v3048 = vpop.f32.mrb[0].mxu0
        %v3049 = vpop.f32.mrb[0].mxu0
        %v3050 = vadd.f32 %v2922, %v3049
        %v3051 = vpop.f32.mrb[0].mxu0
        %3052 = vmatprep.mubr.bf16.mxu0 0
        %3053 = vmatmul.mubr.bf16.gmra.mrb[0].mxu0 %v2899
        %v3054 = vpop.f32.mrb[0].mxu0
        %v3055 = vadd.f32 %v2922, %v3054
        %v3056 = vpop.f32.mrb[0].mxu0
        %v3057 = vpop.f32.mrb[0].mxu0
        %v3058 = vadd.f32 %v2922, %v3057
        %v3059 = vpop.f32.mrb[0].mxu0
        %3060 = vmatprep.mubr.bf16.mxu0 0
        %3061 = vmatmul.mubr.bf16.gmra.mrb[0].mxu0 %v2900
        %v3062 = vpop.f32.mrb[0].mxu0
        %v3063 = vadd.f32 %v2922, %v3062
        %v3064 = vpop.f32.mrb[0].mxu0
        %v3065 = vpop.f32.mrb[0].mxu0
        %v3066 = vadd.f32 %v2922, %v3065
        %v3067 = vpop.f32.mrb[0].mxu0
        %3068 = vdwg.mxu0
        %v3069 = vmax.f32 %v3007, 0.0
        %v3070 = vmax.f32 %v3010, 0.0
        %v3071 = vmax.f32 %v3015, 0.0
        %v3072 = vmax.f32 %v3018, 0.0
        %v3073 = vmax.f32 %v3023, 0.0
        %v3074 = vmax.f32 %v3026, 0.0
        %v3075 = vmax.f32 %v3031, 0.0
        %v3076 = vmax.f32 %v3034, 0.0
        %v3077 = vmax.f32 %v3039, 0.0
        %v3078 = vmax.f32 %v3042, 0.0
        %v3079 = vmax.f32 %v3047, 0.0
        %v3080 = vmax.f32 %v3050, 0.0
        %v3081 = vmax.f32 %v3055, 0.0
        %v3082 = vmax.f32 %v3058, 0.0
        %v3083 = vmax.f32 %v3063, 0.0
        %v3084 = vmax.f32 %v3066, 0.0
        %v3085 = vpack.c.bf16 %v3070, %v3069
        %v3086 = vpack.c.bf16 %v3072, %v3071
        %v3087 = vpack.c.bf16 %v3074, %v3073
        %v3088 = vpack.c.bf16 %v3076, %v3075
        %v3089 = vpack.c.bf16 %v3078, %v3077
        %v3090 = vpack.c.bf16 %v3080, %v3079
        %v3091 = vpack.c.bf16 %v3082, %v3081
        %v3092 = vpack.c.bf16 %v3084, %v3083
        %v3093 = vld [vmem:[%s11] sm:$0xf]
        %v3094 = vld [vmem:[%s11 + $0x4] sm:$0xf]
        %v3095 = vld [vmem:[%s11 + $0x8] sm:$0xf]
        %v3096 = vld [vmem:[%s11 + $0xc] sm:$0xf]
        %v3097 = vld [vmem:[%s11 + $0x10] sm:$0xf]
        %v3098 = vld [vmem:[%s11 + $0x14] sm:$0xf]
        %v3099 = vld [vmem:[%s11 + $0x18] sm:$0xf]
        %v3100 = vld [vmem:[%s11 + $0x1c] sm:$0xf]
        %v3101 = vld [vmem:[%s11 + $0x20] sm:$0xf]
        %v3102 = vld [vmem:[%s11 + $0x24] sm:$0xf]
        %v3103 = vld [vmem:[%s11 + $0x28] sm:$0xf]
        %v3104 = vld [vmem:[%s11 + $0x2c] sm:$0xf]
        %v3105 = vld [vmem:[%s11 + $0x30] sm:$0xf]
        %v3106 = vld [vmem:[%s11 + $0x34] sm:$0xf]
        %v3107 = vld [vmem:[%s11 + $0x38] sm:$0xf]
        %v3108 = vld [vmem:[%s11 + $0x3c] sm:$0xf]
        %v3109 = vld [vmem:[%s12] sm:$0x1]
        %v3111 = vlaneseq
        %v3112 = vshrl.u32 %v3111, 7
        %v3113 = vsub.s32 0, %v3112
        %v3114 = vrot.slane %v3109, %v3113
        %v3132 = vunpack.c.l.b16 %v3093
        %v3133 = vunpack.c.l.b16 %v3094
        %v3134 = vunpack.c.l.b16 %v3095
        %v3135 = vunpack.c.l.b16 %v3096
        %v3136 = vunpack.c.l.b16 %v3097
        %v3137 = vunpack.c.l.b16 %v3098
        %v3138 = vunpack.c.l.b16 %v3099
        %v3139 = vunpack.c.l.b16 %v3100
        %v3140 = vunpack.c.l.b16 %v3101
        %v3141 = vunpack.c.l.b16 %v3102
        %v3142 = vunpack.c.l.b16 %v3103
        %v3143 = vunpack.c.l.b16 %v3104
        %v3144 = vunpack.c.l.b16 %v3105
        %v3145 = vunpack.c.l.b16 %v3106
        %v3146 = vunpack.c.l.b16 %v3107
        %v3147 = vunpack.c.l.b16 %v3108
        %v3148 = vpack.c.b16 %v3133, %v3132
        %v3149 = vpack.c.b16 %v3135, %v3134
        %v3150 = vpack.c.b16 %v3137, %v3136
        %v3151 = vpack.c.b16 %v3139, %v3138
        %v3152 = vpack.c.b16 %v3141, %v3140
        %v3153 = vpack.c.b16 %v3143, %v3142
        %v3154 = vpack.c.b16 %v3145, %v3144
        %v3155 = vpack.c.b16 %v3147, %v3146
        %3164 = vmatprep.subr.bf16.mxu0 0
        %3165 = vmatpush1.bf16.msra.mxu0 %v3148
        %3166 = vmatprep.subr.bf16.mxu0 0
        %3167 = vmatpush1.bf16.msra.mxu0 %v3149
        %3168 = vmatprep.subr.bf16.mxu0 0
        %3169 = vmatpush1.bf16.msra.mxu0 %v3150
        %3170 = vmatprep.subr.bf16.mxu0 0
        %3171 = vmatpush1.bf16.msra.mxu0 %v3151
        %3172 = vmatprep.subr.bf16.mxu0 0
        %3173 = vmatpush1.bf16.msra.mxu0 %v3152
        %3174 = vmatprep.subr.bf16.mxu0 0
        %3175 = vmatpush1.bf16.msra.mxu0 %v3153
        %3176 = vmatprep.subr.bf16.mxu0 0
        %3177 = vmatpush1.bf16.msra.mxu0 %v3154
        %3178 = vmatprep.subr.bf16.mxu0 0
        %3179 = vmatpush1.bf16.msra.mxu0 %v3155
        %3180 = vmatprep.subr.bf16.mxu0 0
        %3181 = vmatpush1.bf16.msra.mxu0 0
        %3182 = vmatprep.subr.bf16.mxu0 0
        %3183 = vmatpush1.bf16.msra.mxu0 0
        %3184 = vmatprep.subr.bf16.mxu0 0
        %3185 = vmatpush1.bf16.msra.mxu0 0
        %3186 = vmatprep.subr.bf16.mxu0 0
        %3187 = vmatpush1.bf16.msra.mxu0 0
        %3188 = vmatprep.subr.bf16.mxu0 0
        %3189 = vmatpush1.bf16.msra.mxu0 0
        %3190 = vmatprep.subr.bf16.mxu0 0
        %3191 = vmatpush1.bf16.msra.mxu0 0
        %3192 = vmatprep.subr.bf16.mxu0 0
        %3193 = vmatpush1.bf16.msra.mxu0 0
        %3194 = vmatprep.subr.bf16.mxu0 0
        %3195 = vmatpush1.bf16.msra.mxu0 0
        %3196 = vmatprep.mubr.bf16.mxu0 0
        %3197 = vmatmul.mubr.bf16.gmra.mrb[0].mxu0 %v3085
        %v3198 = vpop.f32.mrb[0].mxu0
        %v3199 = vadd.f32 %v3114, %v3198
        %v3200 = vpop.f32.mrb[0].mxu0
        %v3201 = vpop.f32.mrb[0].mxu0
        %v3202 = vadd.f32 %v3114, %v3201
        %v3203 = vpop.f32.mrb[0].mxu0
        %3204 = vmatprep.mubr.bf16.mxu0 0
        %3205 = vmatmul.mubr.bf16.gmra.mrb[0].mxu0 %v3086
        %v3206 = vpop.f32.mrb[0].mxu0
        %v3207 = vadd.f32 %v3114, %v3206
        %v3208 = vpop.f32.mrb[0].mxu0
        %v3209 = vpop.f32.mrb[0].mxu0
        %v3210 = vadd.f32 %v3114, %v3209
        %v3211 = vpop.f32.mrb[0].mxu0
        %3212 = vmatprep.mubr.bf16.mxu0 0
        %3213 = vmatmul.mubr.bf16.gmra.mrb[0].mxu0 %v3087
        %v3214 = vpop.f32.mrb[0].mxu0
        %v3215 = vadd.f32 %v3114, %v3214
        %v3216 = vpop.f32.mrb[0].mxu0
        %v3217 = vpop.f32.mrb[0].mxu0
        %v3218 = vadd.f32 %v3114, %v3217
        %v3219 = vpop.f32.mrb[0].mxu0
        %3220 = vmatprep.mubr.bf16.mxu0 0
        %3221 = vmatmul.mubr.bf16.gmra.mrb[0].mxu0 %v3088
        %v3222 = vpop.f32.mrb[0].mxu0
        %v3223 = vadd.f32 %v3114, %v3222
        %v3224 = vpop.f32.mrb[0].mxu0
        %v3225 = vpop.f32.mrb[0].mxu0
        %v3226 = vadd.f32 %v3114, %v3225
        %v3227 = vpop.f32.mrb[0].mxu0
        %3228 = vmatprep.mubr.bf16.mxu0 0
        %3229 = vmatmul.mubr.bf16.gmra.mrb[0].mxu0 %v3089
        %v3230 = vpop.f32.mrb[0].mxu0
        %v3231 = vadd.f32 %v3114, %v3230
        %v3232 = vpop.f32.mrb[0].mxu0
        %v3233 = vpop.f32.mrb[0].mxu0
        %v3234 = vadd.f32 %v3114, %v3233
        %v3235 = vpop.f32.mrb[0].mxu0
        %3236 = vmatprep.mubr.bf16.mxu0 0
        %3237 = vmatmul.mubr.bf16.gmra.mrb[0].mxu0 %v3090
        %v3238 = vpop.f32.mrb[0].mxu0
        %v3239 = vadd.f32 %v3114, %v3238
        %v3240 = vpop.f32.mrb[0].mxu0
        %v3241 = vpop.f32.mrb[0].mxu0
        %v3242 = vadd.f32 %v3114, %v3241
        %v3243 = vpop.f32.mrb[0].mxu0
        %3244 = vmatprep.mubr.bf16.mxu0 0
        %3245 = vmatmul.mubr.bf16.gmra.mrb[0].mxu0 %v3091
        %v3246 = vpop.f32.mrb[0].mxu0
        %v3247 = vadd.f32 %v3114, %v3246
        %v3248 = vpop.f32.mrb[0].mxu0
        %v3249 = vpop.f32.mrb[0].mxu0
        %v3250 = vadd.f32 %v3114, %v3249
        %v3251 = vpop.f32.mrb[0].mxu0
        %3252 = vmatprep.mubr.bf16.mxu0 0
        %3253 = vmatmul.mubr.bf16.gmra.mrb[0].mxu0 %v3092
        %v3254 = vpop.f32.mrb[0].mxu0
        %v3255 = vadd.f32 %v3114, %v3254
        %v3256 = vpop.f32.mrb[0].mxu0
        %v3257 = vpop.f32.mrb[0].mxu0
        %v3258 = vadd.f32 %v3114, %v3257
        %v3259 = vpop.f32.mrb[0].mxu0
        %3260 = vdwg.mxu0
        %3261 = vmax.xlane.f32.xlu0 %v3199
        %v3262 = vpop.xlane.xlu0 %3261
        %3263 = vmax.xlane.f32.xlu0 %v3202
        %v3264 = vpop.xlane.xlu0 %3263
        %3265 = vmax.xlane.f32.xlu0 %v3207
        %v3266 = vpop.xlane.xlu0 %3265
        %3267 = vmax.xlane.f32.xlu0 %v3210
        %v3268 = vpop.xlane.xlu0 %3267
        %3269 = vmax.xlane.f32.xlu0 %v3215
        %v3270 = vpop.xlane.xlu0 %3269
        %3271 = vmax.xlane.f32.xlu0 %v3218
        %v3272 = vpop.xlane.xlu0 %3271
        %3273 = vmax.xlane.f32.xlu0 %v3223
        %v3274 = vpop.xlane.xlu0 %3273
        %3275 = vmax.xlane.f32.xlu0 %v3226
        %v3276 = vpop.xlane.xlu0 %3275
        %3277 = vmax.xlane.f32.xlu0 %v3231
        %v3278 = vpop.xlane.xlu0 %3277
        %3279 = vmax.xlane.f32.xlu0 %v3234
        %v3280 = vpop.xlane.xlu0 %3279
        %3281 = vmax.xlane.f32.xlu0 %v3239
        %v3282 = vpop.xlane.xlu0 %3281
        %3283 = vmax.xlane.f32.xlu0 %v3242
        %v3284 = vpop.xlane.xlu0 %3283
        %3285 = vmax.xlane.f32.xlu0 %v3247
        %v3286 = vpop.xlane.xlu0 %3285
        %3287 = vmax.xlane.f32.xlu0 %v3250
        %v3288 = vpop.xlane.xlu0 %3287
        %3289 = vmax.xlane.f32.xlu0 %v3255
        %v3290 = vpop.xlane.xlu0 %3289
        %3291 = vmax.xlane.f32.xlu0 %v3258
        %v3292 = vpop.xlane.xlu0 %3291
        %v3293 = vsub.f32 %v3199, %v3262
        %v3294 = vsub.f32 %v3202, %v3264
        %v3295 = vsub.f32 %v3207, %v3266
        %v3296 = vsub.f32 %v3210, %v3268
        %v3297 = vsub.f32 %v3215, %v3270
        %v3298 = vsub.f32 %v3218, %v3272
        %v3299 = vsub.f32 %v3223, %v3274
        %v3300 = vsub.f32 %v3226, %v3276
        %v3301 = vsub.f32 %v3231, %v3278
        %v3302 = vsub.f32 %v3234, %v3280
        %v3303 = vsub.f32 %v3239, %v3282
        %v3304 = vsub.f32 %v3242, %v3284
        %v3305 = vsub.f32 %v3247, %v3286
        %v3306 = vsub.f32 %v3250, %v3288
        %v3307 = vsub.f32 %v3255, %v3290
        %v3308 = vsub.f32 %v3258, %v3292
        %v3309 = vmul.f32 %v3293, 1.442695
        %v3310 = vpow.pop %v3309
        %v3311 = vmul.f32 %v3294, 1.442695
        %v3312 = vpow.pop %v3311
        %v3313 = vmul.f32 %v3295, 1.442695
        %v3314 = vpow.pop %v3313
        %v3315 = vmul.f32 %v3296, 1.442695
        %v3316 = vpow.pop %v3315
        %v3317 = vmul.f32 %v3297, 1.442695
        %v3318 = vpow.pop %v3317
        %v3319 = vmul.f32 %v3298, 1.442695
        %v3320 = vpow.pop %v3319
        %v3321 = vmul.f32 %v3299, 1.442695
        %v3322 = vpow.pop %v3321
        %v3323 = vmul.f32 %v3300, 1.442695
        %v3324 = vpow.pop %v3323
        %v3325 = vmul.f32 %v3301, 1.442695
        %v3326 = vpow.pop %v3325
        %v3327 = vmul.f32 %v3302, 1.442695
        %v3328 = vpow.pop %v3327
        %v3329 = vmul.f32 %v3303, 1.442695
        %v3330 = vpow.pop %v3329
        %v3331 = vmul.f32 %v3304, 1.442695
        %v3332 = vpow.pop %v3331
        %v3333 = vmul.f32 %v3305, 1.442695
        %v3334 = vpow.pop %v3333
        %v3335 = vmul.f32 %v3306, 1.442695
        %v3336 = vpow.pop %v3335
        %v3337 = vmul.f32 %v3307, 1.442695
        %v3338 = vpow.pop %v3337
        %v3339 = vmul.f32 %v3308, 1.442695
        %v3340 = vpow.pop %v3339
        %3341 = vadd.xlane.f32.xlu0 %v3310
        %v3342 = vpop.xlane.xlu0 %3341
        %3343 = vadd.xlane.f32.xlu0 %v3312
        %v3344 = vpop.xlane.xlu0 %3343
        %3345 = vadd.xlane.f32.xlu0 %v3314
        %v3346 = vpop.xlane.xlu0 %3345
        %3347 = vadd.xlane.f32.xlu0 %v3316
        %v3348 = vpop.xlane.xlu0 %3347
        %3349 = vadd.xlane.f32.xlu0 %v3318
        %v3350 = vpop.xlane.xlu0 %3349
        %3351 = vadd.xlane.f32.xlu0 %v3320
        %v3352 = vpop.xlane.xlu0 %3351
        %3353 = vadd.xlane.f32.xlu0 %v3322
        %v3354 = vpop.xlane.xlu0 %3353
        %3355 = vadd.xlane.f32.xlu0 %v3324
        %v3356 = vpop.xlane.xlu0 %3355
        %3357 = vadd.xlane.f32.xlu0 %v3326
        %v3358 = vpop.xlane.xlu0 %3357
        %3359 = vadd.xlane.f32.xlu0 %v3328
        %v3360 = vpop.xlane.xlu0 %3359
        %3361 = vadd.xlane.f32.xlu0 %v3330
        %v3362 = vpop.xlane.xlu0 %3361
        %3363 = vadd.xlane.f32.xlu0 %v3332
        %v3364 = vpop.xlane.xlu0 %3363
        %3365 = vadd.xlane.f32.xlu0 %v3334
        %v3366 = vpop.xlane.xlu0 %3365
        %3367 = vadd.xlane.f32.xlu0 %v3336
        %v3368 = vpop.xlane.xlu0 %3367
        %3369 = vadd.xlane.f32.xlu0 %v3338
        %v3370 = vpop.xlane.xlu0 %3369
        %3371 = vadd.xlane.f32.xlu0 %v3340
        %v3372 = vpop.xlane.xlu0 %3371
        %v3373 = vlog2.pop %v3342
        %v3374 = vmul.f32 %v3373, 0.6931472
        %v3375 = vlog2.pop %v3344
        %v3376 = vmul.f32 %v3375, 0.6931472
        %v3377 = vlog2.pop %v3346
        %v3378 = vmul.f32 %v3377, 0.6931472
        %v3379 = vlog2.pop %v3348
        %v3380 = vmul.f32 %v3379, 0.6931472
        %v3381 = vlog2.pop %v3350
        %v3382 = vmul.f32 %v3381, 0.6931472
        %v3383 = vlog2.pop %v3352
        %v3384 = vmul.f32 %v3383, 0.6931472
        %v3385 = vlog2.pop %v3354
        %v3386 = vmul.f32 %v3385, 0.6931472
        %v3387 = vlog2.pop %v3356
        %v3388 = vmul.f32 %v3387, 0.6931472
        %v3389 = vlog2.pop %v3358
        %v3390 = vmul.f32 %v3389, 0.6931472
        %v3391 = vlog2.pop %v3360
        %v3392 = vmul.f32 %v3391, 0.6931472
        %v3393 = vlog2.pop %v3362
        %v3394 = vmul.f32 %v3393, 0.6931472
        %v3395 = vlog2.pop %v3364
        %v3396 = vmul.f32 %v3395, 0.6931472
        %v3397 = vlog2.pop %v3366
        %v3398 = vmul.f32 %v3397, 0.6931472
        %v3399 = vlog2.pop %v3368
        %v3400 = vmul.f32 %v3399, 0.6931472
        %v3401 = vlog2.pop %v3370
        %v3402 = vmul.f32 %v3401, 0.6931472
        %v3403 = vlog2.pop %v3372
        %v3404 = vmul.f32 %v3403, 0.6931472
        %v3405 = vsub.f32 %v3293, %v3374
        %v3406 = vsub.f32 %v3294, %v3376
        %v3407 = vsub.f32 %v3295, %v3378
        %v3408 = vsub.f32 %v3296, %v3380
        %v3409 = vsub.f32 %v3297, %v3382
        %v3410 = vsub.f32 %v3298, %v3384
        %v3411 = vsub.f32 %v3299, %v3386
        %v3412 = vsub.f32 %v3300, %v3388
        %v3413 = vsub.f32 %v3301, %v3390
        %v3414 = vsub.f32 %v3302, %v3392
        %v3415 = vsub.f32 %v3303, %v3394
        %v3416 = vsub.f32 %v3304, %v3396
        %v3417 = vsub.f32 %v3305, %v3398
        %v3418 = vsub.f32 %v3306, %v3400
        %v3419 = vsub.f32 %v3307, %v3402
        %v3420 = vsub.f32 %v3308, %v3404
        %v3421 = vpack.c.bf16 %v3406, %v3405
        %v3422 = vpack.c.bf16 %v3408, %v3407
        %v3423 = vpack.c.bf16 %v3410, %v3409
        %v3424 = vpack.c.bf16 %v3412, %v3411
        %v3425 = vpack.c.bf16 %v3414, %v3413
        %v3426 = vpack.c.bf16 %v3416, %v3415
        %v3427 = vpack.c.bf16 %v3418, %v3417
        %v3428 = vpack.c.bf16 %v3420, %v3419
        %v3437 = vunpack.c.l.b16 %v3421
        %v3438 = vunpack.c.h.b16 %v3421
        %v3439 = vunpack.c.l.b16 %v3422
        %v3440 = vunpack.c.h.b16 %v3422
        %v3441 = vunpack.c.l.b16 %v3423
        %v3442 = vunpack.c.h.b16 %v3423
        %v3443 = vunpack.c.l.b16 %v3424
        %v3444 = vunpack.c.h.b16 %v3424
        %v3445 = vunpack.c.l.b16 %v3425
        %v3446 = vunpack.c.h.b16 %v3425
        %v3447 = vunpack.c.l.b16 %v3426
        %v3448 = vunpack.c.h.b16 %v3426
        %v3449 = vunpack.c.l.b16 %v3427
        %v3450 = vunpack.c.h.b16 %v3427
        %v3451 = vunpack.c.l.b16 %v3428
        %v3452 = vunpack.c.h.b16 %v3428
        %v3453 = vpack.c.b16 %v3437, %v3437
        %v3454 = vpack.c.b16 %v3438, %v3438
        %v3455 = vpack.c.b16 %v3439, %v3439
        %v3456 = vpack.c.b16 %v3440, %v3440
        %v3457 = vpack.c.b16 %v3441, %v3441
        %v3458 = vpack.c.b16 %v3442, %v3442
        %v3459 = vpack.c.b16 %v3443, %v3443
        %v3460 = vpack.c.b16 %v3444, %v3444
        %v3461 = vpack.c.b16 %v3445, %v3445
        %v3462 = vpack.c.b16 %v3446, %v3446
        %v3463 = vpack.c.b16 %v3447, %v3447
        %v3464 = vpack.c.b16 %v3448, %v3448
        %v3465 = vpack.c.b16 %v3449, %v3449
        %v3466 = vpack.c.b16 %v3450, %v3450
        %v3467 = vpack.c.b16 %v3451, %v3451
        %v3468 = vpack.c.b16 %v3452, %v3452
        %3485 = vst [vmem:[%s436] sm:$0xf] %v3453
        %3486 = vst [vmem:[%s436 + $0x4] sm:$0xf] %v3454
        %3487 = vst [vmem:[%s436 + $0x8] sm:$0xf] %v3455
        %3488 = vst [vmem:[%s436 + $0xc] sm:$0xf] %v3456
        %3489 = vst [vmem:[%s436 + $0x10] sm:$0xf] %v3457
        %3490 = vst [vmem:[%s436 + $0x14] sm:$0xf] %v3458
        %3491 = vst [vmem:[%s436 + $0x18] sm:$0xf] %v3459
        %3492 = vst [vmem:[%s436 + $0x1c] sm:$0xf] %v3460
        %3493 = vst [vmem:[%s436 + $0x20] sm:$0xf] %v3461
        %3494 = vst [vmem:[%s436 + $0x24] sm:$0xf] %v3462
        %3495 = vst [vmem:[%s436 + $0x28] sm:$0xf] %v3463
        %3496 = vst [vmem:[%s436 + $0x2c] sm:$0xf] %v3464
        %3497 = vst [vmem:[%s436 + $0x30] sm:$0xf] %v3465
        %3498 = vst [vmem:[%s436 + $0x34] sm:$0xf] %v3466
        %3499 = vst [vmem:[%s436 + $0x38] sm:$0xf] %v3467
        %3500 = vst [vmem:[%s436 + $0x3c] sm:$0xf] %v3468
        %s3501 = sand.u32 %s313, 1
        %s3502 = scalar_lea.sflag [#allocation3], %s3501
        %s3503 = sand.u32 %s313, 1
        %s3504 = smul.addr %s3503, 64
        %s3505 = scalar_lea.vmem [#allocation2], %s3504
        // Predicated region
        $region73: #{tpu_custom_call.1} parent=71 // pred_check
          %p3506 = pneg %p323
        $region74: #{tpu_custom_call.1} parent=71 // pred_check_branch
          %3508 = sbr.rel (%p3506) target = $region76
        $region75: #{tpu_custom_call.1} parent=71 // pred_region
          %s3509 = smul.u32 16, %s27
          %s3511 = ssub.s32 1024, 1024
          %3512 = vsyncadd %s3502, %s3511
          %s3513 = smul.addr %s3509, 64
          %s3514 = scalar_lea.hbm %s13, %s3513
          %s3515 = sshll.u32 %s3505, 4
          %s3516 = int_to_ptr.vmem [resolvable:$true] %s3515
          %3521 = dma.vmem_to_hbm [thread:$0]  %s3516, 1024, %s3514, %s3502, 64, 64, 4
        $region76: #{tpu_custom_call.1} parent=71 // pred_fallthru
          _
      $region72: #{tpu_custom_call.1} parent=5 // pred_fallthru
        _
      %p3522 = scmp.le.s32.totalorder 2, %s22
      // Predicated region
      $region77: #{tpu_custom_call.1} parent=5 // pred_check
        %p3523 = pneg %p3522
      $region78: #{tpu_custom_call.1} parent=5 // pred_check_branch
        %3525 = sbr.rel (%p3523) target = $region80
      $region79: #{tpu_custom_call.1} parent=5 // pred_region
        %s3526 = ssub.s32 %s22, 2
        // Predicated region
        $region81: #{tpu_custom_call.1} parent=79 // pred_check
          %p3527 = pneg %p329
        $region82: #{tpu_custom_call.1} parent=79 // pred_check_branch
          %3529 = sbr.rel (%p3527) target = $region84
        $region83: #{tpu_custom_call.1} parent=79 // pred_region
          %s3530 = sand.u32 %s314, 1
          %s3531 = scalar_lea.sflag [#allocation3], %s3530
          %s3532 = sand.u32 %s314, 1
          %s3533 = smul.addr %s3532, 64
          %s3534 = scalar_lea.vmem [#allocation2], %s3533
          %3535 = dma.done %s3531, 1024
        $region84: #{tpu_custom_call.1} parent=79 // pred_fallthru
          _
      $region80: #{tpu_custom_call.1} parent=5 // pred_fallthru
        _
    $region6: #{tpu_custom_call.1} parent=1 // loop_footer
      %s26 = sadd.s32 1, %s22
    $region7: #{tpu_custom_call.1} parent=1 // loop_footer_branch
      %21 = sbr.rel target = $region3
    $region8: #{tpu_custom_call.1} parent=1 // loop_exit
      _
    %3536 = vsyncpa [#allocation3], 1
    %s3537 = scalar_lea.sflag [#allocation3], 1
    %3538 = vsyncpa %s3537, 1

</llo_original>
